<compile_context>
chip_gen: v7x
topology: tpu7x:2x2x1
jax: 0.10.0
libtpu: 0.0.40
codegen_flags: <defaults>
</compile_context>

<pallas_src>
import math
from functools import partial

import jax
import jax.numpy as jnp
from jax.experimental import pallas as pl
from jax.experimental.pallas import tpu as pltpu


# --------------------------------------------------------------------------
# small helpers
# --------------------------------------------------------------------------
def _round_up(x, m):
    return ((x + m - 1) // m) * m


def _row_tiles(m, tile_m):
    """Pick an effective row tile (multiple of 8) and the padded row count."""
    tile_m = max(8, _round_up(tile_m, 8))
    tm = min(tile_m, _round_up(m, 8))
    m_pad = _round_up(m, tm)
    return tm, m_pad


def _pad_rows(x2d, m_pad):
    m = x2d.shape[0]
    if m_pad == m:
        return x2d
    return jnp.pad(x2d, ((0, m_pad - m), (0, 0)))


def _compiler_params(tile_bytes, resident_bytes):
    """Raise the scoped VMEM limit to cover double-buffered tiles + resident
    weights (with headroom), clamped to a range safe on v5e/v6e/v7x."""
    need = 2 * tile_bytes + 2 * resident_bytes + (4 << 20)
    limit = int(max(32 << 20, min(need, 48 << 20)))
    return pltpu.CompilerParams(
        dimension_semantics=("parallel",),
        vmem_limit_bytes=limit,
    )


# --------------------------------------------------------------------------
# kernels
# --------------------------------------------------------------------------
def _ln_linear_kernel(x_ref, g_ref, b_ref, w_ref, bias_ref, o_ref, *, eps):
    """out = LayerNorm(x; g, b) @ W + bias   (LN math in f32, MXU in native dtype)."""
    x = x_ref[...].astype(jnp.float32)
    mu = jnp.mean(x, axis=-1, keepdims=True)
    xc = x - mu
    var = jnp.mean(xc * xc, axis=-1, keepdims=True)
    xn = xc * jax.lax.rsqrt(var + eps)
    y = xn * g_ref[...].astype(jnp.float32) + b_ref[...].astype(jnp.float32)
    y = y.astype(w_ref.dtype)                       # native-dtype MXU operand
    out = jnp.dot(y, w_ref[...], preferred_element_type=jnp.float32)
    out = out + bias_ref[...].astype(jnp.float32)
    o_ref[...] = out.astype(o_ref.dtype)


def _attn_proj_residual_kernel(q_ref, k_ref, v_ref, res_ref, w_ref, b_ref,
                               o_ref, *, scale):
    """out = residual + bias + proj(softmax(q k^T * scale) v)
    for one batch element, all heads.  W_proj is pre-reshaped to (H, dh, C) so
    the head-merge + projection is a batched matmul followed by a head-sum
    (no in-kernel transpose)."""
    q = q_ref[0]                                    # (H, N, dh)
    k = k_ref[0]
    v = v_ref[0]
    s = jnp.einsum("hqd,hkd->hqk", q, k,
                   preferred_element_type=jnp.float32) * scale
    m = jnp.max(s, axis=-1, keepdims=True)
    p = jnp.exp(s - m)
    l = jnp.sum(p, axis=-1, keepdims=True)
    p = p / l
    o = jnp.einsum("hqk,hkd->hqd", p.astype(v.dtype), v,
                   preferred_element_type=jnp.float32)      # (H, N, dh) f32
    o = o.astype(w_ref.dtype)
    # per-head projection: (H, N, dh) x (H, dh, C) -> (H, N, C), then sum heads
    per_head = jnp.einsum("hnd,hdc->hnc", o, w_ref[...],
                          preferred_element_type=jnp.float32)
    out = jnp.sum(per_head, axis=0)                          # (N, C)
    out = out + b_ref[...].astype(jnp.float32) + res_ref[0].astype(jnp.float32)
    o_ref[0] = out.astype(o_ref.dtype)


def _ln_mlp_residual_kernel(x_ref, g_ref, b_ref, w1_ref, b1_ref, w2_ref, b2_ref,
                            o_ref, *, eps):
    """out = x + fc2(GELU(fc1(LayerNorm(x))))  with exact (erf) GELU."""
    x = x_ref[...].astype(jnp.float32)
    mu = jnp.mean(x, axis=-1, keepdims=True)
    xc = x - mu
    var = jnp.mean(xc * xc, axis=-1, keepdims=True)
    xn = xc * jax.lax.rsqrt(var + eps)
    y = xn * g_ref[...].astype(jnp.float32) + b_ref[...].astype(jnp.float32)
    y = y.astype(w1_ref.dtype)
    h = jnp.dot(y, w1_ref[...], preferred_element_type=jnp.float32)
    h = h + b1_ref[...].astype(jnp.float32)
    h = 0.5 * h * (1.0 + jax.lax.erf(h * (1.0 / math.sqrt(2.0))))   # exact GELU
    h = h.astype(w2_ref.dtype)
    out = jnp.dot(h, w2_ref[...], preferred_element_type=jnp.float32)
    out = out + b2_ref[...].astype(jnp.float32) + x                 # residual
    o_ref[...] = out.astype(o_ref.dtype)


# --------------------------------------------------------------------------
# pallas_call wrappers
# --------------------------------------------------------------------------
def _ln_linear(x2d, gamma, beta, w, bias, *, eps, tile_m):
    m, c_in = x2d.shape
    c_out = w.shape[1]
    tm, m_pad = _row_tiles(m, tile_m)
    xp = _pad_rows(x2d, m_pad)
    item = x2d.dtype.itemsize
    out = pl.pallas_call(
        partial(_ln_linear_kernel, eps=eps),
        out_shape=jax.ShapeDtypeStruct((m_pad, c_out), x2d.dtype),
        grid_spec=pltpu.PrefetchScalarGridSpec(
            num_scalar_prefetch=0,
            grid=(m_pad // tm,),
            in_specs=[
                pl.BlockSpec((tm, c_in), lambda i: (i, 0)),       # x tile
                pl.BlockSpec((1, c_in), lambda i: (0, 0)),        # ln gamma
                pl.BlockSpec((1, c_in), lambda i: (0, 0)),        # ln beta
                pl.BlockSpec((c_in, c_out), lambda i: (0, 0)),    # W (resident)
                pl.BlockSpec((1, c_out), lambda i: (0, 0)),       # bias
            ],
            out_specs=pl.BlockSpec((tm, c_out), lambda i: (i, 0)),
        ),
        compiler_params=_compiler_params(
            tile_bytes=(tm * c_in + tm * c_out) * item,
            resident_bytes=w.nbytes + bias.nbytes + gamma.nbytes + beta.nbytes,
        ),
    )(xp, gamma, beta, w, bias)
    return out[:m]


def _attn_proj_residual(q, k, v, res, w_proj3, b_proj, *, scale):
    """q/k/v: (B, H, N, dh); res: (B, N, C); w_proj3: (H, dh, C); b_proj: (1, C)."""
    B, H, N, dh = q.shape
    C = res.shape[-1]
    qkv_spec = pl.BlockSpec((1, H, N, dh), lambda b: (b, 0, 0, 0))
    res_spec = pl.BlockSpec((1, N, C), lambda b: (b, 0, 0))
    item = q.dtype.itemsize
    return pl.pallas_call(
        partial(_attn_proj_residual_kernel, scale=scale),
        out_shape=jax.ShapeDtypeStruct((B, N, C), res.dtype),
        grid_spec=pltpu.PrefetchScalarGridSpec(
            num_scalar_prefetch=0,
            grid=(B,),
            in_specs=[
                qkv_spec, qkv_spec, qkv_spec,                     # q, k, v
                res_spec,                                         # residual x
                pl.BlockSpec((H, dh, C), lambda b: (0, 0, 0)),    # W_proj (resident)
                pl.BlockSpec((1, C), lambda b: (0, 0)),           # b_proj
            ],
            out_specs=res_spec,
        ),
        compiler_params=_compiler_params(
            tile_bytes=(3 * H * N * dh + 2 * N * C) * item
            + 4 * H * N * N + 4 * H * N * C,                      # scores + per-head f32
            resident_bytes=w_proj3.nbytes + b_proj.nbytes,
        ),
    )(q, k, v, res, w_proj3, b_proj)


def _ln_mlp_residual(x2d, gamma, beta, w1, b1, w2, b2, *, eps, tile_m):
    m, c = x2d.shape
    hidden = w1.shape[1]
    tm, m_pad = _row_tiles(m, tile_m)
    xp = _pad_rows(x2d, m_pad)
    item = x2d.dtype.itemsize
    out = pl.pallas_call(
        partial(_ln_mlp_residual_kernel, eps=eps),
        out_shape=jax.ShapeDtypeStruct((m_pad, c), x2d.dtype),
        grid_spec=pltpu.PrefetchScalarGridSpec(
            num_scalar_prefetch=0,
            grid=(m_pad // tm,),
            in_specs=[
                pl.BlockSpec((tm, c), lambda i: (i, 0)),          # x tile (also residual)
                pl.BlockSpec((1, c), lambda i: (0, 0)),           # ln gamma
                pl.BlockSpec((1, c), lambda i: (0, 0)),           # ln beta
                pl.BlockSpec((c, hidden), lambda i: (0, 0)),      # W1 (resident)
                pl.BlockSpec((1, hidden), lambda i: (0, 0)),      # b1
                pl.BlockSpec((hidden, c), lambda i: (0, 0)),      # W2 (resident)
                pl.BlockSpec((1, c), lambda i: (0, 0)),           # b2
            ],
            out_specs=pl.BlockSpec((tm, c), lambda i: (i, 0)),
        ),
        compiler_params=_compiler_params(
            tile_bytes=(2 * tm * c) * item + tm * hidden * 4,
            resident_bytes=w1.nbytes + w2.nbytes + b1.nbytes + b2.nbytes,
        ),
    )(xp, gamma, beta, w1, b1, w2, b2)
    return out[:m]


# --------------------------------------------------------------------------
# full Block forward
# --------------------------------------------------------------------------
def block_forward(x, params, *, num_heads, eps=1e-6, tile_m=256):
    """x: (B, N, C) -> (B, N, C).  All hot-path math runs in Pallas kernels;
    the wrapper only does reshape/transpose layout plumbing (kept under jit)."""
    B, N, C = x.shape
    H = num_heads
    dh = C // H
    assert H * dh == C, "num_heads must divide dim"
    scale = dh ** (-0.5)
    M = B * N
    x2d = x.reshape(M, C)

    # ---- x = x + proj(attn(norm1(x))) ----
    qkv = _ln_linear(x2d, params["ln1_g"], params["ln1_b"],
                     params["w_qkv"], params["b_qkv"], eps=eps, tile_m=tile_m)
    qkv = qkv.reshape(B, N, 3, H, dh).transpose(2, 0, 3, 1, 4)     # (3, B, H, N, dh)
    q, k, v = qkv[0], qkv[1], qkv[2]

    w_proj3 = params["w_proj"].reshape(H, dh, C)                    # head-major split
    x_attn = _attn_proj_residual(q, k, v, x, w_proj3, params["b_proj"],
                                 scale=scale)                       # (B, N, C)

    # ---- x = x + mlp(norm2(x)) ----
    out2d = _ln_mlp_residual(x_attn.reshape(M, C),
                             params["ln2_g"], params["ln2_b"],
                             params["w1"], params["b1"],
                             params["w2"], params["b2"],
                             eps=eps, tile_m=tile_m)
    return out2d.reshape(B, N, C)


# --------------------------------------------------------------------------
# parameter init (mimics nn.Linear / nn.LayerNorm defaults); weights stored
# as (in_features, out_features), i.e. transposed vs. PyTorch's (out, in).
# --------------------------------------------------------------------------
def init_block_params(key, dim, num_heads, mlp_ratio=4.0, qkv_bias=False,
                      dtype=jnp.float32):
    hidden = int(dim * mlp_ratio)
    ks = jax.random.split(key, 4)

    def linear(k, fan_in, fan_out, bias=True):
        bound = 1.0 / math.sqrt(fan_in)
        kw, kb = jax.random.split(k)
        w = jax.random.uniform(kw, (fan_in, fan_out), dtype, -bound, bound)
        if bias:
            b = jax.random.uniform(kb, (1, fan_out), dtype, -bound, bound)
        else:
            b = jnp.zeros((1, fan_out), dtype)
        return w, b

    w_qkv, b_qkv = linear(ks[0], dim, 3 * dim, bias=qkv_bias)
    w_proj, b_proj = linear(ks[1], dim, dim)
    w1, b1 = linear(ks[2], dim, hidden)
    w2, b2 = linear(ks[3], hidden, dim)
    return dict(
        ln1_g=jnp.ones((1, dim), dtype), ln1_b=jnp.zeros((1, dim), dtype),
        ln2_g=jnp.ones((1, dim), dtype), ln2_b=jnp.zeros((1, dim), dtype),
        w_qkv=w_qkv, b_qkv=b_qkv, w_proj=w_proj, b_proj=b_proj,
        w1=w1, b1=b1, w2=w2, b2=b2,
    )


# --------------------------------------------------------------------------
# pure-JAX reference (mirrors the PyTorch Block forward)
# --------------------------------------------------------------------------
def _block_reference(x, p, *, num_heads, eps=1e-6):
    B, N, C = x.shape
    H = num_heads
    dh = C // H
    scale = dh ** (-0.5)

    def ln(z, g, b):
        mu = jnp.mean(z, -1, keepdims=True)
        var = jnp.mean((z - mu) ** 2, -1, keepdims=True)
        return (z - mu) * jax.lax.rsqrt(var + eps) * g + b

    h = ln(x, p["ln1_g"], p["ln1_b"])
    qkv = (h.reshape(-1, C) @ p["w_qkv"] + p["b_qkv"]).reshape(B, N, 3, H, dh)
    qkv = qkv.transpose(2, 0, 3, 1, 4)
    q, k, v = qkv[0], qkv[1], qkv[2]
    s = jnp.einsum("bhqd,bhkd->bhqk", q, k) * scale
    a = jax.nn.softmax(s, axis=-1)
    o = jnp.einsum("bhqk,bhkd->bhqd", a, v)
    o = o.transpose(0, 2, 1, 3).reshape(B, N, C)
    x = x + (o.reshape(-1, C) @ p["w_proj"] + p["b_proj"]).reshape(B, N, C)

    h2 = ln(x, p["ln2_g"], p["ln2_b"])
    m = jax.nn.gelu(h2.reshape(-1, C) @ p["w1"] + p["b1"], approximate=False)
    x = x + (m @ p["w2"] + p["b2"]).reshape(B, N, C)
    return x


if __name__ == "__main__":
    key = jax.random.PRNGKey(0)
    kx, kp = jax.random.split(key)

    # Small but lane-dense shapes: dim=128 (multiple of 128), heads=8, mlp hidden=512.
    B, N, DIM, HEADS = 2, 16, 128, 8
    x = jax.random.normal(kx, (B, N, DIM), dtype=jnp.float32)
    params = init_block_params(kp, DIM, HEADS)

    fwd = jax.jit(partial(block_forward, num_heads=HEADS))
    out = fwd(x, params)
    out = jax.block_until_ready(out)

    ref = _block_reference(x, params, num_heads=HEADS, eps=1e-6)
    assert out.shape == (B, N, DIM)
    max_err = float(jnp.max(jnp.abs(out - ref)))
    assert jnp.allclose(out, ref, atol=2e-3, rtol=2e-3), f"max abs err={max_err}"

    print("KERNEL_OK")
</pallas_src>

<mosaic_0001>
module attributes {stable_mosaic.version = 11 : i64} {
  func.func @_ln_linear_kernel(%arg0: i32, %arg1: memref<32x128xf32, #tpu.memory_space<vmem>>, %arg2: memref<1x128xf32, #tpu.memory_space<vmem>>, %arg3: memref<1x128xf32, #tpu.memory_space<vmem>>, %arg4: memref<128x384xf32, #tpu.memory_space<vmem>>, %arg5: memref<1x384xf32, #tpu.memory_space<vmem>>, %arg6: memref<32x384xf32, #tpu.memory_space<vmem>>) attributes {dimension_semantics = [#tpu.dimension_semantics<parallel>], iteration_bounds = array<i64: 1>, scalar_prefetch = 0 : i64, scratch_operands = 0 : i64, tpu.core_type = #tpu.core_type<tc>, window_params = [{transform_indices = @transform_0, window_bounds = array<i64: 32, 128>}, {pipeline_mode = #tpu.pipeline_mode<synchronous>, transform_indices = @transform_1, window_bounds = array<i64: 1, 128>}, {pipeline_mode = #tpu.pipeline_mode<synchronous>, transform_indices = @transform_2, window_bounds = array<i64: 1, 128>}, {pipeline_mode = #tpu.pipeline_mode<synchronous>, transform_indices = @transform_3, window_bounds = array<i64: 128, 384>}, {pipeline_mode = #tpu.pipeline_mode<synchronous>, transform_indices = @transform_4, window_bounds = array<i64: 1, 384>}, {transform_indices = @transform_5, window_bounds = array<i64: 32, 384>}]} {
    %c0 = arith.constant 0 : index
    %c0_0 = arith.constant 0 : index
    %0 = vector.load %arg1[%c0, %c0_0] : memref<32x128xf32, #tpu.memory_space<vmem>>, vector<32x128xf32>
    %cst = arith.constant dense<0.000000e+00> : vector<32xf32>
    %1 = vector.multi_reduction <add>, %0, %cst [1] : vector<32x128xf32> to vector<32xf32>
    %2 = vector.shape_cast %1 : vector<32xf32> to vector<32x1xf32>
    %cst_1 = arith.constant 1.280000e+02 : f32
    %3 = vector.broadcast %cst_1 : f32 to vector<32x1xf32>
    %4 = arith.divf %2, %3 : vector<32x1xf32>
    %5 = vector.broadcast %4 : vector<32x1xf32> to vector<32x128xf32>
    %6 = arith.subf %0, %5 : vector<32x128xf32>
    %7 = arith.mulf %6, %6 : vector<32x128xf32>
    %cst_2 = arith.constant dense<0.000000e+00> : vector<32xf32>
    %8 = vector.multi_reduction <add>, %7, %cst_2 [1] : vector<32x128xf32> to vector<32xf32>
    %9 = vector.shape_cast %8 : vector<32xf32> to vector<32x1xf32>
    %cst_3 = arith.constant 1.280000e+02 : f32
    %10 = vector.broadcast %cst_3 : f32 to vector<32x1xf32>
    %11 = arith.divf %9, %10 : vector<32x1xf32>
    %cst_4 = arith.constant 9.99999997E-7 : f32
    %12 = vector.broadcast %cst_4 : f32 to vector<32x1xf32>
    %13 = arith.addf %11, %12 : vector<32x1xf32>
    %14 = math.rsqrt %13 : vector<32x1xf32>
    %15 = vector.broadcast %14 : vector<32x1xf32> to vector<32x128xf32>
    %16 = arith.mulf %6, %15 : vector<32x128xf32>
    %c0_5 = arith.constant 0 : index
    %c0_6 = arith.constant 0 : index
    %17 = vector.load %arg2[%c0_5, %c0_6] : memref<1x128xf32, #tpu.memory_space<vmem>>, vector<1x128xf32>
    %18 = vector.broadcast %17 : vector<1x128xf32> to vector<32x128xf32>
    %19 = arith.mulf %16, %18 : vector<32x128xf32>
    %c0_7 = arith.constant 0 : index
    %c0_8 = arith.constant 0 : index
    %20 = vector.load %arg3[%c0_7, %c0_8] : memref<1x128xf32, #tpu.memory_space<vmem>>, vector<1x128xf32>
    %21 = vector.broadcast %20 : vector<1x128xf32> to vector<32x128xf32>
    %22 = arith.addf %19, %21 : vector<32x128xf32>
    %c0_9 = arith.constant 0 : index
    %c0_10 = arith.constant 0 : index
    %23 = vector.load %arg4[%c0_9, %c0_10] : memref<128x384xf32, #tpu.memory_space<vmem>>, vector<128x384xf32>
    %cst_11 = arith.constant dense<0.000000e+00> : vector<32x384xf32>
    %24 = tpu.matmul %22, %23, %cst_11 {dimension_numbers = #tpu.dot_dimension_numbers<[1], [0], [0], [1], [0, 0, 1, 1], [], []>} : vector<32x128xf32>, vector<128x384xf32>, vector<32x384xf32> -> vector<32x384xf32>
    %c0_12 = arith.constant 0 : index
    %c0_13 = arith.constant 0 : index
    %25 = vector.load %arg5[%c0_12, %c0_13] : memref<1x384xf32, #tpu.memory_space<vmem>>, vector<1x384xf32>
    %26 = vector.broadcast %25 : vector<1x384xf32> to vector<32x384xf32>
    %27 = arith.addf %24, %26 : vector<32x384xf32>
    %c0_14 = arith.constant 0 : index
    %c0_15 = arith.constant 0 : index
    %28 = vector.load %arg6[%c0_14, %c0_15] : memref<32x384xf32, #tpu.memory_space<vmem>>, vector<32x384xf32>
    tpu.vector_store %arg6[%c0_14, %c0_15], %27 {strides = array<i32>} : memref<32x384xf32, #tpu.memory_space<vmem>>, vector<32x384xf32>,
    return
  }
  func.func @transform_0(%arg0: i32) -> (i32, i32) {
    %c0_i32 = arith.constant 0 : i32
    %c0_i32_0 = arith.constant 0 : i32
    return %arg0, %c0_i32 : i32, i32
  }
  func.func @transform_1(%arg0: i32) -> (i32, i32) {
    %c0_i32 = arith.constant 0 : i32
    %c0_i32_0 = arith.constant 0 : i32
    %c0_i32_1 = arith.constant 0 : i32
    return %c0_i32, %c0_i32_0 : i32, i32
  }
  func.func @transform_2(%arg0: i32) -> (i32, i32) {
    %c0_i32 = arith.constant 0 : i32
    %c0_i32_0 = arith.constant 0 : i32
    %c0_i32_1 = arith.constant 0 : i32
    return %c0_i32, %c0_i32_0 : i32, i32
  }
  func.func @transform_3(%arg0: i32) -> (i32, i32) {
    %c0_i32 = arith.constant 0 : i32
    %c0_i32_0 = arith.constant 0 : i32
    %c0_i32_1 = arith.constant 0 : i32
    return %c0_i32, %c0_i32_0 : i32, i32
  }
  func.func @transform_4(%arg0: i32) -> (i32, i32) {
    %c0_i32 = arith.constant 0 : i32
    %c0_i32_0 = arith.constant 0 : i32
    %c0_i32_1 = arith.constant 0 : i32
    return %c0_i32, %c0_i32_0 : i32, i32
  }
  func.func @transform_5(%arg0: i32) -> (i32, i32) {
    %c0_i32 = arith.constant 0 : i32
    %c0_i32_0 = arith.constant 0 : i32
    return %arg0, %c0_i32 : i32, i32
  }
}

module attributes {stable_mosaic.version = 11 : i64} {
  func.func @_ln_mlp_residual_kernel(%arg0: i32, %arg1: memref<32x128xf32, #tpu.memory_space<vmem>>, %arg2: memref<1x128xf32, #tpu.memory_space<vmem>>, %arg3: memref<1x128xf32, #tpu.memory_space<vmem>>, %arg4: memref<128x512xf32, #tpu.memory_space<vmem>>, %arg5: memref<1x512xf32, #tpu.memory_space<vmem>>, %arg6: memref<512x128xf32, #tpu.memory_space<vmem>>, %arg7: memref<1x128xf32, #tpu.memory_space<vmem>>, %arg8: memref<32x128xf32, #tpu.memory_space<vmem>>) attributes {dimension_semantics = [#tpu.dimension_semantics<parallel>], iteration_bounds = array<i64: 1>, scalar_prefetch = 0 : i64, scratch_operands = 0 : i64, tpu.core_type = #tpu.core_type<tc>, window_params = [{transform_indices = @transform_0, window_bounds = array<i64: 32, 128>}, {pipeline_mode = #tpu.pipeline_mode<synchronous>, transform_indices = @transform_1, window_bounds = array<i64: 1, 128>}, {pipeline_mode = #tpu.pipeline_mode<synchronous>, transform_indices = @transform_2, window_bounds = array<i64: 1, 128>}, {pipeline_mode = #tpu.pipeline_mode<synchronous>, transform_indices = @transform_3, window_bounds = array<i64: 128, 512>}, {pipeline_mode = #tpu.pipeline_mode<synchronous>, transform_indices = @transform_4, window_bounds = array<i64: 1, 512>}, {pipeline_mode = #tpu.pipeline_mode<synchronous>, transform_indices = @transform_5, window_bounds = array<i64: 512, 128>}, {pipeline_mode = #tpu.pipeline_mode<synchronous>, transform_indices = @transform_6, window_bounds = array<i64: 1, 128>}, {transform_indices = @transform_7, window_bounds = array<i64: 32, 128>}]} {
    %c0 = arith.constant 0 : index
    %c0_0 = arith.constant 0 : index
    %0 = vector.load %arg1[%c0, %c0_0] : memref<32x128xf32, #tpu.memory_space<vmem>>, vector<32x128xf32>
    %cst = arith.constant dense<0.000000e+00> : vector<32xf32>
    %1 = vector.multi_reduction <add>, %0, %cst [1] : vector<32x128xf32> to vector<32xf32>
    %2 = vector.shape_cast %1 : vector<32xf32> to vector<32x1xf32>
    %cst_1 = arith.constant 1.280000e+02 : f32
    %3 = vector.broadcast %cst_1 : f32 to vector<32x1xf32>
    %4 = arith.divf %2, %3 : vector<32x1xf32>
    %5 = vector.broadcast %4 : vector<32x1xf32> to vector<32x128xf32>
    %6 = arith.subf %0, %5 : vector<32x128xf32>
    %7 = arith.mulf %6, %6 : vector<32x128xf32>
    %cst_2 = arith.constant dense<0.000000e+00> : vector<32xf32>
    %8 = vector.multi_reduction <add>, %7, %cst_2 [1] : vector<32x128xf32> to vector<32xf32>
    %9 = vector.shape_cast %8 : vector<32xf32> to vector<32x1xf32>
    %cst_3 = arith.constant 1.280000e+02 : f32
    %10 = vector.broadcast %cst_3 : f32 to vector<32x1xf32>
    %11 = arith.divf %9, %10 : vector<32x1xf32>
    %cst_4 = arith.constant 9.99999997E-7 : f32
    %12 = vector.broadcast %cst_4 : f32 to vector<32x1xf32>
    %13 = arith.addf %11, %12 : vector<32x1xf32>
    %14 = math.rsqrt %13 : vector<32x1xf32>
    %15 = vector.broadcast %14 : vector<32x1xf32> to vector<32x128xf32>
    %16 = arith.mulf %6, %15 : vector<32x128xf32>
    %c0_5 = arith.constant 0 : index
    %c0_6 = arith.constant 0 : index
    %17 = vector.load %arg2[%c0_5, %c0_6] : memref<1x128xf32, #tpu.memory_space<vmem>>, vector<1x128xf32>
    %18 = vector.broadcast %17 : vector<1x128xf32> to vector<32x128xf32>
    %19 = arith.mulf %16, %18 : vector<32x128xf32>
    %c0_7 = arith.constant 0 : index
    %c0_8 = arith.constant 0 : index
    %20 = vector.load %arg3[%c0_7, %c0_8] : memref<1x128xf32, #tpu.memory_space<vmem>>, vector<1x128xf32>
    %21 = vector.broadcast %20 : vector<1x128xf32> to vector<32x128xf32>
    %22 = arith.addf %19, %21 : vector<32x128xf32>
    %c0_9 = arith.constant 0 : index
    %c0_10 = arith.constant 0 : index
    %23 = vector.load %arg4[%c0_9, %c0_10] : memref<128x512xf32, #tpu.memory_space<vmem>>, vector<128x512xf32>
    %cst_11 = arith.constant dense<0.000000e+00> : vector<32x512xf32>
    %24 = tpu.matmul %22, %23, %cst_11 {dimension_numbers = #tpu.dot_dimension_numbers<[1], [0], [0], [1], [0, 0, 1, 1], [], []>} : vector<32x128xf32>, vector<128x512xf32>, vector<32x512xf32> -> vector<32x512xf32>
    %c0_12 = arith.constant 0 : index
    %c0_13 = arith.constant 0 : index
    %25 = vector.load %arg5[%c0_12, %c0_13] : memref<1x512xf32, #tpu.memory_space<vmem>>, vector<1x512xf32>
    %26 = vector.broadcast %25 : vector<1x512xf32> to vector<32x512xf32>
    %27 = arith.addf %24, %26 : vector<32x512xf32>
    %cst_14 = arith.constant 5.000000e-01 : f32
    %28 = vector.broadcast %cst_14 : f32 to vector<32x512xf32>
    %29 = arith.mulf %28, %27 : vector<32x512xf32>
    %cst_15 = arith.constant 0.707106769 : f32
    %30 = vector.broadcast %cst_15 : f32 to vector<32x512xf32>
    %31 = arith.mulf %27, %30 : vector<32x512xf32>
    %32 = math.erf %31 : vector<32x512xf32>
    %cst_16 = arith.constant 1.000000e+00 : f32
    %33 = vector.broadcast %cst_16 : f32 to vector<32x512xf32>
    %34 = arith.addf %33, %32 : vector<32x512xf32>
    %35 = arith.mulf %29, %34 : vector<32x512xf32>
    %c0_17 = arith.constant 0 : index
    %c0_18 = arith.constant 0 : index
    %36 = vector.load %arg6[%c0_17, %c0_18] : memref<512x128xf32, #tpu.memory_space<vmem>>, vector<512x128xf32>
    %cst_19 = arith.constant dense<0.000000e+00> : vector<32x128xf32>
    %37 = tpu.matmul %35, %36, %cst_19 {dimension_numbers = #tpu.dot_dimension_numbers<[1], [0], [0], [1], [0, 0, 1, 1], [], []>} : vector<32x512xf32>, vector<512x128xf32>, vector<32x128xf32> -> vector<32x128xf32>
    %c0_20 = arith.constant 0 : index
    %c0_21 = arith.constant 0 : index
    %38 = vector.load %arg7[%c0_20, %c0_21] : memref<1x128xf32, #tpu.memory_space<vmem>>, vector<1x128xf32>
    %39 = vector.broadcast %38 : vector<1x128xf32> to vector<32x128xf32>
    %40 = arith.addf %37, %39 : vector<32x128xf32>
    %41 = arith.addf %40, %0 : vector<32x128xf32>
    %c0_22 = arith.constant 0 : index
    %c0_23 = arith.constant 0 : index
    %42 = vector.load %arg8[%c0_22, %c0_23] : memref<32x128xf32, #tpu.memory_space<vmem>>, vector<32x128xf32>
    tpu.vector_store %arg8[%c0_22, %c0_23], %41 {strides = array<i32>} : memref<32x128xf32, #tpu.memory_space<vmem>>, vector<32x128xf32>,
    return
  }
  func.func @transform_0(%arg0: i32) -> (i32, i32) {
    %c0_i32 = arith.constant 0 : i32
    %c0_i32_0 = arith.constant 0 : i32
    return %arg0, %c0_i32 : i32, i32
  }
  func.func @transform_1(%arg0: i32) -> (i32, i32) {
    %c0_i32 = arith.constant 0 : i32
    %c0_i32_0 = arith.constant 0 : i32
    %c0_i32_1 = arith.constant 0 : i32
    return %c0_i32, %c0_i32_0 : i32, i32
  }
  func.func @transform_2(%arg0: i32) -> (i32, i32) {
    %c0_i32 = arith.constant 0 : i32
    %c0_i32_0 = arith.constant 0 : i32
    %c0_i32_1 = arith.constant 0 : i32
    return %c0_i32, %c0_i32_0 : i32, i32
  }
  func.func @transform_3(%arg0: i32) -> (i32, i32) {
    %c0_i32 = arith.constant 0 : i32
    %c0_i32_0 = arith.constant 0 : i32
    %c0_i32_1 = arith.constant 0 : i32
    return %c0_i32, %c0_i32_0 : i32, i32
  }
  func.func @transform_4(%arg0: i32) -> (i32, i32) {
    %c0_i32 = arith.constant 0 : i32
    %c0_i32_0 = arith.constant 0 : i32
    %c0_i32_1 = arith.constant 0 : i32
    return %c0_i32, %c0_i32_0 : i32, i32
  }
  func.func @transform_5(%arg0: i32) -> (i32, i32) {
    %c0_i32 = arith.constant 0 : i32
    %c0_i32_0 = arith.constant 0 : i32
    %c0_i32_1 = arith.constant 0 : i32
    return %c0_i32, %c0_i32_0 : i32, i32
  }
  func.func @transform_6(%arg0: i32) -> (i32, i32) {
    %c0_i32 = arith.constant 0 : i32
    %c0_i32_0 = arith.constant 0 : i32
    %c0_i32_1 = arith.constant 0 : i32
    return %c0_i32, %c0_i32_0 : i32, i32
  }
  func.func @transform_7(%arg0: i32) -> (i32, i32) {
    %c0_i32 = arith.constant 0 : i32
    %c0_i32_0 = arith.constant 0 : i32
    return %arg0, %c0_i32 : i32, i32
  }
}

module attributes {stable_mosaic.version = 11 : i64} {
  func.func @_attn_proj_residual_kernel(%arg0: i32, %arg1: memref<1x8x16x16xf32, #tpu.memory_space<vmem>>, %arg2: memref<1x8x16x16xf32, #tpu.memory_space<vmem>>, %arg3: memref<1x8x16x16xf32, #tpu.memory_space<vmem>>, %arg4: memref<1x16x128xf32, #tpu.memory_space<vmem>>, %arg5: memref<8x16x128xf32, #tpu.memory_space<vmem>>, %arg6: memref<1x128xf32, #tpu.memory_space<vmem>>, %arg7: memref<1x16x128xf32, #tpu.memory_space<vmem>>) attributes {dimension_semantics = [#tpu.dimension_semantics<parallel>], iteration_bounds = array<i64: 2>, scalar_prefetch = 0 : i64, scratch_operands = 0 : i64, tpu.core_type = #tpu.core_type<tc>, window_params = [{transform_indices = @transform_0, window_bounds = array<i64: 1, 8, 16, 16>}, {transform_indices = @transform_1, window_bounds = array<i64: 1, 8, 16, 16>}, {transform_indices = @transform_2, window_bounds = array<i64: 1, 8, 16, 16>}, {transform_indices = @transform_3, window_bounds = array<i64: 1, 16, 128>}, {pipeline_mode = #tpu.pipeline_mode<synchronous>, transform_indices = @transform_4, window_bounds = array<i64: 8, 16, 128>}, {pipeline_mode = #tpu.pipeline_mode<synchronous>, transform_indices = @transform_5, window_bounds = array<i64: 1, 128>}, {transform_indices = @transform_6, window_bounds = array<i64: 1, 16, 128>}]} {
    %c0 = arith.constant 0 : index
    %c0_0 = arith.constant 0 : index
    %c0_1 = arith.constant 0 : index
    %c0_2 = arith.constant 0 : index
    %0 = vector.load %arg1[%c0, %c0_0, %c0_1, %c0_2] : memref<1x8x16x16xf32, #tpu.memory_space<vmem>>, vector<1x8x16x16xf32>
    %1 = vector.shape_cast %0 : vector<1x8x16x16xf32> to vector<8x16x16xf32>
    %c0_3 = arith.constant 0 : index
    %c0_4 = arith.constant 0 : index
    %c0_5 = arith.constant 0 : index
    %c0_6 = arith.constant 0 : index
    %2 = vector.load %arg2[%c0_3, %c0_4, %c0_5, %c0_6] : memref<1x8x16x16xf32, #tpu.memory_space<vmem>>, vector<1x8x16x16xf32>
    %3 = vector.shape_cast %2 : vector<1x8x16x16xf32> to vector<8x16x16xf32>
    %c0_7 = arith.constant 0 : index
    %c0_8 = arith.constant 0 : index
    %c0_9 = arith.constant 0 : index
    %c0_10 = arith.constant 0 : index
    %4 = vector.load %arg3[%c0_7, %c0_8, %c0_9, %c0_10] : memref<1x8x16x16xf32, #tpu.memory_space<vmem>>, vector<1x8x16x16xf32>
    %5 = vector.shape_cast %4 : vector<1x8x16x16xf32> to vector<8x16x16xf32>
    "tpu.trace_start"() <{level = 10 : i32, message = "hqd,hkd->hqk"}> : () -> ()
    %cst = arith.constant dense<0.000000e+00> : vector<8x16x16xf32>
    %6 = tpu.matmul %1, %3, %cst {dimension_numbers = #tpu.dot_dimension_numbers<[2], [2], [1], [1], [0, 0, 0, 1, 1, 1], [0], [0]>} : vector<8x16x16xf32>, vector<8x16x16xf32>, vector<8x16x16xf32> -> vector<8x16x16xf32>
    "tpu.trace_stop"() : () -> ()
    %cst_11 = arith.constant 2.500000e-01 : f32
    %7 = vector.broadcast %cst_11 : f32 to vector<8x16x16xf32>
    %8 = arith.mulf %6, %7 : vector<8x16x16xf32>
    %cst_12 = arith.constant dense<0xFF800000> : vector<8x16xf32>
    %9 = vector.multi_reduction <maximumf>, %8, %cst_12 [2] : vector<8x16x16xf32> to vector<8x16xf32>
    %10 = vector.shape_cast %9 : vector<8x16xf32> to vector<8x16x1xf32>
    %11 = vector.broadcast %10 : vector<8x16x1xf32> to vector<8x16x16xf32>
    %12 = arith.subf %8, %11 : vector<8x16x16xf32>
    %13 = math.exp %12 : vector<8x16x16xf32>
    %cst_13 = arith.constant dense<0.000000e+00> : vector<8x16xf32>
    %14 = vector.multi_reduction <add>, %13, %cst_13 [2] : vector<8x16x16xf32> to vector<8x16xf32>
    %15 = vector.shape_cast %14 : vector<8x16xf32> to vector<8x16x1xf32>
    %16 = vector.broadcast %15 : vector<8x16x1xf32> to vector<8x16x16xf32>
    %17 = arith.divf %13, %16 : vector<8x16x16xf32>
    "tpu.trace_start"() <{level = 10 : i32, message = "hqk,hkd->hqd"}> : () -> ()
    %cst_14 = arith.constant dense<0.000000e+00> : vector<8x16x16xf32>
    %18 = tpu.matmul %17, %5, %cst_14 {dimension_numbers = #tpu.dot_dimension_numbers<[2], [1], [1], [2], [0, 0, 0, 1, 1, 2], [0], [0]>} : vector<8x16x16xf32>, vector<8x16x16xf32>, vector<8x16x16xf32> -> vector<8x16x16xf32>
    "tpu.trace_stop"() : () -> ()
    %c0_15 = arith.constant 0 : index
    %c0_16 = arith.constant 0 : index
    %c0_17 = arith.constant 0 : index
    %19 = vector.load %arg5[%c0_15, %c0_16, %c0_17] : memref<8x16x128xf32, #tpu.memory_space<vmem>>, vector<8x16x128xf32>
    "tpu.trace_start"() <{level = 10 : i32, message = "hnd,hdc->hnc"}> : () -> ()
    %cst_18 = arith.constant dense<0.000000e+00> : vector<8x16x128xf32>
    %20 = tpu.matmul %18, %19, %cst_18 {dimension_numbers = #tpu.dot_dimension_numbers<[2], [1], [1], [2], [0, 0, 0, 1, 1, 2], [0], [0]>} : vector<8x16x16xf32>, vector<8x16x128xf32>, vector<8x16x128xf32> -> vector<8x16x128xf32>
    "tpu.trace_stop"() : () -> ()
    %cst_19 = arith.constant dense<0.000000e+00> : vector<16x128xf32>
    %21 = vector.multi_reduction <add>, %20, %cst_19 [0] : vector<8x16x128xf32> to vector<16x128xf32>
    %c0_20 = arith.constant 0 : index
    %c0_21 = arith.constant 0 : index
    %22 = vector.load %arg6[%c0_20, %c0_21] : memref<1x128xf32, #tpu.memory_space<vmem>>, vector<1x128xf32>
    %23 = vector.broadcast %22 : vector<1x128xf32> to vector<16x128xf32>
    %24 = arith.addf %21, %23 : vector<16x128xf32>
    %c0_22 = arith.constant 0 : index
    %c0_23 = arith.constant 0 : index
    %c0_24 = arith.constant 0 : index
    %25 = vector.load %arg4[%c0_22, %c0_23, %c0_24] : memref<1x16x128xf32, #tpu.memory_space<vmem>>, vector<1x16x128xf32>
    %26 = vector.shape_cast %25 : vector<1x16x128xf32> to vector<16x128xf32>
    %27 = arith.addf %24, %26 : vector<16x128xf32>
    %c0_25 = arith.constant 0 : index
    %c0_26 = arith.constant 0 : index
    %c0_27 = arith.constant 0 : index
    %28 = vector.load %arg7[%c0_25, %c0_26, %c0_27] : memref<1x16x128xf32, #tpu.memory_space<vmem>>, vector<1x16x128xf32>
    %29 = vector.shape_cast %28 : vector<1x16x128xf32> to vector<16x128xf32>
    %30 = vector.shape_cast %27 : vector<16x128xf32> to vector<1x16x128xf32>
    tpu.vector_store %arg7[%c0_25, %c0_26, %c0_27], %30 {strides = array<i32>} : memref<1x16x128xf32, #tpu.memory_space<vmem>>, vector<1x16x128xf32>,
    return
  }
  func.func @transform_0(%arg0: i32) -> (i32, i32, i32, i32) {
    %c0_i32 = arith.constant 0 : i32
    %c0_i32_0 = arith.constant 0 : i32
    %c0_i32_1 = arith.constant 0 : i32
    %c0_i32_2 = arith.constant 0 : i32
    return %arg0, %c0_i32, %c0_i32_0, %c0_i32_1 : i32, i32, i32, i32
  }
  func.func @transform_1(%arg0: i32) -> (i32, i32, i32, i32) {
    %c0_i32 = arith.constant 0 : i32
    %c0_i32_0 = arith.constant 0 : i32
    %c0_i32_1 = arith.constant 0 : i32
    %c0_i32_2 = arith.constant 0 : i32
    return %arg0, %c0_i32, %c0_i32_0, %c0_i32_1 : i32, i32, i32, i32
  }
  func.func @transform_2(%arg0: i32) -> (i32, i32, i32, i32) {
    %c0_i32 = arith.constant 0 : i32
    %c0_i32_0 = arith.constant 0 : i32
    %c0_i32_1 = arith.constant 0 : i32
    %c0_i32_2 = arith.constant 0 : i32
    return %arg0, %c0_i32, %c0_i32_0, %c0_i32_1 : i32, i32, i32, i32
  }
  func.func @transform_3(%arg0: i32) -> (i32, i32, i32) {
    %c0_i32 = arith.constant 0 : i32
    %c0_i32_0 = arith.constant 0 : i32
    %c0_i32_1 = arith.constant 0 : i32
    return %arg0, %c0_i32, %c0_i32_0 : i32, i32, i32
  }
  func.func @transform_4(%arg0: i32) -> (i32, i32, i32) {
    %c0_i32 = arith.constant 0 : i32
    %c0_i32_0 = arith.constant 0 : i32
    %c0_i32_1 = arith.constant 0 : i32
    %c0_i32_2 = arith.constant 0 : i32
    return %c0_i32, %c0_i32_0, %c0_i32_1 : i32, i32, i32
  }
  func.func @transform_5(%arg0: i32) -> (i32, i32) {
    %c0_i32 = arith.constant 0 : i32
    %c0_i32_0 = arith.constant 0 : i32
    %c0_i32_1 = arith.constant 0 : i32
    return %c0_i32, %c0_i32_0 : i32, i32
  }
  func.func @transform_6(%arg0: i32) -> (i32, i32, i32) {
    %c0_i32 = arith.constant 0 : i32
    %c0_i32_0 = arith.constant 0 : i32
    %c0_i32_1 = arith.constant 0 : i32
    return %arg0, %c0_i32, %c0_i32_0 : i32, i32, i32
  }
}

</mosaic_0001>

<llo_original>
// kernel: block_forward.5
$region0: #{block_forward.5}
  #allocation0 [shape = 'u32[]', space=smem, size = 0x4, offset = 0x4, fixed_abs, tag = 'smem constant byte address 0x4 - core index']
  #allocation1 [shape = 'u32[144,128]{1,0:T(1,128)}', space=vmem, size = 0x12000, scoped, tag = 'internal scratch']
  %s0 = inlined_call_operand.vmem [shape: f32[32,128], index: 0, kind: input, shape index: {}]
  %s1 = inlined_call_operand.vmem [shape: f32[1,128], index: 1, kind: input, shape index: {}]
  %s2 = inlined_call_operand.vmem [shape: f32[1,128], index: 2, kind: input, shape index: {}]
  %s3 = inlined_call_operand.vmem [shape: f32[128,512], index: 3, kind: input, shape index: {}]
  %s4 = inlined_call_operand.vmem [shape: f32[1,512], index: 4, kind: input, shape index: {}]
  %s5 = inlined_call_operand.vmem [shape: f32[512,128], index: 5, kind: input, shape index: {}]
  %s6 = inlined_call_operand.vmem [shape: f32[1,128], index: 6, kind: input, shape index: {}]
  %s7 = inlined_call_operand.hbm [shape: f32[32,128], index: 7, kind: output, shape index: {}]
  %s8 = sld [smem:[#allocation0]]
  $region38: #{block_forward.5} parent=0
    _
  %s10 = ssub.s32 1, %s8
  %s11 = scalar_select 0, %s10, %s8
  $region1: #{block_forward.5} parent=0
    #allocation2 [shape = 'u8[16384]{0}', space=vmem, size = 0x4000, scoped, tag = 'output window, operand 0, single buffered']
    #allocation3 [shape = 's32[1]{0}', space=sflag, size = 0x4, scoped, tag = 'scoped memory for block_forward.5']
    %12 = vsyncpa [#allocation3], 0
    // Predicated region
    $region2: #{block_forward.5} parent=1 // pred_check
      _
    $region3: #{block_forward.5} parent=1 // pred_check_branch
      %14 = sbr.rel (0) target = $region5
    $region4: #{block_forward.5} parent=1 // pred_region
      _
    $region5: #{block_forward.5} parent=1 // pred_fallthru
      _
    // Predicated region
    $region6: #{block_forward.5} parent=1 // pred_check
      _
    $region7: #{block_forward.5} parent=1 // pred_check_branch
      %16 = sbr.rel (0) target = $region9
    $region8: #{block_forward.5} parent=1 // pred_region
      _
    $region9: #{block_forward.5} parent=1 // pred_fallthru
      _
    // Predicated region
    $region10: #{block_forward.5} parent=1 // pred_check
      _
    $region11: #{block_forward.5} parent=1 // pred_check_branch
      %18 = sbr.rel (0) target = $region13
    $region12: #{block_forward.5} parent=1 // pred_region
      _
    $region13: #{block_forward.5} parent=1 // pred_fallthru
      _
    // Predicated region
    $region14: #{block_forward.5} parent=1 // pred_check
      _
    $region15: #{block_forward.5} parent=1 // pred_check_branch
      %20 = sbr.rel (0) target = $region17
    $region16: #{block_forward.5} parent=1 // pred_region
      _
    $region17: #{block_forward.5} parent=1 // pred_fallthru
      _
    // Predicated region
    $region18: #{block_forward.5} parent=1 // pred_check
      _
    $region19: #{block_forward.5} parent=1 // pred_check_branch
      %22 = sbr.rel (0) target = $region21
    $region20: #{block_forward.5} parent=1 // pred_region
      _
    $region21: #{block_forward.5} parent=1 // pred_fallthru
      _
    // Predicated region
    $region22: #{block_forward.5} parent=1 // pred_check
      _
    $region23: #{block_forward.5} parent=1 // pred_check_branch
      %24 = sbr.rel (0) target = $region25
    $region24: #{block_forward.5} parent=1 // pred_region
      _
    $region25: #{block_forward.5} parent=1 // pred_fallthru
      _
    // Predicated region
    $region26: #{block_forward.5} parent=1 // pred_check
      _
    $region27: #{block_forward.5} parent=1 // pred_check_branch
      %26 = sbr.rel (0) target = $region29
    $region28: #{block_forward.5} parent=1 // pred_region
      _
    $region29: #{block_forward.5} parent=1 // pred_fallthru
      _
    %v27 = vld [vmem:[%s0] sm:$0xff]
    %v28 = vld [vmem:[%s0 + $0x8] sm:$0xff]
    %v29 = vld [vmem:[%s0 + $0x10] sm:$0xff]
    %v30 = vld [vmem:[%s0 + $0x18] sm:$0xff]
    %31 = vadd.xlane.f32.xlu0 %v27
    %v32 = vpop.xlane.xlu0 %31
    %33 = vadd.xlane.f32.xlu0 %v28
    %v34 = vpop.xlane.xlu0 %33
    %35 = vadd.xlane.f32.xlu0 %v29
    %v36 = vpop.xlane.xlu0 %35
    %37 = vadd.xlane.f32.xlu0 %v30
    %v38 = vpop.xlane.xlu0 %37
    %v39 = vrcp.pop 128.0
    %v40 = vmul.f32 %v32, %v39
    %v41 = vmul.f32 %v34, %v39
    %v42 = vmul.f32 %v36, %v39
    %v43 = vmul.f32 %v38, %v39
    %v44 = vsub.f32 %v27, %v40
    %v45 = vsub.f32 %v28, %v41
    %v46 = vsub.f32 %v29, %v42
    %v47 = vsub.f32 %v30, %v43
    %v48 = vmul.f32 %v44, %v44
    %v49 = vmul.f32 %v45, %v45
    %v50 = vmul.f32 %v46, %v46
    %v51 = vmul.f32 %v47, %v47
    %52 = vadd.xlane.f32.xlu0 %v48
    %v53 = vpop.xlane.xlu0 %52
    %54 = vadd.xlane.f32.xlu0 %v49
    %v55 = vpop.xlane.xlu0 %54
    %56 = vadd.xlane.f32.xlu0 %v50
    %v57 = vpop.xlane.xlu0 %56
    %58 = vadd.xlane.f32.xlu0 %v51
    %v59 = vpop.xlane.xlu0 %58
    %v60 = vmul.f32 %v53, %v39
    %v61 = vmul.f32 %v55, %v39
    %v62 = vmul.f32 %v57, %v39
    %v63 = vmul.f32 %v59, %v39
    %v64 = vadd.f32 %v60, 1e-06
    %v65 = vadd.f32 %v61, 1e-06
    %v66 = vadd.f32 %v62, 1e-06
    %v67 = vadd.f32 %v63, 1e-06
    %v68 = vrsqrt.pop %v64
    %v69 = vrsqrt.pop %v65
    %v70 = vrsqrt.pop %v66
    %v71 = vrsqrt.pop %v67
    %v72 = vmul.f32 %v44, %v68
    %v73 = vmul.f32 %v45, %v69
    %v74 = vmul.f32 %v46, %v70
    %v75 = vmul.f32 %v47, %v71
    %v76 = vld [vmem:[%s1] sm:$0x1]
    %v78 = vlaneseq
    %v79 = vshrl.u32 %v78, 7
    %v80 = vsub.s32 0, %v79
    %v81 = vrot.slane %v76, %v80
    %v83 = vmul.f32 %v72, %v81
    %v84 = vmul.f32 %v73, %v81
    %v85 = vmul.f32 %v74, %v81
    %v86 = vmul.f32 %v75, %v81
    %v87 = vld [vmem:[%s2] sm:$0x1]
    %v89 = vlaneseq
    %v90 = vshrl.u32 %v89, 7
    %v91 = vsub.s32 0, %v90
    %v92 = vrot.slane %v87, %v91
    %v94 = vadd.f32 %v83, %v92
    %v95 = vadd.f32 %v84, %v92
    %v96 = vadd.f32 %v85, %v92
    %v97 = vadd.f32 %v86, %v92
    %v98 = vld [vmem:[%s3] sm:$0xff]
    %v99 = vld [vmem:[%s3 + $0x8] sm:$0xff]
    %v100 = vld [vmem:[%s3 + $0x10] sm:$0xff]
    %v101 = vld [vmem:[%s3 + $0x18] sm:$0xff]
    %v102 = vld [vmem:[%s3 + $0x20] sm:$0xff]
    %v103 = vld [vmem:[%s3 + $0x28] sm:$0xff]
    %v104 = vld [vmem:[%s3 + $0x30] sm:$0xff]
    %v105 = vld [vmem:[%s3 + $0x38] sm:$0xff]
    %v106 = vld [vmem:[%s3 + $0x40] sm:$0xff]
    %v107 = vld [vmem:[%s3 + $0x48] sm:$0xff]
    %v108 = vld [vmem:[%s3 + $0x50] sm:$0xff]
    %v109 = vld [vmem:[%s3 + $0x58] sm:$0xff]
    %v110 = vld [vmem:[%s3 + $0x60] sm:$0xff]
    %v111 = vld [vmem:[%s3 + $0x68] sm:$0xff]
    %v112 = vld [vmem:[%s3 + $0x70] sm:$0xff]
    %v113 = vld [vmem:[%s3 + $0x78] sm:$0xff]
    %v114 = vld [vmem:[%s3 + $0x80] sm:$0xff]
    %v115 = vld [vmem:[%s3 + $0x88] sm:$0xff]
    %v116 = vld [vmem:[%s3 + $0x90] sm:$0xff]
    %v117 = vld [vmem:[%s3 + $0x98] sm:$0xff]
    %v118 = vld [vmem:[%s3 + $0xa0] sm:$0xff]
    %v119 = vld [vmem:[%s3 + $0xa8] sm:$0xff]
    %v120 = vld [vmem:[%s3 + $0xb0] sm:$0xff]
    %v121 = vld [vmem:[%s3 + $0xb8] sm:$0xff]
    %v122 = vld [vmem:[%s3 + $0xc0] sm:$0xff]
    %v123 = vld [vmem:[%s3 + $0xc8] sm:$0xff]
    %v124 = vld [vmem:[%s3 + $0xd0] sm:$0xff]
    %v125 = vld [vmem:[%s3 + $0xd8] sm:$0xff]
    %v126 = vld [vmem:[%s3 + $0xe0] sm:$0xff]
    %v127 = vld [vmem:[%s3 + $0xe8] sm:$0xff]
    %v128 = vld [vmem:[%s3 + $0xf0] sm:$0xff]
    %v129 = vld [vmem:[%s3 + $0xf8] sm:$0xff]
    %v130 = vld [vmem:[%s3 + $0x100] sm:$0xff]
    %v131 = vld [vmem:[%s3 + $0x108] sm:$0xff]
    %v132 = vld [vmem:[%s3 + $0x110] sm:$0xff]
    %v133 = vld [vmem:[%s3 + $0x118] sm:$0xff]
    %v134 = vld [vmem:[%s3 + $0x120] sm:$0xff]
    %v135 = vld [vmem:[%s3 + $0x128] sm:$0xff]
    %v136 = vld [vmem:[%s3 + $0x130] sm:$0xff]
    %v137 = vld [vmem:[%s3 + $0x138] sm:$0xff]
    %v138 = vld [vmem:[%s3 + $0x140] sm:$0xff]
    %v139 = vld [vmem:[%s3 + $0x148] sm:$0xff]
    %v140 = vld [vmem:[%s3 + $0x150] sm:$0xff]
    %v141 = vld [vmem:[%s3 + $0x158] sm:$0xff]
    %v142 = vld [vmem:[%s3 + $0x160] sm:$0xff]
    %v143 = vld [vmem:[%s3 + $0x168] sm:$0xff]
    %v144 = vld [vmem:[%s3 + $0x170] sm:$0xff]
    %v145 = vld [vmem:[%s3 + $0x178] sm:$0xff]
    %v146 = vld [vmem:[%s3 + $0x180] sm:$0xff]
    %v147 = vld [vmem:[%s3 + $0x188] sm:$0xff]
    %v148 = vld [vmem:[%s3 + $0x190] sm:$0xff]
    %v149 = vld [vmem:[%s3 + $0x198] sm:$0xff]
    %v150 = vld [vmem:[%s3 + $0x1a0] sm:$0xff]
    %v151 = vld [vmem:[%s3 + $0x1a8] sm:$0xff]
    %v152 = vld [vmem:[%s3 + $0x1b0] sm:$0xff]
    %v153 = vld [vmem:[%s3 + $0x1b8] sm:$0xff]
    %v154 = vld [vmem:[%s3 + $0x1c0] sm:$0xff]
    %v155 = vld [vmem:[%s3 + $0x1c8] sm:$0xff]
    %v156 = vld [vmem:[%s3 + $0x1d0] sm:$0xff]
    %v157 = vld [vmem:[%s3 + $0x1d8] sm:$0xff]
    %v158 = vld [vmem:[%s3 + $0x1e0] sm:$0xff]
    %v159 = vld [vmem:[%s3 + $0x1e8] sm:$0xff]
    %v160 = vld [vmem:[%s3 + $0x1f0] sm:$0xff]
    %v161 = vld [vmem:[%s3 + $0x1f8] sm:$0xff]
    %v162 = vld [vmem:[%s4] sm:$0xf]
    %v164 = vlaneseq
    %v165 = vshrl.u32 %v164, 7
    %v166 = vsub.s32 0, %v165
    %v167 = vrot.slane %v162, %v166
    %v168 = vlaneseq
    %v169 = vshrl.u32 %v168, 7
    %v170 = vsub.s32 1, %v169
    %v171 = vrot.slane %v162, %v170
    %v172 = vlaneseq
    %v173 = vshrl.u32 %v172, 7
    %v174 = vsub.s32 2, %v173
    %v175 = vrot.slane %v162, %v174
    %v176 = vlaneseq
    %v177 = vshrl.u32 %v176, 7
    %v178 = vsub.s32 3, %v177
    %v179 = vrot.slane %v162, %v178
    %184 = vmatprep.subr.mxu0 %v99
    %185 = vmatpush1.msra.mxu0 %v98
    %186 = vmatprep.subr.mxu0 %v103
    %187 = vmatpush1.msra.mxu0 %v102
    %188 = vmatprep.subr.mxu0 %v107
    %189 = vmatpush1.msra.mxu0 %v106
    %190 = vmatprep.subr.mxu0 %v111
    %191 = vmatpush1.msra.mxu0 %v110
    %192 = vmatprep.subr.mxu0 %v115
    %193 = vmatpush1.msra.mxu0 %v114
    %194 = vmatprep.subr.mxu0 %v119
    %195 = vmatpush1.msra.mxu0 %v118
    %196 = vmatprep.subr.mxu0 %v123
    %197 = vmatpush1.msra.mxu0 %v122
    %198 = vmatprep.subr.mxu0 %v127
    %199 = vmatpush1.msra.mxu0 %v126
    %200 = vmatprep.subr.mxu0 %v131
    %201 = vmatpush1.msra.mxu0 %v130
    %202 = vmatprep.subr.mxu0 %v135
    %203 = vmatpush1.msra.mxu0 %v134
    %204 = vmatprep.subr.mxu0 %v139
    %205 = vmatpush1.msra.mxu0 %v138
    %206 = vmatprep.subr.mxu0 %v143
    %207 = vmatpush1.msra.mxu0 %v142
    %208 = vmatprep.subr.mxu0 %v147
    %209 = vmatpush1.msra.mxu0 %v146
    %210 = vmatprep.subr.mxu0 %v151
    %211 = vmatpush1.msra.mxu0 %v150
    %212 = vmatprep.subr.mxu0 %v155
    %213 = vmatpush1.msra.mxu0 %v154
    %214 = vmatprep.subr.mxu0 %v159
    %215 = vmatpush1.msra.mxu0 %v158
    %216 = vmatprep.subr.mxu0 0.0
    %217 = vmatpush1.msra.mxu0 0.0
    %218 = vmatprep.subr.mxu0 0.0
    %219 = vmatpush1.msra.mxu0 0.0
    %220 = vmatprep.subr.mxu0 0.0
    %221 = vmatpush1.msra.mxu0 0.0
    %222 = vmatprep.subr.mxu0 0.0
    %223 = vmatpush1.msra.mxu0 0.0
    %224 = vmatprep.subr.mxu0 0.0
    %225 = vmatpush1.msra.mxu0 0.0
    %226 = vmatprep.subr.mxu0 0.0
    %227 = vmatpush1.msra.mxu0 0.0
    %228 = vmatprep.subr.mxu0 0.0
    %229 = vmatpush1.msra.mxu0 0.0
    %230 = vmatprep.subr.mxu0 0.0
    %231 = vmatpush1.msra.mxu0 0.0
    %232 = vmatprep.subr.mxu0 0.0
    %233 = vmatpush1.msra.mxu0 0.0
    %234 = vmatprep.subr.mxu0 0.0
    %235 = vmatpush1.msra.mxu0 0.0
    %236 = vmatprep.subr.mxu0 0.0
    %237 = vmatpush1.msra.mxu0 0.0
    %238 = vmatprep.subr.mxu0 0.0
    %239 = vmatpush1.msra.mxu0 0.0
    %240 = vmatprep.subr.mxu0 0.0
    %241 = vmatpush1.msra.mxu0 0.0
    %242 = vmatprep.subr.mxu0 0.0
    %243 = vmatpush1.msra.mxu0 0.0
    %244 = vmatprep.subr.mxu0 0.0
    %245 = vmatpush1.msra.mxu0 0.0
    %246 = vmatprep.subr.mxu0 0.0
    %247 = vmatpush1.msra.mxu0 0.0
    %248 = vmatprep.mubr.f32.mxu0 0.0
    %249 = vmatmul.mubr.f32.gmra.mrb[0].mxu0 %v94
    %v250 = vpop.f32.mrb[0].mxu0
    %v251 = vadd.f32 %v167, %v250
    %v252 = vpop.f32.mrb[0].mxu0
    %v253 = vadd.f32 %v171, %v252
    %254 = vmatprep.mubr.f32.mxu0 0.0
    %255 = vmatmul.mubr.f32.gmra.mrb[0].mxu0 %v95
    %v256 = vpop.f32.mrb[0].mxu0
    %v257 = vadd.f32 %v167, %v256
    %v258 = vpop.f32.mrb[0].mxu0
    %v259 = vadd.f32 %v171, %v258
    %260 = vmatprep.mubr.f32.mxu0 0.0
    %261 = vmatmul.mubr.f32.gmra.mrb[0].mxu0 %v96
    %v262 = vpop.f32.mrb[0].mxu0
    %v263 = vadd.f32 %v167, %v262
    %v264 = vpop.f32.mrb[0].mxu0
    %v265 = vadd.f32 %v171, %v264
    %266 = vmatprep.mubr.f32.mxu0 0.0
    %267 = vmatmul.mubr.f32.gmra.mrb[0].mxu0 %v97
    %v268 = vpop.f32.mrb[0].mxu0
    %v269 = vadd.f32 %v167, %v268
    %v270 = vpop.f32.mrb[0].mxu0
    %v271 = vadd.f32 %v171, %v270
    %272 = vdwg.mxu0
    %273 = vmatprep.subr.mxu0 %v101
    %274 = vmatpush1.msra.mxu0 %v100
    %275 = vmatprep.subr.mxu0 %v105
    %276 = vmatpush1.msra.mxu0 %v104
    %277 = vmatprep.subr.mxu0 %v109
    %278 = vmatpush1.msra.mxu0 %v108
    %279 = vmatprep.subr.mxu0 %v113
    %280 = vmatpush1.msra.mxu0 %v112
    %281 = vmatprep.subr.mxu0 %v117
    %282 = vmatpush1.msra.mxu0 %v116
    %283 = vmatprep.subr.mxu0 %v121
    %284 = vmatpush1.msra.mxu0 %v120
    %285 = vmatprep.subr.mxu0 %v125
    %286 = vmatpush1.msra.mxu0 %v124
    %287 = vmatprep.subr.mxu0 %v129
    %288 = vmatpush1.msra.mxu0 %v128
    %289 = vmatprep.subr.mxu0 %v133
    %290 = vmatpush1.msra.mxu0 %v132
    %291 = vmatprep.subr.mxu0 %v137
    %292 = vmatpush1.msra.mxu0 %v136
    %293 = vmatprep.subr.mxu0 %v141
    %294 = vmatpush1.msra.mxu0 %v140
    %295 = vmatprep.subr.mxu0 %v145
    %296 = vmatpush1.msra.mxu0 %v144
    %297 = vmatprep.subr.mxu0 %v149
    %298 = vmatpush1.msra.mxu0 %v148
    %299 = vmatprep.subr.mxu0 %v153
    %300 = vmatpush1.msra.mxu0 %v152
    %301 = vmatprep.subr.mxu0 %v157
    %302 = vmatpush1.msra.mxu0 %v156
    %303 = vmatprep.subr.mxu0 %v161
    %304 = vmatpush1.msra.mxu0 %v160
    %305 = vmatprep.subr.mxu0 0.0
    %306 = vmatpush1.msra.mxu0 0.0
    %307 = vmatprep.subr.mxu0 0.0
    %308 = vmatpush1.msra.mxu0 0.0
    %309 = vmatprep.subr.mxu0 0.0
    %310 = vmatpush1.msra.mxu0 0.0
    %311 = vmatprep.subr.mxu0 0.0
    %312 = vmatpush1.msra.mxu0 0.0
    %313 = vmatprep.subr.mxu0 0.0
    %314 = vmatpush1.msra.mxu0 0.0
    %315 = vmatprep.subr.mxu0 0.0
    %316 = vmatpush1.msra.mxu0 0.0
    %317 = vmatprep.subr.mxu0 0.0
    %318 = vmatpush1.msra.mxu0 0.0
    %319 = vmatprep.subr.mxu0 0.0
    %320 = vmatpush1.msra.mxu0 0.0
    %321 = vmatprep.subr.mxu0 0.0
    %322 = vmatpush1.msra.mxu0 0.0
    %323 = vmatprep.subr.mxu0 0.0
    %324 = vmatpush1.msra.mxu0 0.0
    %325 = vmatprep.subr.mxu0 0.0
    %326 = vmatpush1.msra.mxu0 0.0
    %327 = vmatprep.subr.mxu0 0.0
    %328 = vmatpush1.msra.mxu0 0.0
    %329 = vmatprep.subr.mxu0 0.0
    %330 = vmatpush1.msra.mxu0 0.0
    %331 = vmatprep.subr.mxu0 0.0
    %332 = vmatpush1.msra.mxu0 0.0
    %333 = vmatprep.subr.mxu0 0.0
    %334 = vmatpush1.msra.mxu0 0.0
    %335 = vmatprep.subr.mxu0 0.0
    %336 = vmatpush1.msra.mxu0 0.0
    %337 = vmatprep.mubr.f32.mxu0 0.0
    %338 = vmatmul.mubr.f32.gmra.mrb[0].mxu0 %v94
    %v339 = vpop.f32.mrb[0].mxu0
    %v340 = vadd.f32 %v175, %v339
    %v341 = vpop.f32.mrb[0].mxu0
    %v342 = vadd.f32 %v179, %v341
    %343 = vmatprep.mubr.f32.mxu0 0.0
    %344 = vmatmul.mubr.f32.gmra.mrb[0].mxu0 %v95
    %v345 = vpop.f32.mrb[0].mxu0
    %v346 = vadd.f32 %v175, %v345
    %v347 = vpop.f32.mrb[0].mxu0
    %v348 = vadd.f32 %v179, %v347
    %349 = vmatprep.mubr.f32.mxu0 0.0
    %350 = vmatmul.mubr.f32.gmra.mrb[0].mxu0 %v96
    %v351 = vpop.f32.mrb[0].mxu0
    %v352 = vadd.f32 %v175, %v351
    %v353 = vpop.f32.mrb[0].mxu0
    %v354 = vadd.f32 %v179, %v353
    %355 = vmatprep.mubr.f32.mxu0 0.0
    %356 = vmatmul.mubr.f32.gmra.mrb[0].mxu0 %v97
    %v357 = vpop.f32.mrb[0].mxu0
    %v358 = vadd.f32 %v175, %v357
    %v359 = vpop.f32.mrb[0].mxu0
    %v360 = vadd.f32 %v179, %v359
    %361 = vdwg.mxu0
    %v362 = vmul.f32 %v251, 0.5
    %v363 = vmul.f32 %v253, 0.5
    %v364 = vmul.f32 %v340, 0.5
    %v365 = vmul.f32 %v342, 0.5
    %v366 = vmul.f32 %v257, 0.5
    %v367 = vmul.f32 %v259, 0.5
    %v368 = vmul.f32 %v346, 0.5
    %v369 = vmul.f32 %v348, 0.5
    %v370 = vmul.f32 %v263, 0.5
    %v371 = vmul.f32 %v265, 0.5
    %v372 = vmul.f32 %v352, 0.5
    %v373 = vmul.f32 %v354, 0.5
    %v374 = vmul.f32 %v269, 0.5
    %v375 = vmul.f32 %v271, 0.5
    %v376 = vmul.f32 %v358, 0.5
    %v377 = vmul.f32 %v360, 0.5
    %v378 = vmul.f32 %v251, 0.70710677
    %v379 = vmul.f32 %v253, 0.70710677
    %v380 = vmul.f32 %v340, 0.70710677
    %v381 = vmul.f32 %v342, 0.70710677
    %v382 = vmul.f32 %v257, 0.70710677
    %v383 = vmul.f32 %v259, 0.70710677
    %v384 = vmul.f32 %v346, 0.70710677
    %v385 = vmul.f32 %v348, 0.70710677
    %v386 = vmul.f32 %v263, 0.70710677
    %v387 = vmul.f32 %v265, 0.70710677
    %v388 = vmul.f32 %v352, 0.70710677
    %v389 = vmul.f32 %v354, 0.70710677
    %v390 = vmul.f32 %v269, 0.70710677
    %v391 = vmul.f32 %v271, 0.70710677
    %v392 = vmul.f32 %v358, 0.70710677
    %v393 = vmul.f32 %v360, 0.70710677
    %v394 = verf.f32.pop %v378
    %v395 = verf.f32.pop %v379
    %v396 = verf.f32.pop %v380
    %v397 = verf.f32.pop %v381
    %v398 = verf.f32.pop %v382
    %v399 = verf.f32.pop %v383
    %v400 = verf.f32.pop %v384
    %v401 = verf.f32.pop %v385
    %v402 = verf.f32.pop %v386
    %v403 = verf.f32.pop %v387
    %v404 = verf.f32.pop %v388
    %v405 = verf.f32.pop %v389
    %v406 = verf.f32.pop %v390
    %v407 = verf.f32.pop %v391
    %v408 = verf.f32.pop %v392
    %v409 = verf.f32.pop %v393
    %v410 = vadd.f32 %v394, 1.0
    %v411 = vadd.f32 %v395, 1.0
    %v412 = vadd.f32 %v396, 1.0
    %v413 = vadd.f32 %v397, 1.0
    %v414 = vadd.f32 %v398, 1.0
    %v415 = vadd.f32 %v399, 1.0
    %v416 = vadd.f32 %v400, 1.0
    %v417 = vadd.f32 %v401, 1.0
    %v418 = vadd.f32 %v402, 1.0
    %v419 = vadd.f32 %v403, 1.0
    %v420 = vadd.f32 %v404, 1.0
    %v421 = vadd.f32 %v405, 1.0
    %v422 = vadd.f32 %v406, 1.0
    %v423 = vadd.f32 %v407, 1.0
    %v424 = vadd.f32 %v408, 1.0
    %v425 = vadd.f32 %v409, 1.0
    %v426 = vmul.f32 %v362, %v410
    %v427 = vmul.f32 %v363, %v411
    %v428 = vmul.f32 %v364, %v412
    %v429 = vmul.f32 %v365, %v413
    %v430 = vmul.f32 %v366, %v414
    %v431 = vmul.f32 %v367, %v415
    %v432 = vmul.f32 %v368, %v416
    %v433 = vmul.f32 %v369, %v417
    %v434 = vmul.f32 %v370, %v418
    %v435 = vmul.f32 %v371, %v419
    %v436 = vmul.f32 %v372, %v420
    %v437 = vmul.f32 %v373, %v421
    %v438 = vmul.f32 %v374, %v422
    %v439 = vmul.f32 %v375, %v423
    %v440 = vmul.f32 %v376, %v424
    %v441 = vmul.f32 %v377, %v425
    %v442 = vld [vmem:[%s5] sm:$0xff]
    %v443 = vld [vmem:[%s5 + $0x8] sm:$0xff]
    %v444 = vld [vmem:[%s5 + $0x10] sm:$0xff]
    %v445 = vld [vmem:[%s5 + $0x18] sm:$0xff]
    %v446 = vld [vmem:[%s5 + $0x20] sm:$0xff]
    %v447 = vld [vmem:[%s5 + $0x28] sm:$0xff]
    %v448 = vld [vmem:[%s5 + $0x30] sm:$0xff]
    %v449 = vld [vmem:[%s5 + $0x38] sm:$0xff]
    %v450 = vld [vmem:[%s5 + $0x40] sm:$0xff]
    %v451 = vld [vmem:[%s5 + $0x48] sm:$0xff]
    %v452 = vld [vmem:[%s5 + $0x50] sm:$0xff]
    %v453 = vld [vmem:[%s5 + $0x58] sm:$0xff]
    %v454 = vld [vmem:[%s5 + $0x60] sm:$0xff]
    %v455 = vld [vmem:[%s5 + $0x68] sm:$0xff]
    %v456 = vld [vmem:[%s5 + $0x70] sm:$0xff]
    %v457 = vld [vmem:[%s5 + $0x78] sm:$0xff]
    %v458 = vld [vmem:[%s5 + $0x80] sm:$0xff]
    %v459 = vld [vmem:[%s5 + $0x88] sm:$0xff]
    %v460 = vld [vmem:[%s5 + $0x90] sm:$0xff]
    %v461 = vld [vmem:[%s5 + $0x98] sm:$0xff]
    %v462 = vld [vmem:[%s5 + $0xa0] sm:$0xff]
    %v463 = vld [vmem:[%s5 + $0xa8] sm:$0xff]
    %v464 = vld [vmem:[%s5 + $0xb0] sm:$0xff]
    %v465 = vld [vmem:[%s5 + $0xb8] sm:$0xff]
    %v466 = vld [vmem:[%s5 + $0xc0] sm:$0xff]
    %v467 = vld [vmem:[%s5 + $0xc8] sm:$0xff]
    %v468 = vld [vmem:[%s5 + $0xd0] sm:$0xff]
    %v469 = vld [vmem:[%s5 + $0xd8] sm:$0xff]
    %v470 = vld [vmem:[%s5 + $0xe0] sm:$0xff]
    %v471 = vld [vmem:[%s5 + $0xe8] sm:$0xff]
    %v472 = vld [vmem:[%s5 + $0xf0] sm:$0xff]
    %v473 = vld [vmem:[%s5 + $0xf8] sm:$0xff]
    %v474 = vld [vmem:[%s5 + $0x100] sm:$0xff]
    %v475 = vld [vmem:[%s5 + $0x108] sm:$0xff]
    %v476 = vld [vmem:[%s5 + $0x110] sm:$0xff]
    %v477 = vld [vmem:[%s5 + $0x118] sm:$0xff]
    %v478 = vld [vmem:[%s5 + $0x120] sm:$0xff]
    %v479 = vld [vmem:[%s5 + $0x128] sm:$0xff]
    %v480 = vld [vmem:[%s5 + $0x130] sm:$0xff]
    %v481 = vld [vmem:[%s5 + $0x138] sm:$0xff]
    %v482 = vld [vmem:[%s5 + $0x140] sm:$0xff]
    %v483 = vld [vmem:[%s5 + $0x148] sm:$0xff]
    %v484 = vld [vmem:[%s5 + $0x150] sm:$0xff]
    %v485 = vld [vmem:[%s5 + $0x158] sm:$0xff]
    %v486 = vld [vmem:[%s5 + $0x160] sm:$0xff]
    %v487 = vld [vmem:[%s5 + $0x168] sm:$0xff]
    %v488 = vld [vmem:[%s5 + $0x170] sm:$0xff]
    %v489 = vld [vmem:[%s5 + $0x178] sm:$0xff]
    %v490 = vld [vmem:[%s5 + $0x180] sm:$0xff]
    %v491 = vld [vmem:[%s5 + $0x188] sm:$0xff]
    %v492 = vld [vmem:[%s5 + $0x190] sm:$0xff]
    %v493 = vld [vmem:[%s5 + $0x198] sm:$0xff]
    %v494 = vld [vmem:[%s5 + $0x1a0] sm:$0xff]
    %v495 = vld [vmem:[%s5 + $0x1a8] sm:$0xff]
    %v496 = vld [vmem:[%s5 + $0x1b0] sm:$0xff]
    %v497 = vld [vmem:[%s5 + $0x1b8] sm:$0xff]
    %v498 = vld [vmem:[%s5 + $0x1c0] sm:$0xff]
    %v499 = vld [vmem:[%s5 + $0x1c8] sm:$0xff]
    %v500 = vld [vmem:[%s5 + $0x1d0] sm:$0xff]
    %v501 = vld [vmem:[%s5 + $0x1d8] sm:$0xff]
    %v502 = vld [vmem:[%s5 + $0x1e0] sm:$0xff]
    %v503 = vld [vmem:[%s5 + $0x1e8] sm:$0xff]
    %v504 = vld [vmem:[%s5 + $0x1f0] sm:$0xff]
    %v505 = vld [vmem:[%s5 + $0x1f8] sm:$0xff]
    %v506 = vld [vmem:[%s6] sm:$0x1]
    %v508 = vlaneseq
    %v509 = vshrl.u32 %v508, 7
    %v510 = vsub.s32 0, %v509
    %v511 = vrot.slane %v506, %v510
    %513 = vmatprep.subr.mxu0 0.0
    %514 = vmatpush1.msra.mxu0 %v442
    %515 = vmatprep.subr.mxu0 0.0
    %516 = vmatpush1.msra.mxu0 %v443
    %517 = vmatprep.subr.mxu0 0.0
    %518 = vmatpush1.msra.mxu0 %v444
    %519 = vmatprep.subr.mxu0 0.0
    %520 = vmatpush1.msra.mxu0 %v445
    %521 = vmatprep.subr.mxu0 0.0
    %522 = vmatpush1.msra.mxu0 %v446
    %523 = vmatprep.subr.mxu0 0.0
    %524 = vmatpush1.msra.mxu0 %v447
    %525 = vmatprep.subr.mxu0 0.0
    %526 = vmatpush1.msra.mxu0 %v448
    %527 = vmatprep.subr.mxu0 0.0
    %528 = vmatpush1.msra.mxu0 %v449
    %529 = vmatprep.subr.mxu0 0.0
    %530 = vmatpush1.msra.mxu0 %v450
    %531 = vmatprep.subr.mxu0 0.0
    %532 = vmatpush1.msra.mxu0 %v451
    %533 = vmatprep.subr.mxu0 0.0
    %534 = vmatpush1.msra.mxu0 %v452
    %535 = vmatprep.subr.mxu0 0.0
    %536 = vmatpush1.msra.mxu0 %v453
    %537 = vmatprep.subr.mxu0 0.0
    %538 = vmatpush1.msra.mxu0 %v454
    %539 = vmatprep.subr.mxu0 0.0
    %540 = vmatpush1.msra.mxu0 %v455
    %541 = vmatprep.subr.mxu0 0.0
    %542 = vmatpush1.msra.mxu0 %v456
    %543 = vmatprep.subr.mxu0 0.0
    %544 = vmatpush1.msra.mxu0 %v457
    %545 = vmatprep.subr.mxu0 0.0
    %546 = vmatpush1.msra.mxu0 %v458
    %547 = vmatprep.subr.mxu0 0.0
    %548 = vmatpush1.msra.mxu0 %v459
    %549 = vmatprep.subr.mxu0 0.0
    %550 = vmatpush1.msra.mxu0 %v460
    %551 = vmatprep.subr.mxu0 0.0
    %552 = vmatpush1.msra.mxu0 %v461
    %553 = vmatprep.subr.mxu0 0.0
    %554 = vmatpush1.msra.mxu0 %v462
    %555 = vmatprep.subr.mxu0 0.0
    %556 = vmatpush1.msra.mxu0 %v463
    %557 = vmatprep.subr.mxu0 0.0
    %558 = vmatpush1.msra.mxu0 %v464
    %559 = vmatprep.subr.mxu0 0.0
    %560 = vmatpush1.msra.mxu0 %v465
    %561 = vmatprep.subr.mxu0 0.0
    %562 = vmatpush1.msra.mxu0 %v466
    %563 = vmatprep.subr.mxu0 0.0
    %564 = vmatpush1.msra.mxu0 %v467
    %565 = vmatprep.subr.mxu0 0.0
    %566 = vmatpush1.msra.mxu0 %v468
    %567 = vmatprep.subr.mxu0 0.0
    %568 = vmatpush1.msra.mxu0 %v469
    %569 = vmatprep.subr.mxu0 0.0
    %570 = vmatpush1.msra.mxu0 %v470
    %571 = vmatprep.subr.mxu0 0.0
    %572 = vmatpush1.msra.mxu0 %v471
    %573 = vmatprep.subr.mxu0 0.0
    %574 = vmatpush1.msra.mxu0 %v472
    %575 = vmatprep.subr.mxu0 0.0
    %576 = vmatpush1.msra.mxu0 %v473
    %577 = vmatprep.mubr.f32.mxu0 %v427
    %578 = vmatmul.mubr.f32.gmra.mrb[0].mxu0 %v426
    %v579 = vpop.f32.mrb[0].mxu0
    %v580 = vadd.f32 %v511, %v579
    %v581 = vpop.f32.mrb[0].mxu0
    %582 = vmatprep.mubr.f32.mxu0 %v431
    %583 = vmatmul.mubr.f32.gmra.mrb[0].mxu0 %v430
    %v584 = vpop.f32.mrb[0].mxu0
    %v585 = vadd.f32 %v511, %v584
    %v586 = vpop.f32.mrb[0].mxu0
    %587 = vmatprep.mubr.f32.mxu0 %v435
    %588 = vmatmul.mubr.f32.gmra.mrb[0].mxu0 %v434
    %v589 = vpop.f32.mrb[0].mxu0
    %v590 = vadd.f32 %v511, %v589
    %v591 = vpop.f32.mrb[0].mxu0
    %592 = vmatprep.mubr.f32.mxu0 %v439
    %593 = vmatmul.mubr.f32.gmra.mrb[0].mxu0 %v438
    %v594 = vpop.f32.mrb[0].mxu0
    %v595 = vadd.f32 %v511, %v594
    %v596 = vpop.f32.mrb[0].mxu0
    %597 = vdwg.mxu0
    %598 = vmatprep.subr.mxu0 0.0
    %599 = vmatpush1.msra.mxu0 %v474
    %600 = vmatprep.subr.mxu0 0.0
    %601 = vmatpush1.msra.mxu0 %v475
    %602 = vmatprep.subr.mxu0 0.0
    %603 = vmatpush1.msra.mxu0 %v476
    %604 = vmatprep.subr.mxu0 0.0
    %605 = vmatpush1.msra.mxu0 %v477
    %606 = vmatprep.subr.mxu0 0.0
    %607 = vmatpush1.msra.mxu0 %v478
    %608 = vmatprep.subr.mxu0 0.0
    %609 = vmatpush1.msra.mxu0 %v479
    %610 = vmatprep.subr.mxu0 0.0
    %611 = vmatpush1.msra.mxu0 %v480
    %612 = vmatprep.subr.mxu0 0.0
    %613 = vmatpush1.msra.mxu0 %v481
    %614 = vmatprep.subr.mxu0 0.0
    %615 = vmatpush1.msra.mxu0 %v482
    %616 = vmatprep.subr.mxu0 0.0
    %617 = vmatpush1.msra.mxu0 %v483
    %618 = vmatprep.subr.mxu0 0.0
    %619 = vmatpush1.msra.mxu0 %v484
    %620 = vmatprep.subr.mxu0 0.0
    %621 = vmatpush1.msra.mxu0 %v485
    %622 = vmatprep.subr.mxu0 0.0
    %623 = vmatpush1.msra.mxu0 %v486
    %624 = vmatprep.subr.mxu0 0.0
    %625 = vmatpush1.msra.mxu0 %v487
    %626 = vmatprep.subr.mxu0 0.0
    %627 = vmatpush1.msra.mxu0 %v488
    %628 = vmatprep.subr.mxu0 0.0
    %629 = vmatpush1.msra.mxu0 %v489
    %630 = vmatprep.subr.mxu0 0.0
    %631 = vmatpush1.msra.mxu0 %v490
    %632 = vmatprep.subr.mxu0 0.0
    %633 = vmatpush1.msra.mxu0 %v491
    %634 = vmatprep.subr.mxu0 0.0
    %635 = vmatpush1.msra.mxu0 %v492
    %636 = vmatprep.subr.mxu0 0.0
    %637 = vmatpush1.msra.mxu0 %v493
    %638 = vmatprep.subr.mxu0 0.0
    %639 = vmatpush1.msra.mxu0 %v494
    %640 = vmatprep.subr.mxu0 0.0
    %641 = vmatpush1.msra.mxu0 %v495
    %642 = vmatprep.subr.mxu0 0.0
    %643 = vmatpush1.msra.mxu0 %v496
    %644 = vmatprep.subr.mxu0 0.0
    %645 = vmatpush1.msra.mxu0 %v497
    %646 = vmatprep.subr.mxu0 0.0
    %647 = vmatpush1.msra.mxu0 %v498
    %648 = vmatprep.subr.mxu0 0.0
    %649 = vmatpush1.msra.mxu0 %v499
    %650 = vmatprep.subr.mxu0 0.0
    %651 = vmatpush1.msra.mxu0 %v500
    %652 = vmatprep.subr.mxu0 0.0
    %653 = vmatpush1.msra.mxu0 %v501
    %654 = vmatprep.subr.mxu0 0.0
    %655 = vmatpush1.msra.mxu0 %v502
    %656 = vmatprep.subr.mxu0 0.0
    %657 = vmatpush1.msra.mxu0 %v503
    %658 = vmatprep.subr.mxu0 0.0
    %659 = vmatpush1.msra.mxu0 %v504
    %660 = vmatprep.subr.mxu0 0.0
    %661 = vmatpush1.msra.mxu0 %v505
    %662 = vmatprep.mubr.f32.mxu0 %v429
    %663 = vmatmul.mubr.f32.gmra.mrb[0].mxu0 %v428
    %v664 = vpop.f32.mrb[0].mxu0
    %v665 = vadd.f32 %v580, %v664
    %v666 = vpop.f32.mrb[0].mxu0
    %667 = vmatprep.mubr.f32.mxu0 %v433
    %668 = vmatmul.mubr.f32.gmra.mrb[0].mxu0 %v432
    %v669 = vpop.f32.mrb[0].mxu0
    %v670 = vadd.f32 %v585, %v669
    %v671 = vpop.f32.mrb[0].mxu0
    %672 = vmatprep.mubr.f32.mxu0 %v437
    %673 = vmatmul.mubr.f32.gmra.mrb[0].mxu0 %v436
    %v674 = vpop.f32.mrb[0].mxu0
    %v675 = vadd.f32 %v590, %v674
    %v676 = vpop.f32.mrb[0].mxu0
    %677 = vmatprep.mubr.f32.mxu0 %v441
    %678 = vmatmul.mubr.f32.gmra.mrb[0].mxu0 %v440
    %v679 = vpop.f32.mrb[0].mxu0
    %v680 = vadd.f32 %v595, %v679
    %v681 = vpop.f32.mrb[0].mxu0
    %682 = vdwg.mxu0
    %v683 = vadd.f32 %v665, %v27
    %v684 = vadd.f32 %v670, %v28
    %v685 = vadd.f32 %v675, %v29
    %v686 = vadd.f32 %v680, %v30
    %687 = vst [vmem:[#allocation2] sm:$0xff] %v683
    %688 = vst [vmem:[#allocation2 + $0x8] sm:$0xff] %v684
    %689 = vst [vmem:[#allocation2 + $0x10] sm:$0xff] %v685
    %690 = vst [vmem:[#allocation2 + $0x18] sm:$0xff] %v686
    // Predicated region
    $region30: #{block_forward.5} parent=1 // pred_check
      _
    $region31: #{block_forward.5} parent=1 // pred_check_branch
      %692 = sbr.rel (0) target = $region33
    $region32: #{block_forward.5} parent=1 // pred_region
      %s694 = ssub.s32 512, 512
      %695 = vsyncadd [#allocation3], %s694
      %s696 = sshll.u32 [#allocation2], 4
      %s697 = int_to_ptr.vmem [resolvable:$true] %s696
      %702 = dma.vmem_to_hbm [thread:$0]  %s697, 512, %s7, [#allocation3], 128, 128, 8
    $region33: #{block_forward.5} parent=1 // pred_fallthru
      _
    // Predicated region
    $region34: #{block_forward.5} parent=1 // pred_check
      _
    $region35: #{block_forward.5} parent=1 // pred_check_branch
      %704 = sbr.rel (0) target = $region37
    $region36: #{block_forward.5} parent=1 // pred_region
      %705 = dma.done [#allocation3], 512
    $region37: #{block_forward.5} parent=1 // pred_fallthru
      _
    %706 = vsyncpa [#allocation3], 1

// kernel: block_forward.3
$region0: #{block_forward.3}
  #allocation0 [shape = 'u32[]', space=smem, size = 0x4, offset = 0x4, fixed_abs, tag = 'smem constant byte address 0x4 - core index']
  #allocation1 [shape = 'u32[144,128]{1,0:T(1,128)}', space=vmem, size = 0x12000, scoped, tag = 'internal scratch']
  %s0 = inlined_call_operand.vmem [shape: f32[32,128], index: 0, kind: input, shape index: {}]
  %s1 = inlined_call_operand.vmem [shape: f32[1,128], index: 1, kind: input, shape index: {}]
  %s2 = inlined_call_operand.vmem [shape: f32[1,128], index: 2, kind: input, shape index: {}]
  %s3 = inlined_call_operand.hbm [shape: f32[128,384], index: 3, kind: input, shape index: {}]
  %s4 = inlined_call_operand.vmem [shape: f32[1,384], index: 4, kind: input, shape index: {}]
  %s5 = inlined_call_operand.vmem [shape: f32[32,384], index: 5, kind: output, shape index: {}]
  %s6 = sld [smem:[#allocation0]]
  $region34: #{block_forward.3} parent=0
    _
  %s8 = ssub.s32 1, %s6
  %s9 = scalar_select 0, %s8, %s6
  $region1: #{block_forward.3} parent=0
    #allocation2 [shape = 'u8[196608]{0}', space=vmem, size = 0x30000, scoped, tag = 'input window, operand 3, single buffered']
    #allocation3 [shape = 's32[1]{0}', space=sflag, size = 0x4, scoped, tag = 'scoped memory for block_forward.3']
    %10 = vsyncpa [#allocation3], 0
    // Predicated region
    $region2: #{block_forward.3} parent=1 // pred_check
      _
    $region3: #{block_forward.3} parent=1 // pred_check_branch
      %12 = sbr.rel (0) target = $region5
    $region4: #{block_forward.3} parent=1 // pred_region
      _
    $region5: #{block_forward.3} parent=1 // pred_fallthru
      _
    // Predicated region
    $region6: #{block_forward.3} parent=1 // pred_check
      _
    $region7: #{block_forward.3} parent=1 // pred_check_branch
      %14 = sbr.rel (0) target = $region9
    $region8: #{block_forward.3} parent=1 // pred_region
      _
    $region9: #{block_forward.3} parent=1 // pred_fallthru
      _
    // Predicated region
    $region10: #{block_forward.3} parent=1 // pred_check
      _
    $region11: #{block_forward.3} parent=1 // pred_check_branch
      %16 = sbr.rel (0) target = $region13
    $region12: #{block_forward.3} parent=1 // pred_region
      _
    $region13: #{block_forward.3} parent=1 // pred_fallthru
      _
    // Predicated region
    $region14: #{block_forward.3} parent=1 // pred_check
      _
    $region15: #{block_forward.3} parent=1 // pred_check_branch
      %18 = sbr.rel (0) target = $region17
    $region16: #{block_forward.3} parent=1 // pred_region
      %s20 = ssub.s32 6144, 6144
      %21 = vsyncadd [#allocation3], %s20
      %s22 = sshll.u32 [#allocation2], 4
      %s23 = int_to_ptr.vmem [resolvable:$true] %s22
      %28 = dma.hbm_to_vmem [thread:$0]  %s3, 6144, %s23, [#allocation3], 384, 384, 24
    $region17: #{block_forward.3} parent=1 // pred_fallthru
      _
    // Predicated region
    $region18: #{block_forward.3} parent=1 // pred_check
      _
    $region19: #{block_forward.3} parent=1 // pred_check_branch
      %30 = sbr.rel (0) target = $region21
    $region20: #{block_forward.3} parent=1 // pred_region
      _
    $region21: #{block_forward.3} parent=1 // pred_fallthru
      _
    // Predicated region
    $region22: #{block_forward.3} parent=1 // pred_check
      _
    $region23: #{block_forward.3} parent=1 // pred_check_branch
      %32 = sbr.rel (0) target = $region25
    $region24: #{block_forward.3} parent=1 // pred_region
      %33 = dma.done [#allocation3], 6144
    $region25: #{block_forward.3} parent=1 // pred_fallthru
      _
    %v34 = vld [vmem:[%s0] sm:$0xff]
    %v35 = vld [vmem:[%s0 + $0x8] sm:$0xff]
    %v36 = vld [vmem:[%s0 + $0x10] sm:$0xff]
    %v37 = vld [vmem:[%s0 + $0x18] sm:$0xff]
    %38 = vadd.xlane.f32.xlu0 %v34
    %v39 = vpop.xlane.xlu0 %38
    %40 = vadd.xlane.f32.xlu0 %v35
    %v41 = vpop.xlane.xlu0 %40
    %42 = vadd.xlane.f32.xlu0 %v36
    %v43 = vpop.xlane.xlu0 %42
    %44 = vadd.xlane.f32.xlu0 %v37
    %v45 = vpop.xlane.xlu0 %44
    %v46 = vrcp.pop 128.0
    %v47 = vmul.f32 %v39, %v46
    %v48 = vmul.f32 %v41, %v46
    %v49 = vmul.f32 %v43, %v46
    %v50 = vmul.f32 %v45, %v46
    %v51 = vsub.f32 %v34, %v47
    %v52 = vsub.f32 %v35, %v48
    %v53 = vsub.f32 %v36, %v49
    %v54 = vsub.f32 %v37, %v50
    %v55 = vmul.f32 %v51, %v51
    %v56 = vmul.f32 %v52, %v52
    %v57 = vmul.f32 %v53, %v53
    %v58 = vmul.f32 %v54, %v54
    %59 = vadd.xlane.f32.xlu0 %v55
    %v60 = vpop.xlane.xlu0 %59
    %61 = vadd.xlane.f32.xlu0 %v56
    %v62 = vpop.xlane.xlu0 %61
    %63 = vadd.xlane.f32.xlu0 %v57
    %v64 = vpop.xlane.xlu0 %63
    %65 = vadd.xlane.f32.xlu0 %v58
    %v66 = vpop.xlane.xlu0 %65
    %v67 = vmul.f32 %v60, %v46
    %v68 = vmul.f32 %v62, %v46
    %v69 = vmul.f32 %v64, %v46
    %v70 = vmul.f32 %v66, %v46
    %v71 = vadd.f32 %v67, 1e-06
    %v72 = vadd.f32 %v68, 1e-06
    %v73 = vadd.f32 %v69, 1e-06
    %v74 = vadd.f32 %v70, 1e-06
    %v75 = vrsqrt.pop %v71
    %v76 = vrsqrt.pop %v72
    %v77 = vrsqrt.pop %v73
    %v78 = vrsqrt.pop %v74
    %v79 = vmul.f32 %v51, %v75
    %v80 = vmul.f32 %v52, %v76
    %v81 = vmul.f32 %v53, %v77
    %v82 = vmul.f32 %v54, %v78
    %v83 = vld [vmem:[%s1] sm:$0x1]
    %v85 = vlaneseq
    %v86 = vshrl.u32 %v85, 7
    %v87 = vsub.s32 0, %v86
    %v88 = vrot.slane %v83, %v87
    %v90 = vmul.f32 %v79, %v88
    %v91 = vmul.f32 %v80, %v88
    %v92 = vmul.f32 %v81, %v88
    %v93 = vmul.f32 %v82, %v88
    %v94 = vld [vmem:[%s2] sm:$0x1]
    %v96 = vlaneseq
    %v97 = vshrl.u32 %v96, 7
    %v98 = vsub.s32 0, %v97
    %v99 = vrot.slane %v94, %v98
    %v101 = vadd.f32 %v90, %v99
    %v102 = vadd.f32 %v91, %v99
    %v103 = vadd.f32 %v92, %v99
    %v104 = vadd.f32 %v93, %v99
    %v105 = vld [vmem:[#allocation2] sm:$0xff]
    %v106 = vld [vmem:[#allocation2 + $0x8] sm:$0xff]
    %v107 = vld [vmem:[#allocation2 + $0x10] sm:$0xff]
    %v108 = vld [vmem:[#allocation2 + $0x18] sm:$0xff]
    %v109 = vld [vmem:[#allocation2 + $0x20] sm:$0xff]
    %v110 = vld [vmem:[#allocation2 + $0x28] sm:$0xff]
    %v111 = vld [vmem:[#allocation2 + $0x30] sm:$0xff]
    %v112 = vld [vmem:[#allocation2 + $0x38] sm:$0xff]
    %v113 = vld [vmem:[#allocation2 + $0x40] sm:$0xff]
    %v114 = vld [vmem:[#allocation2 + $0x48] sm:$0xff]
    %v115 = vld [vmem:[#allocation2 + $0x50] sm:$0xff]
    %v116 = vld [vmem:[#allocation2 + $0x58] sm:$0xff]
    %v117 = vld [vmem:[#allocation2 + $0x60] sm:$0xff]
    %v118 = vld [vmem:[#allocation2 + $0x68] sm:$0xff]
    %v119 = vld [vmem:[#allocation2 + $0x70] sm:$0xff]
    %v120 = vld [vmem:[#allocation2 + $0x78] sm:$0xff]
    %v121 = vld [vmem:[#allocation2 + $0x80] sm:$0xff]
    %v122 = vld [vmem:[#allocation2 + $0x88] sm:$0xff]
    %v123 = vld [vmem:[#allocation2 + $0x90] sm:$0xff]
    %v124 = vld [vmem:[#allocation2 + $0x98] sm:$0xff]
    %v125 = vld [vmem:[#allocation2 + $0xa0] sm:$0xff]
    %v126 = vld [vmem:[#allocation2 + $0xa8] sm:$0xff]
    %v127 = vld [vmem:[#allocation2 + $0xb0] sm:$0xff]
    %v128 = vld [vmem:[#allocation2 + $0xb8] sm:$0xff]
    %v129 = vld [vmem:[#allocation2 + $0xc0] sm:$0xff]
    %v130 = vld [vmem:[#allocation2 + $0xc8] sm:$0xff]
    %v131 = vld [vmem:[#allocation2 + $0xd0] sm:$0xff]
    %v132 = vld [vmem:[#allocation2 + $0xd8] sm:$0xff]
    %v133 = vld [vmem:[#allocation2 + $0xe0] sm:$0xff]
    %v134 = vld [vmem:[#allocation2 + $0xe8] sm:$0xff]
    %v135 = vld [vmem:[#allocation2 + $0xf0] sm:$0xff]
    %v136 = vld [vmem:[#allocation2 + $0xf8] sm:$0xff]
    %v137 = vld [vmem:[#allocation2 + $0x100] sm:$0xff]
    %v138 = vld [vmem:[#allocation2 + $0x108] sm:$0xff]
    %v139 = vld [vmem:[#allocation2 + $0x110] sm:$0xff]
    %v140 = vld [vmem:[#allocation2 + $0x118] sm:$0xff]
    %v141 = vld [vmem:[#allocation2 + $0x120] sm:$0xff]
    %v142 = vld [vmem:[#allocation2 + $0x128] sm:$0xff]
    %v143 = vld [vmem:[#allocation2 + $0x130] sm:$0xff]
    %v144 = vld [vmem:[#allocation2 + $0x138] sm:$0xff]
    %v145 = vld [vmem:[#allocation2 + $0x140] sm:$0xff]
    %v146 = vld [vmem:[#allocation2 + $0x148] sm:$0xff]
    %v147 = vld [vmem:[#allocation2 + $0x150] sm:$0xff]
    %v148 = vld [vmem:[#allocation2 + $0x158] sm:$0xff]
    %v149 = vld [vmem:[#allocation2 + $0x160] sm:$0xff]
    %v150 = vld [vmem:[#allocation2 + $0x168] sm:$0xff]
    %v151 = vld [vmem:[#allocation2 + $0x170] sm:$0xff]
    %v152 = vld [vmem:[#allocation2 + $0x178] sm:$0xff]
    %v153 = vld [vmem:[%s4] sm:$0x7]
    %v155 = vlaneseq
    %v156 = vshrl.u32 %v155, 7
    %v157 = vsub.s32 0, %v156
    %v158 = vrot.slane %v153, %v157
    %v159 = vlaneseq
    %v160 = vshrl.u32 %v159, 7
    %v161 = vsub.s32 1, %v160
    %v162 = vrot.slane %v153, %v161
    %v163 = vlaneseq
    %v164 = vshrl.u32 %v163, 7
    %v165 = vsub.s32 2, %v164
    %v166 = vrot.slane %v153, %v165
    %170 = vmatprep.subr.mxu0 %v106
    %171 = vmatpush1.msra.mxu0 %v105
    %172 = vmatprep.subr.mxu0 %v109
    %173 = vmatpush1.msra.mxu0 %v108
    %174 = vmatprep.subr.mxu0 %v112
    %175 = vmatpush1.msra.mxu0 %v111
    %176 = vmatprep.subr.mxu0 %v115
    %177 = vmatpush1.msra.mxu0 %v114
    %178 = vmatprep.subr.mxu0 %v118
    %179 = vmatpush1.msra.mxu0 %v117
    %180 = vmatprep.subr.mxu0 %v121
    %181 = vmatpush1.msra.mxu0 %v120
    %182 = vmatprep.subr.mxu0 %v124
    %183 = vmatpush1.msra.mxu0 %v123
    %184 = vmatprep.subr.mxu0 %v127
    %185 = vmatpush1.msra.mxu0 %v126
    %186 = vmatprep.subr.mxu0 %v130
    %187 = vmatpush1.msra.mxu0 %v129
    %188 = vmatprep.subr.mxu0 %v133
    %189 = vmatpush1.msra.mxu0 %v132
    %190 = vmatprep.subr.mxu0 %v136
    %191 = vmatpush1.msra.mxu0 %v135
    %192 = vmatprep.subr.mxu0 %v139
    %193 = vmatpush1.msra.mxu0 %v138
    %194 = vmatprep.subr.mxu0 %v142
    %195 = vmatpush1.msra.mxu0 %v141
    %196 = vmatprep.subr.mxu0 %v145
    %197 = vmatpush1.msra.mxu0 %v144
    %198 = vmatprep.subr.mxu0 %v148
    %199 = vmatpush1.msra.mxu0 %v147
    %200 = vmatprep.subr.mxu0 %v151
    %201 = vmatpush1.msra.mxu0 %v150
    %202 = vmatprep.subr.mxu0 0.0
    %203 = vmatpush1.msra.mxu0 0.0
    %204 = vmatprep.subr.mxu0 0.0
    %205 = vmatpush1.msra.mxu0 0.0
    %206 = vmatprep.subr.mxu0 0.0
    %207 = vmatpush1.msra.mxu0 0.0
    %208 = vmatprep.subr.mxu0 0.0
    %209 = vmatpush1.msra.mxu0 0.0
    %210 = vmatprep.subr.mxu0 0.0
    %211 = vmatpush1.msra.mxu0 0.0
    %212 = vmatprep.subr.mxu0 0.0
    %213 = vmatpush1.msra.mxu0 0.0
    %214 = vmatprep.subr.mxu0 0.0
    %215 = vmatpush1.msra.mxu0 0.0
    %216 = vmatprep.subr.mxu0 0.0
    %217 = vmatpush1.msra.mxu0 0.0
    %218 = vmatprep.subr.mxu0 0.0
    %219 = vmatpush1.msra.mxu0 0.0
    %220 = vmatprep.subr.mxu0 0.0
    %221 = vmatpush1.msra.mxu0 0.0
    %222 = vmatprep.subr.mxu0 0.0
    %223 = vmatpush1.msra.mxu0 0.0
    %224 = vmatprep.subr.mxu0 0.0
    %225 = vmatpush1.msra.mxu0 0.0
    %226 = vmatprep.subr.mxu0 0.0
    %227 = vmatpush1.msra.mxu0 0.0
    %228 = vmatprep.subr.mxu0 0.0
    %229 = vmatpush1.msra.mxu0 0.0
    %230 = vmatprep.subr.mxu0 0.0
    %231 = vmatpush1.msra.mxu0 0.0
    %232 = vmatprep.subr.mxu0 0.0
    %233 = vmatpush1.msra.mxu0 0.0
    %234 = vmatprep.mubr.f32.mxu0 0.0
    %235 = vmatmul.mubr.f32.gmra.mrb[0].mxu0 %v101
    %v236 = vpop.f32.mrb[0].mxu0
    %v237 = vadd.f32 %v158, %v236
    %v238 = vpop.f32.mrb[0].mxu0
    %v239 = vadd.f32 %v162, %v238
    %240 = vmatprep.mubr.f32.mxu0 0.0
    %241 = vmatmul.mubr.f32.gmra.mrb[0].mxu0 %v102
    %v242 = vpop.f32.mrb[0].mxu0
    %v243 = vadd.f32 %v158, %v242
    %v244 = vpop.f32.mrb[0].mxu0
    %v245 = vadd.f32 %v162, %v244
    %246 = vmatprep.mubr.f32.mxu0 0.0
    %247 = vmatmul.mubr.f32.gmra.mrb[0].mxu0 %v103
    %v248 = vpop.f32.mrb[0].mxu0
    %v249 = vadd.f32 %v158, %v248
    %v250 = vpop.f32.mrb[0].mxu0
    %v251 = vadd.f32 %v162, %v250
    %252 = vmatprep.mubr.f32.mxu0 0.0
    %253 = vmatmul.mubr.f32.gmra.mrb[0].mxu0 %v104
    %v254 = vpop.f32.mrb[0].mxu0
    %v255 = vadd.f32 %v158, %v254
    %v256 = vpop.f32.mrb[0].mxu0
    %v257 = vadd.f32 %v162, %v256
    %258 = vdwg.mxu0
    %259 = vmatprep.subr.mxu0 0.0
    %260 = vmatpush1.msra.mxu0 %v107
    %261 = vmatprep.subr.mxu0 0.0
    %262 = vmatpush1.msra.mxu0 %v110
    %263 = vmatprep.subr.mxu0 0.0
    %264 = vmatpush1.msra.mxu0 %v113
    %265 = vmatprep.subr.mxu0 0.0
    %266 = vmatpush1.msra.mxu0 %v116
    %267 = vmatprep.subr.mxu0 0.0
    %268 = vmatpush1.msra.mxu0 %v119
    %269 = vmatprep.subr.mxu0 0.0
    %270 = vmatpush1.msra.mxu0 %v122
    %271 = vmatprep.subr.mxu0 0.0
    %272 = vmatpush1.msra.mxu0 %v125
    %273 = vmatprep.subr.mxu0 0.0
    %274 = vmatpush1.msra.mxu0 %v128
    %275 = vmatprep.subr.mxu0 0.0
    %276 = vmatpush1.msra.mxu0 %v131
    %277 = vmatprep.subr.mxu0 0.0
    %278 = vmatpush1.msra.mxu0 %v134
    %279 = vmatprep.subr.mxu0 0.0
    %280 = vmatpush1.msra.mxu0 %v137
    %281 = vmatprep.subr.mxu0 0.0
    %282 = vmatpush1.msra.mxu0 %v140
    %283 = vmatprep.subr.mxu0 0.0
    %284 = vmatpush1.msra.mxu0 %v143
    %285 = vmatprep.subr.mxu0 0.0
    %286 = vmatpush1.msra.mxu0 %v146
    %287 = vmatprep.subr.mxu0 0.0
    %288 = vmatpush1.msra.mxu0 %v149
    %289 = vmatprep.subr.mxu0 0.0
    %290 = vmatpush1.msra.mxu0 %v152
    %291 = vmatprep.subr.mxu0 0.0
    %292 = vmatpush1.msra.mxu0 0.0
    %293 = vmatprep.subr.mxu0 0.0
    %294 = vmatpush1.msra.mxu0 0.0
    %295 = vmatprep.subr.mxu0 0.0
    %296 = vmatpush1.msra.mxu0 0.0
    %297 = vmatprep.subr.mxu0 0.0
    %298 = vmatpush1.msra.mxu0 0.0
    %299 = vmatprep.subr.mxu0 0.0
    %300 = vmatpush1.msra.mxu0 0.0
    %301 = vmatprep.subr.mxu0 0.0
    %302 = vmatpush1.msra.mxu0 0.0
    %303 = vmatprep.subr.mxu0 0.0
    %304 = vmatpush1.msra.mxu0 0.0
    %305 = vmatprep.subr.mxu0 0.0
    %306 = vmatpush1.msra.mxu0 0.0
    %307 = vmatprep.subr.mxu0 0.0
    %308 = vmatpush1.msra.mxu0 0.0
    %309 = vmatprep.subr.mxu0 0.0
    %310 = vmatpush1.msra.mxu0 0.0
    %311 = vmatprep.subr.mxu0 0.0
    %312 = vmatpush1.msra.mxu0 0.0
    %313 = vmatprep.subr.mxu0 0.0
    %314 = vmatpush1.msra.mxu0 0.0
    %315 = vmatprep.subr.mxu0 0.0
    %316 = vmatpush1.msra.mxu0 0.0
    %317 = vmatprep.subr.mxu0 0.0
    %318 = vmatpush1.msra.mxu0 0.0
    %319 = vmatprep.subr.mxu0 0.0
    %320 = vmatpush1.msra.mxu0 0.0
    %321 = vmatprep.subr.mxu0 0.0
    %322 = vmatpush1.msra.mxu0 0.0
    %323 = vmatprep.mubr.f32.mxu0 0.0
    %324 = vmatmul.mubr.f32.gmra.mrb[0].mxu0 %v101
    %v325 = vpop.f32.mrb[0].mxu0
    %v326 = vadd.f32 %v166, %v325
    %v327 = vpop.f32.mrb[0].mxu0
    %328 = vmatprep.mubr.f32.mxu0 0.0
    %329 = vmatmul.mubr.f32.gmra.mrb[0].mxu0 %v102
    %v330 = vpop.f32.mrb[0].mxu0
    %v331 = vadd.f32 %v166, %v330
    %v332 = vpop.f32.mrb[0].mxu0
    %333 = vmatprep.mubr.f32.mxu0 0.0
    %334 = vmatmul.mubr.f32.gmra.mrb[0].mxu0 %v103
    %v335 = vpop.f32.mrb[0].mxu0
    %v336 = vadd.f32 %v166, %v335
    %v337 = vpop.f32.mrb[0].mxu0
    %338 = vmatprep.mubr.f32.mxu0 0.0
    %339 = vmatmul.mubr.f32.gmra.mrb[0].mxu0 %v104
    %v340 = vpop.f32.mrb[0].mxu0
    %v341 = vadd.f32 %v166, %v340
    %v342 = vpop.f32.mrb[0].mxu0
    %343 = vdwg.mxu0
    %344 = vst [vmem:[%s5] sm:$0xff] %v237
    %345 = vst [vmem:[%s5 + $0x8] sm:$0xff] %v239
    %346 = vst [vmem:[%s5 + $0x10] sm:$0xff] %v326
    %347 = vst [vmem:[%s5 + $0x18] sm:$0xff] %v243
    %348 = vst [vmem:[%s5 + $0x20] sm:$0xff] %v245
    %349 = vst [vmem:[%s5 + $0x28] sm:$0xff] %v331
    %350 = vst [vmem:[%s5 + $0x30] sm:$0xff] %v249
    %351 = vst [vmem:[%s5 + $0x38] sm:$0xff] %v251
    %352 = vst [vmem:[%s5 + $0x40] sm:$0xff] %v336
    %353 = vst [vmem:[%s5 + $0x48] sm:$0xff] %v255
    %354 = vst [vmem:[%s5 + $0x50] sm:$0xff] %v257
    %355 = vst [vmem:[%s5 + $0x58] sm:$0xff] %v341
    // Predicated region
    $region26: #{block_forward.3} parent=1 // pred_check
      _
    $region27: #{block_forward.3} parent=1 // pred_check_branch
      %357 = sbr.rel (0) target = $region29
    $region28: #{block_forward.3} parent=1 // pred_region
      _
    $region29: #{block_forward.3} parent=1 // pred_fallthru
      _
    // Predicated region
    $region30: #{block_forward.3} parent=1 // pred_check
      _
    $region31: #{block_forward.3} parent=1 // pred_check_branch
      %359 = sbr.rel (0) target = $region33
    $region32: #{block_forward.3} parent=1 // pred_region
      _
    $region33: #{block_forward.3} parent=1 // pred_fallthru
      _
    %360 = vsyncpa [#allocation3], 1

// kernel: block_forward.4
$region0: #{block_forward.4}
  #allocation0 [shape = 'u32[]', space=smem, size = 0x4, offset = 0x4, fixed_abs, tag = 'smem constant byte address 0x4 - core index']
  #allocation1 [shape = 'u32[144,128]{1,0:T(1,128)}', space=vmem, size = 0x12000, scoped, tag = 'internal scratch']
  %s0 = inlined_call_operand.vmem [shape: f32[2,8,16,16], index: 0, kind: input, shape index: {}]
  %s1 = inlined_call_operand.vmem [shape: f32[2,8,16,16], index: 1, kind: input, shape index: {}]
  %s2 = inlined_call_operand.vmem [shape: f32[2,8,16,16], index: 2, kind: input, shape index: {}]
  %s3 = inlined_call_operand.vmem [shape: f32[2,16,128], index: 3, kind: input, shape index: {}]
  %s4 = inlined_call_operand.vmem [shape: f32[8,16,128], index: 4, kind: input, shape index: {}]
  %s5 = inlined_call_operand.vmem [shape: f32[1,128], index: 5, kind: input, shape index: {}]
  %s6 = inlined_call_operand.vmem [shape: f32[2,16,128], index: 6, kind: output, shape index: {}]
  %s7 = sld [smem:[#allocation0]]
  $region57: #{block_forward.4} parent=0
    _
  %s9 = ssub.s32 1, %s7
  %s10 = scalar_select 0, %s9, %s7
  loop: start=0, step=1, limit=4
  $region2: #{block_forward.4} parent=0 // loop_pre_header
    _
  $region3: #{block_forward.4} parent=0 // loop_header
    %s12 = sphi 0, %s16
    %p13 = scmp.ge.s32.totalorder %s12, 4
    %s22 = sphi 0, %s24
    %s25 = sphi 0, %s22
    %s26 = sphi 0, %s25
    %s42 = sphi 0, %s26
    %s48 = sphi 0, %s50
    %s51 = sphi 0, %s48
    %s52 = sphi 0, %s51
    %s68 = sphi 0, %s52
    %s74 = sphi 0, %s76
    %s77 = sphi 0, %s74
    %s78 = sphi 0, %s77
    %s94 = sphi 0, %s78
    %s100 = sphi 0, %s102
    %s103 = sphi 0, %s100
    %s104 = sphi 0, %s103
    %s120 = sphi 0, %s104
    %s124 = sphi 0, %s124
    %s126 = sphi 0, %s124
    %s127 = sphi 0, %s126
    %s141 = sphi 0, %s127
    %s145 = sphi 0, %s145
    %s147 = sphi 0, %s145
    %s148 = sphi 0, %s147
    %s162 = sphi 0, %s148
    %s168 = sphi 0, %s170
    %s171 = sphi 0, %s168
    %s172 = sphi 0, %s171
    %s188 = sphi 0, %s172
  $region4: #{block_forward.4} parent=0 // loop_header_branch
    %15 = sbr.rel (%p13) target = $region8
  $region5: #{block_forward.4} parent=0 // loop_body
    %s17 = ssub.s32 %s12, 1
    %s18 = ssub.s32 %s12, 2
    %s19 = sadd.s32 %s12, 1
    %s20 = ssub.s32 %s12, %s19
    %p21 = scmp.eq.s32.totalorder %s20, 0
    %s23 = sadd.s32 %s22, 1
    %s24 = scalar_select %p21, %s22, %s23
    %p27 = pneg %p21
    %p28 = scmp.eq.s32.totalorder %s12, 1
    %p29 = por %p27, %p28
    %p30 = scmp.ne.s32.totalorder %s22, %s25
    %p31 = scmp.eq.s32.totalorder %s12, 0
    %p32 = por %p30, %p31
    %p33 = scmp.ne.s32.totalorder %s22, %s25
    %p34 = scmp.eq.s32.totalorder %s17, 1
    %p35 = por %p33, %p34
    %p36 = scmp.ne.s32.totalorder %s25, %s26
    %p37 = scmp.eq.s32.totalorder %s17, 0
    %p38 = por %p36, %p37
    %p39 = scmp.ne.s32.totalorder %s25, %s26
    %p40 = scmp.eq.s32.totalorder %s18, 1
    %p41 = por %p39, %p40
    %p43 = scmp.ne.s32.totalorder %s26, %s42
    %p44 = scmp.eq.s32.totalorder %s18, 0
    %p45 = por %p43, %p44
    %s46 = ssub.s32 %s12, %s19
    %p47 = scmp.eq.s32.totalorder %s46, 0
    %s49 = sadd.s32 %s48, 1
    %s50 = scalar_select %p47, %s48, %s49
    %p53 = pneg %p47
    %p54 = scmp.eq.s32.totalorder %s12, 1
    %p55 = por %p53, %p54
    %p56 = scmp.ne.s32.totalorder %s48, %s51
    %p57 = scmp.eq.s32.totalorder %s12, 0
    %p58 = por %p56, %p57
    %p59 = scmp.ne.s32.totalorder %s48, %s51
    %p60 = scmp.eq.s32.totalorder %s17, 1
    %p61 = por %p59, %p60
    %p62 = scmp.ne.s32.totalorder %s51, %s52
    %p63 = scmp.eq.s32.totalorder %s17, 0
    %p64 = por %p62, %p63
    %p65 = scmp.ne.s32.totalorder %s51, %s52
    %p66 = scmp.eq.s32.totalorder %s18, 1
    %p67 = por %p65, %p66
    %p69 = scmp.ne.s32.totalorder %s52, %s68
    %p70 = scmp.eq.s32.totalorder %s18, 0
    %p71 = por %p69, %p70
    %s72 = ssub.s32 %s12, %s19
    %p73 = scmp.eq.s32.totalorder %s72, 0
    %s75 = sadd.s32 %s74, 1
    %s76 = scalar_select %p73, %s74, %s75
    %p79 = pneg %p73
    %p80 = scmp.eq.s32.totalorder %s12, 1
    %p81 = por %p79, %p80
    %p82 = scmp.ne.s32.totalorder %s74, %s77
    %p83 = scmp.eq.s32.totalorder %s12, 0
    %p84 = por %p82, %p83
    %p85 = scmp.ne.s32.totalorder %s74, %s77
    %p86 = scmp.eq.s32.totalorder %s17, 1
    %p87 = por %p85, %p86
    %p88 = scmp.ne.s32.totalorder %s77, %s78
    %p89 = scmp.eq.s32.totalorder %s17, 0
    %p90 = por %p88, %p89
    %p91 = scmp.ne.s32.totalorder %s77, %s78
    %p92 = scmp.eq.s32.totalorder %s18, 1
    %p93 = por %p91, %p92
    %p95 = scmp.ne.s32.totalorder %s78, %s94
    %p96 = scmp.eq.s32.totalorder %s18, 0
    %p97 = por %p95, %p96
    %s98 = ssub.s32 %s12, %s19
    %p99 = scmp.eq.s32.totalorder %s98, 0
    %s101 = sadd.s32 %s100, 1
    %s102 = scalar_select %p99, %s100, %s101
    %p105 = pneg %p99
    %p106 = scmp.eq.s32.totalorder %s12, 1
    %p107 = por %p105, %p106
    %p108 = scmp.ne.s32.totalorder %s100, %s103
    %p109 = scmp.eq.s32.totalorder %s12, 0
    %p110 = por %p108, %p109
    %p111 = scmp.ne.s32.totalorder %s100, %s103
    %p112 = scmp.eq.s32.totalorder %s17, 1
    %p113 = por %p111, %p112
    %p114 = scmp.ne.s32.totalorder %s103, %s104
    %p115 = scmp.eq.s32.totalorder %s17, 0
    %p116 = por %p114, %p115
    %p117 = scmp.ne.s32.totalorder %s103, %s104
    %p118 = scmp.eq.s32.totalorder %s18, 1
    %p119 = por %p117, %p118
    %p121 = scmp.ne.s32.totalorder %s104, %s120
    %p122 = scmp.eq.s32.totalorder %s18, 0
    %p123 = por %p121, %p122
    %s125 = sadd.s32 %s124, 1
    %p128 = scmp.eq.s32.totalorder %s12, 1
    %p129 = scmp.ne.s32.totalorder %s124, %s126
    %p130 = scmp.eq.s32.totalorder %s12, 0
    %p131 = por %p129, %p130
    %p132 = scmp.ne.s32.totalorder %s124, %s126
    %p133 = scmp.eq.s32.totalorder %s17, 1
    %p134 = por %p132, %p133
    %p135 = scmp.ne.s32.totalorder %s126, %s127
    %p136 = scmp.eq.s32.totalorder %s17, 0
    %p137 = por %p135, %p136
    %p138 = scmp.ne.s32.totalorder %s126, %s127
    %p139 = scmp.eq.s32.totalorder %s18, 1
    %p140 = por %p138, %p139
    %p142 = scmp.ne.s32.totalorder %s127, %s141
    %p143 = scmp.eq.s32.totalorder %s18, 0
    %p144 = por %p142, %p143
    %s146 = sadd.s32 %s145, 1
    %p149 = scmp.eq.s32.totalorder %s12, 1
    %p150 = scmp.ne.s32.totalorder %s145, %s147
    %p151 = scmp.eq.s32.totalorder %s12, 0
    %p152 = por %p150, %p151
    %p153 = scmp.ne.s32.totalorder %s145, %s147
    %p154 = scmp.eq.s32.totalorder %s17, 1
    %p155 = por %p153, %p154
    %p156 = scmp.ne.s32.totalorder %s147, %s148
    %p157 = scmp.eq.s32.totalorder %s17, 0
    %p158 = por %p156, %p157
    %p159 = scmp.ne.s32.totalorder %s147, %s148
    %p160 = scmp.eq.s32.totalorder %s18, 1
    %p161 = por %p159, %p160
    %p163 = scmp.ne.s32.totalorder %s148, %s162
    %p164 = scmp.eq.s32.totalorder %s18, 0
    %p165 = por %p163, %p164
    %s166 = ssub.s32 %s12, %s19
    %p167 = scmp.eq.s32.totalorder %s166, 0
    %s169 = sadd.s32 %s168, 1
    %s170 = scalar_select %p167, %s168, %s169
    %p173 = pneg %p167
    %p174 = scmp.eq.s32.totalorder %s12, 1
    %p175 = por %p173, %p174
    %p176 = scmp.ne.s32.totalorder %s168, %s171
    %p177 = scmp.eq.s32.totalorder %s12, 0
    %p178 = por %p176, %p177
    %p179 = scmp.ne.s32.totalorder %s168, %s171
    %p180 = scmp.eq.s32.totalorder %s17, 1
    %p181 = por %p179, %p180
    %p182 = scmp.ne.s32.totalorder %s171, %s172
    %p183 = scmp.eq.s32.totalorder %s17, 0
    %p184 = por %p182, %p183
    %p185 = scmp.ne.s32.totalorder %s171, %s172
    %p186 = scmp.eq.s32.totalorder %s18, 1
    %p187 = por %p185, %p186
    %p189 = scmp.ne.s32.totalorder %s172, %s188
    %p190 = scmp.eq.s32.totalorder %s18, 0
    %p191 = por %p189, %p190
    %p192 = scmp.le.s32.totalorder 1, %s12
    %p193 = scmp.lt.s32.totalorder %s12, 3
    %p194 = pnand %p192, %p193
    %p195 = pneg %p194
    // Predicated region
    $region9: #{block_forward.4} parent=5 // pred_check
      _
    $region10: #{block_forward.4} parent=5 // pred_check_branch
      %197 = sbr.rel (%p194) target = $region12
    $region11: #{block_forward.4} parent=5 // pred_region
      %s198 = ssub.s32 %s12, 1
      // Predicated region
      $region13: #{block_forward.4} parent=11 // pred_check
        %p199 = pneg %p137
      $region14: #{block_forward.4} parent=11 // pred_check_branch
        %201 = sbr.rel (%p199) target = $region16
      $region15: #{block_forward.4} parent=11 // pred_region
        _
      $region16: #{block_forward.4} parent=11 // pred_fallthru
        _
      // Predicated region
      $region17: #{block_forward.4} parent=11 // pred_check
        %p202 = pneg %p158
      $region18: #{block_forward.4} parent=11 // pred_check_branch
        %204 = sbr.rel (%p202) target = $region20
      $region19: #{block_forward.4} parent=11 // pred_region
        _
      $region20: #{block_forward.4} parent=11 // pred_fallthru
        _
    $region12: #{block_forward.4} parent=5 // pred_fallthru
      _
    %p205 = scmp.lt.s32.totalorder %s12, 2
    // Predicated region
    $region21: #{block_forward.4} parent=5 // pred_check
      %p206 = pneg %p205
    $region22: #{block_forward.4} parent=5 // pred_check_branch
      %208 = sbr.rel (%p206) target = $region24
    $region23: #{block_forward.4} parent=5 // pred_region
      // Predicated region
      $region25: #{block_forward.4} parent=23 // pred_check
        %p209 = pneg %p32
      $region26: #{block_forward.4} parent=23 // pred_check_branch
        %211 = sbr.rel (%p209) target = $region28
      $region27: #{block_forward.4} parent=23 // pred_region
        %p212 = scmp.lt.s32.totalorder %s12, 1
        %s213 = scalar_select %p212, %s12, 1
        %s214 = smul.addr %s213, 16
        %s215 = smul.addr %s214, 8
        %s216 = scalar_lea.vmem %s0, %s215
      $region28: #{block_forward.4} parent=23 // pred_fallthru
        _
      // Predicated region
      $region29: #{block_forward.4} parent=23 // pred_check
        %p217 = pneg %p58
      $region30: #{block_forward.4} parent=23 // pred_check_branch
        %219 = sbr.rel (%p217) target = $region32
      $region31: #{block_forward.4} parent=23 // pred_region
        %p220 = scmp.lt.s32.totalorder %s12, 1
        %s221 = scalar_select %p220, %s12, 1
        %s222 = smul.addr %s221, 16
        %s223 = smul.addr %s222, 8
        %s224 = scalar_lea.vmem %s1, %s223
      $region32: #{block_forward.4} parent=23 // pred_fallthru
        _
      // Predicated region
      $region33: #{block_forward.4} parent=23 // pred_check
        %p225 = pneg %p84
      $region34: #{block_forward.4} parent=23 // pred_check_branch
        %227 = sbr.rel (%p225) target = $region36
      $region35: #{block_forward.4} parent=23 // pred_region
        %p228 = scmp.lt.s32.totalorder %s12, 1
        %s229 = scalar_select %p228, %s12, 1
        %s230 = smul.addr %s229, 16
        %s231 = smul.addr %s230, 8
        %s232 = scalar_lea.vmem %s2, %s231
      $region36: #{block_forward.4} parent=23 // pred_fallthru
        _
      // Predicated region
      $region37: #{block_forward.4} parent=23 // pred_check
        %p233 = pneg %p110
      $region38: #{block_forward.4} parent=23 // pred_check_branch
        %235 = sbr.rel (%p233) target = $region40
      $region39: #{block_forward.4} parent=23 // pred_region
        %p236 = scmp.lt.s32.totalorder %s12, 1
        %s237 = scalar_select %p236, %s12, 1
        %s238 = smul.addr %s237, 2
        %s239 = smul.addr %s238, 8
        %s240 = scalar_lea.vmem %s3, %s239
      $region40: #{block_forward.4} parent=23 // pred_fallthru
        _
    $region24: #{block_forward.4} parent=5 // pred_fallthru
      _
    %p241 = scmp.le.s32.totalorder 1, %s12
    %p242 = scmp.lt.s32.totalorder %s12, 3
    %p243 = pnand %p241, %p242
    %p244 = pneg %p243
    // Predicated region
    $region41: #{block_forward.4} parent=5 // pred_check
      _
    $region42: #{block_forward.4} parent=5 // pred_check_branch
      %246 = sbr.rel (%p243) target = $region44
    $region43: #{block_forward.4} parent=5 // pred_region
      %s247 = ssub.s32 %s12, 1
      %p248 = scmp.lt.s32.totalorder %s17, 1
      %s249 = scalar_select %p248, %s17, 1
      %s250 = smul.addr %s249, 16
      %s251 = smul.addr %s250, 8
      %s252 = scalar_lea.vmem %s0, %s251
      %p253 = pneg %p38
      %p254 = pneg %p35
      %p255 = scmp.lt.s32.totalorder %s17, 1
      %s256 = scalar_select %p255, %s17, 1
      %s257 = smul.addr %s256, 16
      %s258 = smul.addr %s257, 8
      %s259 = scalar_lea.vmem %s1, %s258
      %p260 = pneg %p64
      %p261 = pneg %p61
      %p262 = scmp.lt.s32.totalorder %s17, 1
      %s263 = scalar_select %p262, %s17, 1
      %s264 = smul.addr %s263, 16
      %s265 = smul.addr %s264, 8
      %s266 = scalar_lea.vmem %s2, %s265
      %p267 = pneg %p90
      %p268 = pneg %p87
      %p269 = scmp.lt.s32.totalorder %s17, 1
      %s270 = scalar_select %p269, %s17, 1
      %s271 = smul.addr %s270, 2
      %s272 = smul.addr %s271, 8
      %s273 = scalar_lea.vmem %s3, %s272
      %p274 = pneg %p116
      %p275 = pneg %p113
      %p276 = pneg %p137
      %p277 = pneg %p134
      %p278 = pneg %p158
      %p279 = pneg %p155
      %p280 = pneg %p184
      %p281 = pneg %p181
      %p282 = scmp.lt.s32.totalorder %s17, 1
      %s283 = scalar_select %p282, %s17, 1
      %s284 = smul.addr %s283, 2
      %s285 = smul.addr %s284, 8
      %s286 = scalar_lea.vmem %s6, %s285
      %p287 = scmp.lt.s32.totalorder %s17, 1
      %s288 = scalar_select %p287, %s17, 1
      %s289 = smul.addr %s288, 16
      %s290 = smul.addr %s289, 8
      %s291 = scalar_lea.vmem %s0, %s290
      %p292 = scmp.lt.s32.totalorder %s17, 1
      %s293 = scalar_select %p292, %s17, 1
      %s294 = smul.addr %s293, 16
      %s295 = smul.addr %s294, 8
      %s296 = scalar_lea.vmem %s1, %s295
      %p297 = scmp.lt.s32.totalorder %s17, 1
      %s298 = scalar_select %p297, %s17, 1
      %s299 = smul.addr %s298, 16
      %s300 = smul.addr %s299, 8
      %s301 = scalar_lea.vmem %s2, %s300
      %p302 = scmp.lt.s32.totalorder %s17, 1
      %s303 = scalar_select %p302, %s17, 1
      %s304 = smul.addr %s303, 2
      %s305 = smul.addr %s304, 8
      %s306 = scalar_lea.vmem %s3, %s305
      %p307 = scmp.lt.s32.totalorder %s17, 1
      %s308 = scalar_select %p307, %s17, 1
      %s309 = smul.addr %s308, 2
      %s310 = smul.addr %s309, 8
      %s311 = scalar_lea.vmem %s6, %s310
      %v312 = vld [vmem:[%s291] sm:$0xff]
      %v313 = vld [vmem:[%s291 + $0x8] sm:$0xff]
      %v314 = vld [vmem:[%s291 + $0x10] sm:$0xff]
      %v315 = vld [vmem:[%s291 + $0x18] sm:$0xff]
      %v316 = vld [vmem:[%s291 + $0x20] sm:$0xff]
      %v317 = vld [vmem:[%s291 + $0x28] sm:$0xff]
      %v318 = vld [vmem:[%s291 + $0x30] sm:$0xff]
      %v319 = vld [vmem:[%s291 + $0x38] sm:$0xff]
      %v320 = vld [vmem:[%s291 + $0x40] sm:$0xff]
      %v321 = vld [vmem:[%s291 + $0x48] sm:$0xff]
      %v322 = vld [vmem:[%s291 + $0x50] sm:$0xff]
      %v323 = vld [vmem:[%s291 + $0x58] sm:$0xff]
      %v324 = vld [vmem:[%s291 + $0x60] sm:$0xff]
      %v325 = vld [vmem:[%s291 + $0x68] sm:$0xff]
      %v326 = vld [vmem:[%s291 + $0x70] sm:$0xff]
      %v327 = vld [vmem:[%s291 + $0x78] sm:$0xff]
      %v328 = vld [vmem:[%s296] sm:$0xff]
      %v329 = vld [vmem:[%s296 + $0x8] sm:$0xff]
      %v330 = vld [vmem:[%s296 + $0x10] sm:$0xff]
      %v331 = vld [vmem:[%s296 + $0x18] sm:$0xff]
      %v332 = vld [vmem:[%s296 + $0x20] sm:$0xff]
      %v333 = vld [vmem:[%s296 + $0x28] sm:$0xff]
      %v334 = vld [vmem:[%s296 + $0x30] sm:$0xff]
      %v335 = vld [vmem:[%s296 + $0x38] sm:$0xff]
      %v336 = vld [vmem:[%s296 + $0x40] sm:$0xff]
      %v337 = vld [vmem:[%s296 + $0x48] sm:$0xff]
      %v338 = vld [vmem:[%s296 + $0x50] sm:$0xff]
      %v339 = vld [vmem:[%s296 + $0x58] sm:$0xff]
      %v340 = vld [vmem:[%s296 + $0x60] sm:$0xff]
      %v341 = vld [vmem:[%s296 + $0x68] sm:$0xff]
      %v342 = vld [vmem:[%s296 + $0x70] sm:$0xff]
      %v343 = vld [vmem:[%s296 + $0x78] sm:$0xff]
      %v344 = vld [vmem:[%s301] sm:$0xff]
      %v345 = vld [vmem:[%s301 + $0x8] sm:$0xff]
      %v346 = vld [vmem:[%s301 + $0x10] sm:$0xff]
      %v347 = vld [vmem:[%s301 + $0x18] sm:$0xff]
      %v348 = vld [vmem:[%s301 + $0x20] sm:$0xff]
      %v349 = vld [vmem:[%s301 + $0x28] sm:$0xff]
      %v350 = vld [vmem:[%s301 + $0x30] sm:$0xff]
      %v351 = vld [vmem:[%s301 + $0x38] sm:$0xff]
      %v352 = vld [vmem:[%s301 + $0x40] sm:$0xff]
      %v353 = vld [vmem:[%s301 + $0x48] sm:$0xff]
      %v354 = vld [vmem:[%s301 + $0x50] sm:$0xff]
      %v355 = vld [vmem:[%s301 + $0x58] sm:$0xff]
      %v356 = vld [vmem:[%s301 + $0x60] sm:$0xff]
      %v357 = vld [vmem:[%s301 + $0x68] sm:$0xff]
      %v358 = vld [vmem:[%s301 + $0x70] sm:$0xff]
      %v359 = vld [vmem:[%s301 + $0x78] sm:$0xff]
      %vm360 = vcmask 130048
      %v362 = vsel %vm360, %v312, 0
      %v365 = vsel %vm360, %v313, 0
      %v368 = vsel %vm360, %v328, 0
      %v371 = vsel %vm360, %v329, 0
      %373 = vmatprep.subr.mxu0 0.0
      %374 = vmatpush1.xpose.msra.mxu0 %v368
      %375 = vmatprep.subr.mxu0 0.0
      %376 = vmatpush1.xpose.msra.mxu0 %v371
      %377 = vmatprep.subr.mxu0 0.0
      %378 = vmatpush1.xpose.msra.mxu0 0.0
      %379 = vmatprep.subr.mxu0 0.0
      %380 = vmatpush1.xpose.msra.mxu0 0.0
      %381 = vmatprep.subr.mxu0 0.0
      %382 = vmatpush1.xpose.msra.mxu0 0.0
      %383 = vmatprep.subr.mxu0 0.0
      %384 = vmatpush1.xpose.msra.mxu0 0.0
      %385 = vmatprep.subr.mxu0 0.0
      %386 = vmatpush1.xpose.msra.mxu0 0.0
      %387 = vmatprep.subr.mxu0 0.0
      %388 = vmatpush1.xpose.msra.mxu0 0.0
      %389 = vmatprep.subr.mxu0 0.0
      %390 = vmatpush1.xpose.msra.mxu0 0.0
      %391 = vmatprep.subr.mxu0 0.0
      %392 = vmatpush1.xpose.msra.mxu0 0.0
      %393 = vmatprep.subr.mxu0 0.0
      %394 = vmatpush1.xpose.msra.mxu0 0.0
      %395 = vmatprep.subr.mxu0 0.0
      %396 = vmatpush1.xpose.msra.mxu0 0.0
      %397 = vmatprep.subr.mxu0 0.0
      %398 = vmatpush1.xpose.msra.mxu0 0.0
      %399 = vmatprep.subr.mxu0 0.0
      %400 = vmatpush1.xpose.msra.mxu0 0.0
      %401 = vmatprep.subr.mxu0 0.0
      %402 = vmatpush1.xpose.msra.mxu0 0.0
      %403 = vmatprep.subr.mxu0 0.0
      %404 = vmatpush1.xpose.msra.mxu0 0.0
      %405 = vmatprep.subr.mxu0 0.0
      %406 = vmatpush1.xpose.msra.mxu0 0.0
      %407 = vmatprep.subr.mxu0 0.0
      %408 = vmatpush1.xpose.msra.mxu0 0.0
      %409 = vmatprep.subr.mxu0 0.0
      %410 = vmatpush1.xpose.msra.mxu0 0.0
      %411 = vmatprep.subr.mxu0 0.0
      %412 = vmatpush1.xpose.msra.mxu0 0.0
      %413 = vmatprep.subr.mxu0 0.0
      %414 = vmatpush1.xpose.msra.mxu0 0.0
      %415 = vmatprep.subr.mxu0 0.0
      %416 = vmatpush1.xpose.msra.mxu0 0.0
      %417 = vmatprep.subr.mxu0 0.0
      %418 = vmatpush1.xpose.msra.mxu0 0.0
      %419 = vmatprep.subr.mxu0 0.0
      %420 = vmatpush1.xpose.msra.mxu0 0.0
      %421 = vmatprep.subr.mxu0 0.0
      %422 = vmatpush1.xpose.msra.mxu0 0.0
      %423 = vmatprep.subr.mxu0 0.0
      %424 = vmatpush1.xpose.msra.mxu0 0.0
      %425 = vmatprep.subr.mxu0 0.0
      %426 = vmatpush1.xpose.msra.mxu0 0.0
      %427 = vmatprep.subr.mxu0 0.0
      %428 = vmatpush1.xpose.msra.mxu0 0.0
      %429 = vmatprep.subr.mxu0 0.0
      %430 = vmatpush1.xpose.msra.mxu0 0.0
      %431 = vmatprep.subr.mxu0 0.0
      %432 = vmatpush1.xpose.msra.mxu0 0.0
      %433 = vmatprep.subr.mxu0 0.0
      %434 = vmatpush1.xpose.msra.mxu0 0.0
      %435 = vmatprep.subr.mxu0 0.0
      %436 = vmatpush1.xpose.msra.mxu0 0.0
      %437 = vmatprep.mubr.f32.mxu0 0.0
      %438 = vmatmul.mubr.f32.gmra.mrb[0].mxu0 %v362
      %v439 = vpop.f32.mrb[0].mxu0
      %v440 = vadd.f32 0.0, %v439
      %v441 = vpop.f32.mrb[0].mxu0
      %442 = vmatprep.mubr.f32.mxu0 0.0
      %443 = vmatmul.mubr.f32.gmra.mrb[0].mxu0 %v365
      %v444 = vpop.f32.mrb[0].mxu0
      %v445 = vadd.f32 0.0, %v444
      %v446 = vpop.f32.mrb[0].mxu0
      %447 = vdwg.mxu0
      %v449 = vsel %vm360, %v314, 0
      %v452 = vsel %vm360, %v315, 0
      %v455 = vsel %vm360, %v330, 0
      %v458 = vsel %vm360, %v331, 0
      %460 = vmatprep.subr.mxu0 0.0
      %461 = vmatpush1.xpose.msra.mxu0 %v455
      %462 = vmatprep.subr.mxu0 0.0
      %463 = vmatpush1.xpose.msra.mxu0 %v458
      %464 = vmatprep.subr.mxu0 0.0
      %465 = vmatpush1.xpose.msra.mxu0 0.0
      %466 = vmatprep.subr.mxu0 0.0
      %467 = vmatpush1.xpose.msra.mxu0 0.0
      %468 = vmatprep.subr.mxu0 0.0
      %469 = vmatpush1.xpose.msra.mxu0 0.0
      %470 = vmatprep.subr.mxu0 0.0
      %471 = vmatpush1.xpose.msra.mxu0 0.0
      %472 = vmatprep.subr.mxu0 0.0
      %473 = vmatpush1.xpose.msra.mxu0 0.0
      %474 = vmatprep.subr.mxu0 0.0
      %475 = vmatpush1.xpose.msra.mxu0 0.0
      %476 = vmatprep.subr.mxu0 0.0
      %477 = vmatpush1.xpose.msra.mxu0 0.0
      %478 = vmatprep.subr.mxu0 0.0
      %479 = vmatpush1.xpose.msra.mxu0 0.0
      %480 = vmatprep.subr.mxu0 0.0
      %481 = vmatpush1.xpose.msra.mxu0 0.0
      %482 = vmatprep.subr.mxu0 0.0
      %483 = vmatpush1.xpose.msra.mxu0 0.0
      %484 = vmatprep.subr.mxu0 0.0
      %485 = vmatpush1.xpose.msra.mxu0 0.0
      %486 = vmatprep.subr.mxu0 0.0
      %487 = vmatpush1.xpose.msra.mxu0 0.0
      %488 = vmatprep.subr.mxu0 0.0
      %489 = vmatpush1.xpose.msra.mxu0 0.0
      %490 = vmatprep.subr.mxu0 0.0
      %491 = vmatpush1.xpose.msra.mxu0 0.0
      %492 = vmatprep.subr.mxu0 0.0
      %493 = vmatpush1.xpose.msra.mxu0 0.0
      %494 = vmatprep.subr.mxu0 0.0
      %495 = vmatpush1.xpose.msra.mxu0 0.0
      %496 = vmatprep.subr.mxu0 0.0
      %497 = vmatpush1.xpose.msra.mxu0 0.0
      %498 = vmatprep.subr.mxu0 0.0
      %499 = vmatpush1.xpose.msra.mxu0 0.0
      %500 = vmatprep.subr.mxu0 0.0
      %501 = vmatpush1.xpose.msra.mxu0 0.0
      %502 = vmatprep.subr.mxu0 0.0
      %503 = vmatpush1.xpose.msra.mxu0 0.0
      %504 = vmatprep.subr.mxu0 0.0
      %505 = vmatpush1.xpose.msra.mxu0 0.0
      %506 = vmatprep.subr.mxu0 0.0
      %507 = vmatpush1.xpose.msra.mxu0 0.0
      %508 = vmatprep.subr.mxu0 0.0
      %509 = vmatpush1.xpose.msra.mxu0 0.0
      %510 = vmatprep.subr.mxu0 0.0
      %511 = vmatpush1.xpose.msra.mxu0 0.0
      %512 = vmatprep.subr.mxu0 0.0
      %513 = vmatpush1.xpose.msra.mxu0 0.0
      %514 = vmatprep.subr.mxu0 0.0
      %515 = vmatpush1.xpose.msra.mxu0 0.0
      %516 = vmatprep.subr.mxu0 0.0
      %517 = vmatpush1.xpose.msra.mxu0 0.0
      %518 = vmatprep.subr.mxu0 0.0
      %519 = vmatpush1.xpose.msra.mxu0 0.0
      %520 = vmatprep.subr.mxu0 0.0
      %521 = vmatpush1.xpose.msra.mxu0 0.0
      %522 = vmatprep.subr.mxu0 0.0
      %523 = vmatpush1.xpose.msra.mxu0 0.0
      %524 = vmatprep.mubr.f32.mxu0 0.0
      %525 = vmatmul.mubr.f32.gmra.mrb[0].mxu0 %v449
      %v526 = vpop.f32.mrb[0].mxu0
      %v527 = vadd.f32 0.0, %v526
      %v528 = vpop.f32.mrb[0].mxu0
      %529 = vmatprep.mubr.f32.mxu0 0.0
      %530 = vmatmul.mubr.f32.gmra.mrb[0].mxu0 %v452
      %v531 = vpop.f32.mrb[0].mxu0
      %v532 = vadd.f32 0.0, %v531
      %v533 = vpop.f32.mrb[0].mxu0
      %534 = vdwg.mxu0
      %v536 = vsel %vm360, %v316, 0
      %v539 = vsel %vm360, %v317, 0
      %v542 = vsel %vm360, %v332, 0
      %v545 = vsel %vm360, %v333, 0
      %547 = vmatprep.subr.mxu0 0.0
      %548 = vmatpush1.xpose.msra.mxu0 %v542
      %549 = vmatprep.subr.mxu0 0.0
      %550 = vmatpush1.xpose.msra.mxu0 %v545
      %551 = vmatprep.subr.mxu0 0.0
      %552 = vmatpush1.xpose.msra.mxu0 0.0
      %553 = vmatprep.subr.mxu0 0.0
      %554 = vmatpush1.xpose.msra.mxu0 0.0
      %555 = vmatprep.subr.mxu0 0.0
      %556 = vmatpush1.xpose.msra.mxu0 0.0
      %557 = vmatprep.subr.mxu0 0.0
      %558 = vmatpush1.xpose.msra.mxu0 0.0
      %559 = vmatprep.subr.mxu0 0.0
      %560 = vmatpush1.xpose.msra.mxu0 0.0
      %561 = vmatprep.subr.mxu0 0.0
      %562 = vmatpush1.xpose.msra.mxu0 0.0
      %563 = vmatprep.subr.mxu0 0.0
      %564 = vmatpush1.xpose.msra.mxu0 0.0
      %565 = vmatprep.subr.mxu0 0.0
      %566 = vmatpush1.xpose.msra.mxu0 0.0
      %567 = vmatprep.subr.mxu0 0.0
      %568 = vmatpush1.xpose.msra.mxu0 0.0
      %569 = vmatprep.subr.mxu0 0.0
      %570 = vmatpush1.xpose.msra.mxu0 0.0
      %571 = vmatprep.subr.mxu0 0.0
      %572 = vmatpush1.xpose.msra.mxu0 0.0
      %573 = vmatprep.subr.mxu0 0.0
      %574 = vmatpush1.xpose.msra.mxu0 0.0
      %575 = vmatprep.subr.mxu0 0.0
      %576 = vmatpush1.xpose.msra.mxu0 0.0
      %577 = vmatprep.subr.mxu0 0.0
      %578 = vmatpush1.xpose.msra.mxu0 0.0
      %579 = vmatprep.subr.mxu0 0.0
      %580 = vmatpush1.xpose.msra.mxu0 0.0
      %581 = vmatprep.subr.mxu0 0.0
      %582 = vmatpush1.xpose.msra.mxu0 0.0
      %583 = vmatprep.subr.mxu0 0.0
      %584 = vmatpush1.xpose.msra.mxu0 0.0
      %585 = vmatprep.subr.mxu0 0.0
      %586 = vmatpush1.xpose.msra.mxu0 0.0
      %587 = vmatprep.subr.mxu0 0.0
      %588 = vmatpush1.xpose.msra.mxu0 0.0
      %589 = vmatprep.subr.mxu0 0.0
      %590 = vmatpush1.xpose.msra.mxu0 0.0
      %591 = vmatprep.subr.mxu0 0.0
      %592 = vmatpush1.xpose.msra.mxu0 0.0
      %593 = vmatprep.subr.mxu0 0.0
      %594 = vmatpush1.xpose.msra.mxu0 0.0
      %595 = vmatprep.subr.mxu0 0.0
      %596 = vmatpush1.xpose.msra.mxu0 0.0
      %597 = vmatprep.subr.mxu0 0.0
      %598 = vmatpush1.xpose.msra.mxu0 0.0
      %599 = vmatprep.subr.mxu0 0.0
      %600 = vmatpush1.xpose.msra.mxu0 0.0
      %601 = vmatprep.subr.mxu0 0.0
      %602 = vmatpush1.xpose.msra.mxu0 0.0
      %603 = vmatprep.subr.mxu0 0.0
      %604 = vmatpush1.xpose.msra.mxu0 0.0
      %605 = vmatprep.subr.mxu0 0.0
      %606 = vmatpush1.xpose.msra.mxu0 0.0
      %607 = vmatprep.subr.mxu0 0.0
      %608 = vmatpush1.xpose.msra.mxu0 0.0
      %609 = vmatprep.subr.mxu0 0.0
      %610 = vmatpush1.xpose.msra.mxu0 0.0
      %611 = vmatprep.mubr.f32.mxu0 0.0
      %612 = vmatmul.mubr.f32.gmra.mrb[0].mxu0 %v536
      %v613 = vpop.f32.mrb[0].mxu0
      %v614 = vadd.f32 0.0, %v613
      %v615 = vpop.f32.mrb[0].mxu0
      %616 = vmatprep.mubr.f32.mxu0 0.0
      %617 = vmatmul.mubr.f32.gmra.mrb[0].mxu0 %v539
      %v618 = vpop.f32.mrb[0].mxu0
      %v619 = vadd.f32 0.0, %v618
      %v620 = vpop.f32.mrb[0].mxu0
      %621 = vdwg.mxu0
      %v623 = vsel %vm360, %v318, 0
      %v626 = vsel %vm360, %v319, 0
      %v629 = vsel %vm360, %v334, 0
      %v632 = vsel %vm360, %v335, 0
      %634 = vmatprep.subr.mxu0 0.0
      %635 = vmatpush1.xpose.msra.mxu0 %v629
      %636 = vmatprep.subr.mxu0 0.0
      %637 = vmatpush1.xpose.msra.mxu0 %v632
      %638 = vmatprep.subr.mxu0 0.0
      %639 = vmatpush1.xpose.msra.mxu0 0.0
      %640 = vmatprep.subr.mxu0 0.0
      %641 = vmatpush1.xpose.msra.mxu0 0.0
      %642 = vmatprep.subr.mxu0 0.0
      %643 = vmatpush1.xpose.msra.mxu0 0.0
      %644 = vmatprep.subr.mxu0 0.0
      %645 = vmatpush1.xpose.msra.mxu0 0.0
      %646 = vmatprep.subr.mxu0 0.0
      %647 = vmatpush1.xpose.msra.mxu0 0.0
      %648 = vmatprep.subr.mxu0 0.0
      %649 = vmatpush1.xpose.msra.mxu0 0.0
      %650 = vmatprep.subr.mxu0 0.0
      %651 = vmatpush1.xpose.msra.mxu0 0.0
      %652 = vmatprep.subr.mxu0 0.0
      %653 = vmatpush1.xpose.msra.mxu0 0.0
      %654 = vmatprep.subr.mxu0 0.0
      %655 = vmatpush1.xpose.msra.mxu0 0.0
      %656 = vmatprep.subr.mxu0 0.0
      %657 = vmatpush1.xpose.msra.mxu0 0.0
      %658 = vmatprep.subr.mxu0 0.0
      %659 = vmatpush1.xpose.msra.mxu0 0.0
      %660 = vmatprep.subr.mxu0 0.0
      %661 = vmatpush1.xpose.msra.mxu0 0.0
      %662 = vmatprep.subr.mxu0 0.0
      %663 = vmatpush1.xpose.msra.mxu0 0.0
      %664 = vmatprep.subr.mxu0 0.0
      %665 = vmatpush1.xpose.msra.mxu0 0.0
      %666 = vmatprep.subr.mxu0 0.0
      %667 = vmatpush1.xpose.msra.mxu0 0.0
      %668 = vmatprep.subr.mxu0 0.0
      %669 = vmatpush1.xpose.msra.mxu0 0.0
      %670 = vmatprep.subr.mxu0 0.0
      %671 = vmatpush1.xpose.msra.mxu0 0.0
      %672 = vmatprep.subr.mxu0 0.0
      %673 = vmatpush1.xpose.msra.mxu0 0.0
      %674 = vmatprep.subr.mxu0 0.0
      %675 = vmatpush1.xpose.msra.mxu0 0.0
      %676 = vmatprep.subr.mxu0 0.0
      %677 = vmatpush1.xpose.msra.mxu0 0.0
      %678 = vmatprep.subr.mxu0 0.0
      %679 = vmatpush1.xpose.msra.mxu0 0.0
      %680 = vmatprep.subr.mxu0 0.0
      %681 = vmatpush1.xpose.msra.mxu0 0.0
      %682 = vmatprep.subr.mxu0 0.0
      %683 = vmatpush1.xpose.msra.mxu0 0.0
      %684 = vmatprep.subr.mxu0 0.0
      %685 = vmatpush1.xpose.msra.mxu0 0.0
      %686 = vmatprep.subr.mxu0 0.0
      %687 = vmatpush1.xpose.msra.mxu0 0.0
      %688 = vmatprep.subr.mxu0 0.0
      %689 = vmatpush1.xpose.msra.mxu0 0.0
      %690 = vmatprep.subr.mxu0 0.0
      %691 = vmatpush1.xpose.msra.mxu0 0.0
      %692 = vmatprep.subr.mxu0 0.0
      %693 = vmatpush1.xpose.msra.mxu0 0.0
      %694 = vmatprep.subr.mxu0 0.0
      %695 = vmatpush1.xpose.msra.mxu0 0.0
      %696 = vmatprep.subr.mxu0 0.0
      %697 = vmatpush1.xpose.msra.mxu0 0.0
      %698 = vmatprep.mubr.f32.mxu0 0.0
      %699 = vmatmul.mubr.f32.gmra.mrb[0].mxu0 %v623
      %v700 = vpop.f32.mrb[0].mxu0
      %v701 = vadd.f32 0.0, %v700
      %v702 = vpop.f32.mrb[0].mxu0
      %703 = vmatprep.mubr.f32.mxu0 0.0
      %704 = vmatmul.mubr.f32.gmra.mrb[0].mxu0 %v626
      %v705 = vpop.f32.mrb[0].mxu0
      %v706 = vadd.f32 0.0, %v705
      %v707 = vpop.f32.mrb[0].mxu0
      %708 = vdwg.mxu0
      %v710 = vsel %vm360, %v320, 0
      %v713 = vsel %vm360, %v321, 0
      %v716 = vsel %vm360, %v336, 0
      %v719 = vsel %vm360, %v337, 0
      %721 = vmatprep.subr.mxu0 0.0
      %722 = vmatpush1.xpose.msra.mxu0 %v716
      %723 = vmatprep.subr.mxu0 0.0
      %724 = vmatpush1.xpose.msra.mxu0 %v719
      %725 = vmatprep.subr.mxu0 0.0
      %726 = vmatpush1.xpose.msra.mxu0 0.0
      %727 = vmatprep.subr.mxu0 0.0
      %728 = vmatpush1.xpose.msra.mxu0 0.0
      %729 = vmatprep.subr.mxu0 0.0
      %730 = vmatpush1.xpose.msra.mxu0 0.0
      %731 = vmatprep.subr.mxu0 0.0
      %732 = vmatpush1.xpose.msra.mxu0 0.0
      %733 = vmatprep.subr.mxu0 0.0
      %734 = vmatpush1.xpose.msra.mxu0 0.0
      %735 = vmatprep.subr.mxu0 0.0
      %736 = vmatpush1.xpose.msra.mxu0 0.0
      %737 = vmatprep.subr.mxu0 0.0
      %738 = vmatpush1.xpose.msra.mxu0 0.0
      %739 = vmatprep.subr.mxu0 0.0
      %740 = vmatpush1.xpose.msra.mxu0 0.0
      %741 = vmatprep.subr.mxu0 0.0
      %742 = vmatpush1.xpose.msra.mxu0 0.0
      %743 = vmatprep.subr.mxu0 0.0
      %744 = vmatpush1.xpose.msra.mxu0 0.0
      %745 = vmatprep.subr.mxu0 0.0
      %746 = vmatpush1.xpose.msra.mxu0 0.0
      %747 = vmatprep.subr.mxu0 0.0
      %748 = vmatpush1.xpose.msra.mxu0 0.0
      %749 = vmatprep.subr.mxu0 0.0
      %750 = vmatpush1.xpose.msra.mxu0 0.0
      %751 = vmatprep.subr.mxu0 0.0
      %752 = vmatpush1.xpose.msra.mxu0 0.0
      %753 = vmatprep.subr.mxu0 0.0
      %754 = vmatpush1.xpose.msra.mxu0 0.0
      %755 = vmatprep.subr.mxu0 0.0
      %756 = vmatpush1.xpose.msra.mxu0 0.0
      %757 = vmatprep.subr.mxu0 0.0
      %758 = vmatpush1.xpose.msra.mxu0 0.0
      %759 = vmatprep.subr.mxu0 0.0
      %760 = vmatpush1.xpose.msra.mxu0 0.0
      %761 = vmatprep.subr.mxu0 0.0
      %762 = vmatpush1.xpose.msra.mxu0 0.0
      %763 = vmatprep.subr.mxu0 0.0
      %764 = vmatpush1.xpose.msra.mxu0 0.0
      %765 = vmatprep.subr.mxu0 0.0
      %766 = vmatpush1.xpose.msra.mxu0 0.0
      %767 = vmatprep.subr.mxu0 0.0
      %768 = vmatpush1.xpose.msra.mxu0 0.0
      %769 = vmatprep.subr.mxu0 0.0
      %770 = vmatpush1.xpose.msra.mxu0 0.0
      %771 = vmatprep.subr.mxu0 0.0
      %772 = vmatpush1.xpose.msra.mxu0 0.0
      %773 = vmatprep.subr.mxu0 0.0
      %774 = vmatpush1.xpose.msra.mxu0 0.0
      %775 = vmatprep.subr.mxu0 0.0
      %776 = vmatpush1.xpose.msra.mxu0 0.0
      %777 = vmatprep.subr.mxu0 0.0
      %778 = vmatpush1.xpose.msra.mxu0 0.0
      %779 = vmatprep.subr.mxu0 0.0
      %780 = vmatpush1.xpose.msra.mxu0 0.0
      %781 = vmatprep.subr.mxu0 0.0
      %782 = vmatpush1.xpose.msra.mxu0 0.0
      %783 = vmatprep.subr.mxu0 0.0
      %784 = vmatpush1.xpose.msra.mxu0 0.0
      %785 = vmatprep.mubr.f32.mxu0 0.0
      %786 = vmatmul.mubr.f32.gmra.mrb[0].mxu0 %v710
      %v787 = vpop.f32.mrb[0].mxu0
      %v788 = vadd.f32 0.0, %v787
      %v789 = vpop.f32.mrb[0].mxu0
      %790 = vmatprep.mubr.f32.mxu0 0.0
      %791 = vmatmul.mubr.f32.gmra.mrb[0].mxu0 %v713
      %v792 = vpop.f32.mrb[0].mxu0
      %v793 = vadd.f32 0.0, %v792
      %v794 = vpop.f32.mrb[0].mxu0
      %795 = vdwg.mxu0
      %v797 = vsel %vm360, %v322, 0
      %v800 = vsel %vm360, %v323, 0
      %v803 = vsel %vm360, %v338, 0
      %v806 = vsel %vm360, %v339, 0
      %808 = vmatprep.subr.mxu0 0.0
      %809 = vmatpush1.xpose.msra.mxu0 %v803
      %810 = vmatprep.subr.mxu0 0.0
      %811 = vmatpush1.xpose.msra.mxu0 %v806
      %812 = vmatprep.subr.mxu0 0.0
      %813 = vmatpush1.xpose.msra.mxu0 0.0
      %814 = vmatprep.subr.mxu0 0.0
      %815 = vmatpush1.xpose.msra.mxu0 0.0
      %816 = vmatprep.subr.mxu0 0.0
      %817 = vmatpush1.xpose.msra.mxu0 0.0
      %818 = vmatprep.subr.mxu0 0.0
      %819 = vmatpush1.xpose.msra.mxu0 0.0
      %820 = vmatprep.subr.mxu0 0.0
      %821 = vmatpush1.xpose.msra.mxu0 0.0
      %822 = vmatprep.subr.mxu0 0.0
      %823 = vmatpush1.xpose.msra.mxu0 0.0
      %824 = vmatprep.subr.mxu0 0.0
      %825 = vmatpush1.xpose.msra.mxu0 0.0
      %826 = vmatprep.subr.mxu0 0.0
      %827 = vmatpush1.xpose.msra.mxu0 0.0
      %828 = vmatprep.subr.mxu0 0.0
      %829 = vmatpush1.xpose.msra.mxu0 0.0
      %830 = vmatprep.subr.mxu0 0.0
      %831 = vmatpush1.xpose.msra.mxu0 0.0
      %832 = vmatprep.subr.mxu0 0.0
      %833 = vmatpush1.xpose.msra.mxu0 0.0
      %834 = vmatprep.subr.mxu0 0.0
      %835 = vmatpush1.xpose.msra.mxu0 0.0
      %836 = vmatprep.subr.mxu0 0.0
      %837 = vmatpush1.xpose.msra.mxu0 0.0
      %838 = vmatprep.subr.mxu0 0.0
      %839 = vmatpush1.xpose.msra.mxu0 0.0
      %840 = vmatprep.subr.mxu0 0.0
      %841 = vmatpush1.xpose.msra.mxu0 0.0
      %842 = vmatprep.subr.mxu0 0.0
      %843 = vmatpush1.xpose.msra.mxu0 0.0
      %844 = vmatprep.subr.mxu0 0.0
      %845 = vmatpush1.xpose.msra.mxu0 0.0
      %846 = vmatprep.subr.mxu0 0.0
      %847 = vmatpush1.xpose.msra.mxu0 0.0
      %848 = vmatprep.subr.mxu0 0.0
      %849 = vmatpush1.xpose.msra.mxu0 0.0
      %850 = vmatprep.subr.mxu0 0.0
      %851 = vmatpush1.xpose.msra.mxu0 0.0
      %852 = vmatprep.subr.mxu0 0.0
      %853 = vmatpush1.xpose.msra.mxu0 0.0
      %854 = vmatprep.subr.mxu0 0.0
      %855 = vmatpush1.xpose.msra.mxu0 0.0
      %856 = vmatprep.subr.mxu0 0.0
      %857 = vmatpush1.xpose.msra.mxu0 0.0
      %858 = vmatprep.subr.mxu0 0.0
      %859 = vmatpush1.xpose.msra.mxu0 0.0
      %860 = vmatprep.subr.mxu0 0.0
      %861 = vmatpush1.xpose.msra.mxu0 0.0
      %862 = vmatprep.subr.mxu0 0.0
      %863 = vmatpush1.xpose.msra.mxu0 0.0
      %864 = vmatprep.subr.mxu0 0.0
      %865 = vmatpush1.xpose.msra.mxu0 0.0
      %866 = vmatprep.subr.mxu0 0.0
      %867 = vmatpush1.xpose.msra.mxu0 0.0
      %868 = vmatprep.subr.mxu0 0.0
      %869 = vmatpush1.xpose.msra.mxu0 0.0
      %870 = vmatprep.subr.mxu0 0.0
      %871 = vmatpush1.xpose.msra.mxu0 0.0
      %872 = vmatprep.mubr.f32.mxu0 0.0
      %873 = vmatmul.mubr.f32.gmra.mrb[0].mxu0 %v797
      %v874 = vpop.f32.mrb[0].mxu0
      %v875 = vadd.f32 0.0, %v874
      %v876 = vpop.f32.mrb[0].mxu0
      %877 = vmatprep.mubr.f32.mxu0 0.0
      %878 = vmatmul.mubr.f32.gmra.mrb[0].mxu0 %v800
      %v879 = vpop.f32.mrb[0].mxu0
      %v880 = vadd.f32 0.0, %v879
      %v881 = vpop.f32.mrb[0].mxu0
      %882 = vdwg.mxu0
      %v884 = vsel %vm360, %v324, 0
      %v887 = vsel %vm360, %v325, 0
      %v890 = vsel %vm360, %v340, 0
      %v893 = vsel %vm360, %v341, 0
      %895 = vmatprep.subr.mxu0 0.0
      %896 = vmatpush1.xpose.msra.mxu0 %v890
      %897 = vmatprep.subr.mxu0 0.0
      %898 = vmatpush1.xpose.msra.mxu0 %v893
      %899 = vmatprep.subr.mxu0 0.0
      %900 = vmatpush1.xpose.msra.mxu0 0.0
      %901 = vmatprep.subr.mxu0 0.0
      %902 = vmatpush1.xpose.msra.mxu0 0.0
      %903 = vmatprep.subr.mxu0 0.0
      %904 = vmatpush1.xpose.msra.mxu0 0.0
      %905 = vmatprep.subr.mxu0 0.0
      %906 = vmatpush1.xpose.msra.mxu0 0.0
      %907 = vmatprep.subr.mxu0 0.0
      %908 = vmatpush1.xpose.msra.mxu0 0.0
      %909 = vmatprep.subr.mxu0 0.0
      %910 = vmatpush1.xpose.msra.mxu0 0.0
      %911 = vmatprep.subr.mxu0 0.0
      %912 = vmatpush1.xpose.msra.mxu0 0.0
      %913 = vmatprep.subr.mxu0 0.0
      %914 = vmatpush1.xpose.msra.mxu0 0.0
      %915 = vmatprep.subr.mxu0 0.0
      %916 = vmatpush1.xpose.msra.mxu0 0.0
      %917 = vmatprep.subr.mxu0 0.0
      %918 = vmatpush1.xpose.msra.mxu0 0.0
      %919 = vmatprep.subr.mxu0 0.0
      %920 = vmatpush1.xpose.msra.mxu0 0.0
      %921 = vmatprep.subr.mxu0 0.0
      %922 = vmatpush1.xpose.msra.mxu0 0.0
      %923 = vmatprep.subr.mxu0 0.0
      %924 = vmatpush1.xpose.msra.mxu0 0.0
      %925 = vmatprep.subr.mxu0 0.0
      %926 = vmatpush1.xpose.msra.mxu0 0.0
      %927 = vmatprep.subr.mxu0 0.0
      %928 = vmatpush1.xpose.msra.mxu0 0.0
      %929 = vmatprep.subr.mxu0 0.0
      %930 = vmatpush1.xpose.msra.mxu0 0.0
      %931 = vmatprep.subr.mxu0 0.0
      %932 = vmatpush1.xpose.msra.mxu0 0.0
      %933 = vmatprep.subr.mxu0 0.0
      %934 = vmatpush1.xpose.msra.mxu0 0.0
      %935 = vmatprep.subr.mxu0 0.0
      %936 = vmatpush1.xpose.msra.mxu0 0.0
      %937 = vmatprep.subr.mxu0 0.0
      %938 = vmatpush1.xpose.msra.mxu0 0.0
      %939 = vmatprep.subr.mxu0 0.0
      %940 = vmatpush1.xpose.msra.mxu0 0.0
      %941 = vmatprep.subr.mxu0 0.0
      %942 = vmatpush1.xpose.msra.mxu0 0.0
      %943 = vmatprep.subr.mxu0 0.0
      %944 = vmatpush1.xpose.msra.mxu0 0.0
      %945 = vmatprep.subr.mxu0 0.0
      %946 = vmatpush1.xpose.msra.mxu0 0.0
      %947 = vmatprep.subr.mxu0 0.0
      %948 = vmatpush1.xpose.msra.mxu0 0.0
      %949 = vmatprep.subr.mxu0 0.0
      %950 = vmatpush1.xpose.msra.mxu0 0.0
      %951 = vmatprep.subr.mxu0 0.0
      %952 = vmatpush1.xpose.msra.mxu0 0.0
      %953 = vmatprep.subr.mxu0 0.0
      %954 = vmatpush1.xpose.msra.mxu0 0.0
      %955 = vmatprep.subr.mxu0 0.0
      %956 = vmatpush1.xpose.msra.mxu0 0.0
      %957 = vmatprep.subr.mxu0 0.0
      %958 = vmatpush1.xpose.msra.mxu0 0.0
      %959 = vmatprep.mubr.f32.mxu0 0.0
      %960 = vmatmul.mubr.f32.gmra.mrb[0].mxu0 %v884
      %v961 = vpop.f32.mrb[0].mxu0
      %v962 = vadd.f32 0.0, %v961
      %v963 = vpop.f32.mrb[0].mxu0
      %964 = vmatprep.mubr.f32.mxu0 0.0
      %965 = vmatmul.mubr.f32.gmra.mrb[0].mxu0 %v887
      %v966 = vpop.f32.mrb[0].mxu0
      %v967 = vadd.f32 0.0, %v966
      %v968 = vpop.f32.mrb[0].mxu0
      %969 = vdwg.mxu0
      %v971 = vsel %vm360, %v326, 0
      %v974 = vsel %vm360, %v327, 0
      %v977 = vsel %vm360, %v342, 0
      %v980 = vsel %vm360, %v343, 0
      %982 = vmatprep.subr.mxu0 0.0
      %983 = vmatpush1.xpose.msra.mxu0 %v977
      %984 = vmatprep.subr.mxu0 0.0
      %985 = vmatpush1.xpose.msra.mxu0 %v980
      %986 = vmatprep.subr.mxu0 0.0
      %987 = vmatpush1.xpose.msra.mxu0 0.0
      %988 = vmatprep.subr.mxu0 0.0
      %989 = vmatpush1.xpose.msra.mxu0 0.0
      %990 = vmatprep.subr.mxu0 0.0
      %991 = vmatpush1.xpose.msra.mxu0 0.0
      %992 = vmatprep.subr.mxu0 0.0
      %993 = vmatpush1.xpose.msra.mxu0 0.0
      %994 = vmatprep.subr.mxu0 0.0
      %995 = vmatpush1.xpose.msra.mxu0 0.0
      %996 = vmatprep.subr.mxu0 0.0
      %997 = vmatpush1.xpose.msra.mxu0 0.0
      %998 = vmatprep.subr.mxu0 0.0
      %999 = vmatpush1.xpose.msra.mxu0 0.0
      %1000 = vmatprep.subr.mxu0 0.0
      %1001 = vmatpush1.xpose.msra.mxu0 0.0
      %1002 = vmatprep.subr.mxu0 0.0
      %1003 = vmatpush1.xpose.msra.mxu0 0.0
      %1004 = vmatprep.subr.mxu0 0.0
      %1005 = vmatpush1.xpose.msra.mxu0 0.0
      %1006 = vmatprep.subr.mxu0 0.0
      %1007 = vmatpush1.xpose.msra.mxu0 0.0
      %1008 = vmatprep.subr.mxu0 0.0
      %1009 = vmatpush1.xpose.msra.mxu0 0.0
      %1010 = vmatprep.subr.mxu0 0.0
      %1011 = vmatpush1.xpose.msra.mxu0 0.0
      %1012 = vmatprep.subr.mxu0 0.0
      %1013 = vmatpush1.xpose.msra.mxu0 0.0
      %1014 = vmatprep.subr.mxu0 0.0
      %1015 = vmatpush1.xpose.msra.mxu0 0.0
      %1016 = vmatprep.subr.mxu0 0.0
      %1017 = vmatpush1.xpose.msra.mxu0 0.0
      %1018 = vmatprep.subr.mxu0 0.0
      %1019 = vmatpush1.xpose.msra.mxu0 0.0
      %1020 = vmatprep.subr.mxu0 0.0
      %1021 = vmatpush1.xpose.msra.mxu0 0.0
      %1022 = vmatprep.subr.mxu0 0.0
      %1023 = vmatpush1.xpose.msra.mxu0 0.0
      %1024 = vmatprep.subr.mxu0 0.0
      %1025 = vmatpush1.xpose.msra.mxu0 0.0
      %1026 = vmatprep.subr.mxu0 0.0
      %1027 = vmatpush1.xpose.msra.mxu0 0.0
      %1028 = vmatprep.subr.mxu0 0.0
      %1029 = vmatpush1.xpose.msra.mxu0 0.0
      %1030 = vmatprep.subr.mxu0 0.0
      %1031 = vmatpush1.xpose.msra.mxu0 0.0
      %1032 = vmatprep.subr.mxu0 0.0
      %1033 = vmatpush1.xpose.msra.mxu0 0.0
      %1034 = vmatprep.subr.mxu0 0.0
      %1035 = vmatpush1.xpose.msra.mxu0 0.0
      %1036 = vmatprep.subr.mxu0 0.0
      %1037 = vmatpush1.xpose.msra.mxu0 0.0
      %1038 = vmatprep.subr.mxu0 0.0
      %1039 = vmatpush1.xpose.msra.mxu0 0.0
      %1040 = vmatprep.subr.mxu0 0.0
      %1041 = vmatpush1.xpose.msra.mxu0 0.0
      %1042 = vmatprep.subr.mxu0 0.0
      %1043 = vmatpush1.xpose.msra.mxu0 0.0
      %1044 = vmatprep.subr.mxu0 0.0
      %1045 = vmatpush1.xpose.msra.mxu0 0.0
      %1046 = vmatprep.mubr.f32.mxu0 0.0
      %1047 = vmatmul.mubr.f32.gmra.mrb[0].mxu0 %v971
      %v1048 = vpop.f32.mrb[0].mxu0
      %v1049 = vadd.f32 0.0, %v1048
      %v1050 = vpop.f32.mrb[0].mxu0
      %1051 = vmatprep.mubr.f32.mxu0 0.0
      %1052 = vmatmul.mubr.f32.gmra.mrb[0].mxu0 %v974
      %v1053 = vpop.f32.mrb[0].mxu0
      %v1054 = vadd.f32 0.0, %v1053
      %v1055 = vpop.f32.mrb[0].mxu0
      %1056 = vdwg.mxu0
      %v1057 = vmul.f32 %v440, 0.25
      %v1058 = vmul.f32 %v445, 0.25
      %v1059 = vmul.f32 %v527, 0.25
      %v1060 = vmul.f32 %v532, 0.25
      %v1061 = vmul.f32 %v614, 0.25
      %v1062 = vmul.f32 %v619, 0.25
      %v1063 = vmul.f32 %v701, 0.25
      %v1064 = vmul.f32 %v706, 0.25
      %v1065 = vmul.f32 %v788, 0.25
      %v1066 = vmul.f32 %v793, 0.25
      %v1067 = vmul.f32 %v875, 0.25
      %v1068 = vmul.f32 %v880, 0.25
      %v1069 = vmul.f32 %v962, 0.25
      %v1070 = vmul.f32 %v967, 0.25
      %v1071 = vmul.f32 %v1049, 0.25
      %v1072 = vmul.f32 %v1054, 0.25
      %v1073 = vsel %vm360, %v1057, -inf
      %1074 = vmax.xlane.f32.xlu0 %v1073
      %v1075 = vpop.xlane.xlu0 %1074
      %v1076 = vsel %vm360, %v1058, -inf
      %1077 = vmax.xlane.f32.xlu0 %v1076
      %v1078 = vpop.xlane.xlu0 %1077
      %v1079 = vsel %vm360, %v1059, -inf
      %1080 = vmax.xlane.f32.xlu0 %v1079
      %v1081 = vpop.xlane.xlu0 %1080
      %v1082 = vsel %vm360, %v1060, -inf
      %1083 = vmax.xlane.f32.xlu0 %v1082
      %v1084 = vpop.xlane.xlu0 %1083
      %v1085 = vsel %vm360, %v1061, -inf
      %1086 = vmax.xlane.f32.xlu0 %v1085
      %v1087 = vpop.xlane.xlu0 %1086
      %v1088 = vsel %vm360, %v1062, -inf
      %1089 = vmax.xlane.f32.xlu0 %v1088
      %v1090 = vpop.xlane.xlu0 %1089
      %v1091 = vsel %vm360, %v1063, -inf
      %1092 = vmax.xlane.f32.xlu0 %v1091
      %v1093 = vpop.xlane.xlu0 %1092
      %v1094 = vsel %vm360, %v1064, -inf
      %1095 = vmax.xlane.f32.xlu0 %v1094
      %v1096 = vpop.xlane.xlu0 %1095
      %v1097 = vsel %vm360, %v1065, -inf
      %1098 = vmax.xlane.f32.xlu0 %v1097
      %v1099 = vpop.xlane.xlu0 %1098
      %v1100 = vsel %vm360, %v1066, -inf
      %1101 = vmax.xlane.f32.xlu0 %v1100
      %v1102 = vpop.xlane.xlu0 %1101
      %v1103 = vsel %vm360, %v1067, -inf
      %1104 = vmax.xlane.f32.xlu0 %v1103
      %v1105 = vpop.xlane.xlu0 %1104
      %v1106 = vsel %vm360, %v1068, -inf
      %1107 = vmax.xlane.f32.xlu0 %v1106
      %v1108 = vpop.xlane.xlu0 %1107
      %v1109 = vsel %vm360, %v1069, -inf
      %1110 = vmax.xlane.f32.xlu0 %v1109
      %v1111 = vpop.xlane.xlu0 %1110
      %v1112 = vsel %vm360, %v1070, -inf
      %1113 = vmax.xlane.f32.xlu0 %v1112
      %v1114 = vpop.xlane.xlu0 %1113
      %v1115 = vsel %vm360, %v1071, -inf
      %1116 = vmax.xlane.f32.xlu0 %v1115
      %v1117 = vpop.xlane.xlu0 %1116
      %v1118 = vsel %vm360, %v1072, -inf
      %1119 = vmax.xlane.f32.xlu0 %v1118
      %v1120 = vpop.xlane.xlu0 %1119
      %v1121 = vsub.f32 %v1057, %v1075
      %v1122 = vsub.f32 %v1058, %v1078
      %v1123 = vsub.f32 %v1059, %v1081
      %v1124 = vsub.f32 %v1060, %v1084
      %v1125 = vsub.f32 %v1061, %v1087
      %v1126 = vsub.f32 %v1062, %v1090
      %v1127 = vsub.f32 %v1063, %v1093
      %v1128 = vsub.f32 %v1064, %v1096
      %v1129 = vsub.f32 %v1065, %v1099
      %v1130 = vsub.f32 %v1066, %v1102
      %v1131 = vsub.f32 %v1067, %v1105
      %v1132 = vsub.f32 %v1068, %v1108
      %v1133 = vsub.f32 %v1069, %v1111
      %v1134 = vsub.f32 %v1070, %v1114
      %v1135 = vsub.f32 %v1071, %v1117
      %v1136 = vsub.f32 %v1072, %v1120
      %v1137 = vmul.f32 %v1121, 1.442695
      %v1138 = vpow.pop %v1137
      %v1139 = vmul.f32 %v1122, 1.442695
      %v1140 = vpow.pop %v1139
      %v1141 = vmul.f32 %v1123, 1.442695
      %v1142 = vpow.pop %v1141
      %v1143 = vmul.f32 %v1124, 1.442695
      %v1144 = vpow.pop %v1143
      %v1145 = vmul.f32 %v1125, 1.442695
      %v1146 = vpow.pop %v1145
      %v1147 = vmul.f32 %v1126, 1.442695
      %v1148 = vpow.pop %v1147
      %v1149 = vmul.f32 %v1127, 1.442695
      %v1150 = vpow.pop %v1149
      %v1151 = vmul.f32 %v1128, 1.442695
      %v1152 = vpow.pop %v1151
      %v1153 = vmul.f32 %v1129, 1.442695
      %v1154 = vpow.pop %v1153
      %v1155 = vmul.f32 %v1130, 1.442695
      %v1156 = vpow.pop %v1155
      %v1157 = vmul.f32 %v1131, 1.442695
      %v1158 = vpow.pop %v1157
      %v1159 = vmul.f32 %v1132, 1.442695
      %v1160 = vpow.pop %v1159
      %v1161 = vmul.f32 %v1133, 1.442695
      %v1162 = vpow.pop %v1161
      %v1163 = vmul.f32 %v1134, 1.442695
      %v1164 = vpow.pop %v1163
      %v1165 = vmul.f32 %v1135, 1.442695
      %v1166 = vpow.pop %v1165
      %v1167 = vmul.f32 %v1136, 1.442695
      %v1168 = vpow.pop %v1167
      %v1169 = vsel %vm360, %v1138, 0.0
      %1170 = vadd.xlane.f32.xlu0 %v1169
      %v1171 = vpop.xlane.xlu0 %1170
      %v1172 = vsel %vm360, %v1140, 0.0
      %1173 = vadd.xlane.f32.xlu0 %v1172
      %v1174 = vpop.xlane.xlu0 %1173
      %v1175 = vsel %vm360, %v1142, 0.0
      %1176 = vadd.xlane.f32.xlu0 %v1175
      %v1177 = vpop.xlane.xlu0 %1176
      %v1178 = vsel %vm360, %v1144, 0.0
      %1179 = vadd.xlane.f32.xlu0 %v1178
      %v1180 = vpop.xlane.xlu0 %1179
      %v1181 = vsel %vm360, %v1146, 0.0
      %1182 = vadd.xlane.f32.xlu0 %v1181
      %v1183 = vpop.xlane.xlu0 %1182
      %v1184 = vsel %vm360, %v1148, 0.0
      %1185 = vadd.xlane.f32.xlu0 %v1184
      %v1186 = vpop.xlane.xlu0 %1185
      %v1187 = vsel %vm360, %v1150, 0.0
      %1188 = vadd.xlane.f32.xlu0 %v1187
      %v1189 = vpop.xlane.xlu0 %1188
      %v1190 = vsel %vm360, %v1152, 0.0
      %1191 = vadd.xlane.f32.xlu0 %v1190
      %v1192 = vpop.xlane.xlu0 %1191
      %v1193 = vsel %vm360, %v1154, 0.0
      %1194 = vadd.xlane.f32.xlu0 %v1193
      %v1195 = vpop.xlane.xlu0 %1194
      %v1196 = vsel %vm360, %v1156, 0.0
      %1197 = vadd.xlane.f32.xlu0 %v1196
      %v1198 = vpop.xlane.xlu0 %1197
      %v1199 = vsel %vm360, %v1158, 0.0
      %1200 = vadd.xlane.f32.xlu0 %v1199
      %v1201 = vpop.xlane.xlu0 %1200
      %v1202 = vsel %vm360, %v1160, 0.0
      %1203 = vadd.xlane.f32.xlu0 %v1202
      %v1204 = vpop.xlane.xlu0 %1203
      %v1205 = vsel %vm360, %v1162, 0.0
      %1206 = vadd.xlane.f32.xlu0 %v1205
      %v1207 = vpop.xlane.xlu0 %1206
      %v1208 = vsel %vm360, %v1164, 0.0
      %1209 = vadd.xlane.f32.xlu0 %v1208
      %v1210 = vpop.xlane.xlu0 %1209
      %v1211 = vsel %vm360, %v1166, 0.0
      %1212 = vadd.xlane.f32.xlu0 %v1211
      %v1213 = vpop.xlane.xlu0 %1212
      %v1214 = vsel %vm360, %v1168, 0.0
      %1215 = vadd.xlane.f32.xlu0 %v1214
      %v1216 = vpop.xlane.xlu0 %1215
      %v1217 = vrcp.pop %v1171
      %v1218 = vmul.f32 %v1138, %v1217
      %v1219 = vrcp.pop %v1174
      %v1220 = vmul.f32 %v1140, %v1219
      %v1221 = vrcp.pop %v1177
      %v1222 = vmul.f32 %v1142, %v1221
      %v1223 = vrcp.pop %v1180
      %v1224 = vmul.f32 %v1144, %v1223
      %v1225 = vrcp.pop %v1183
      %v1226 = vmul.f32 %v1146, %v1225
      %v1227 = vrcp.pop %v1186
      %v1228 = vmul.f32 %v1148, %v1227
      %v1229 = vrcp.pop %v1189
      %v1230 = vmul.f32 %v1150, %v1229
      %v1231 = vrcp.pop %v1192
      %v1232 = vmul.f32 %v1152, %v1231
      %v1233 = vrcp.pop %v1195
      %v1234 = vmul.f32 %v1154, %v1233
      %v1235 = vrcp.pop %v1198
      %v1236 = vmul.f32 %v1156, %v1235
      %v1237 = vrcp.pop %v1201
      %v1238 = vmul.f32 %v1158, %v1237
      %v1239 = vrcp.pop %v1204
      %v1240 = vmul.f32 %v1160, %v1239
      %v1241 = vrcp.pop %v1207
      %v1242 = vmul.f32 %v1162, %v1241
      %v1243 = vrcp.pop %v1210
      %v1244 = vmul.f32 %v1164, %v1243
      %v1245 = vrcp.pop %v1213
      %v1246 = vmul.f32 %v1166, %v1245
      %v1247 = vrcp.pop %v1216
      %v1248 = vmul.f32 %v1168, %v1247
      %v1250 = vsel %vm360, %v1218, 0
      %v1253 = vsel %vm360, %v1220, 0
      %1255 = vmatprep.subr.mxu0 0.0
      %1256 = vmatpush1.msra.mxu0 %v344
      %1257 = vmatprep.subr.mxu0 0.0
      %1258 = vmatpush1.msra.mxu0 %v345
      %1259 = vmatprep.subr.mxu0 0.0
      %1260 = vmatpush1.msra.mxu0 0.0
      %1261 = vmatprep.subr.mxu0 0.0
      %1262 = vmatpush1.msra.mxu0 0.0
      %1263 = vmatprep.subr.mxu0 0.0
      %1264 = vmatpush1.msra.mxu0 0.0
      %1265 = vmatprep.subr.mxu0 0.0
      %1266 = vmatpush1.msra.mxu0 0.0
      %1267 = vmatprep.subr.mxu0 0.0
      %1268 = vmatpush1.msra.mxu0 0.0
      %1269 = vmatprep.subr.mxu0 0.0
      %1270 = vmatpush1.msra.mxu0 0.0
      %1271 = vmatprep.subr.mxu0 0.0
      %1272 = vmatpush1.msra.mxu0 0.0
      %1273 = vmatprep.subr.mxu0 0.0
      %1274 = vmatpush1.msra.mxu0 0.0
      %1275 = vmatprep.subr.mxu0 0.0
      %1276 = vmatpush1.msra.mxu0 0.0
      %1277 = vmatprep.subr.mxu0 0.0
      %1278 = vmatpush1.msra.mxu0 0.0
      %1279 = vmatprep.subr.mxu0 0.0
      %1280 = vmatpush1.msra.mxu0 0.0
      %1281 = vmatprep.subr.mxu0 0.0
      %1282 = vmatpush1.msra.mxu0 0.0
      %1283 = vmatprep.subr.mxu0 0.0
      %1284 = vmatpush1.msra.mxu0 0.0
      %1285 = vmatprep.subr.mxu0 0.0
      %1286 = vmatpush1.msra.mxu0 0.0
      %1287 = vmatprep.subr.mxu0 0.0
      %1288 = vmatpush1.msra.mxu0 0.0
      %1289 = vmatprep.subr.mxu0 0.0
      %1290 = vmatpush1.msra.mxu0 0.0
      %1291 = vmatprep.subr.mxu0 0.0
      %1292 = vmatpush1.msra.mxu0 0.0
      %1293 = vmatprep.subr.mxu0 0.0
      %1294 = vmatpush1.msra.mxu0 0.0
      %1295 = vmatprep.subr.mxu0 0.0
      %1296 = vmatpush1.msra.mxu0 0.0
      %1297 = vmatprep.subr.mxu0 0.0
      %1298 = vmatpush1.msra.mxu0 0.0
      %1299 = vmatprep.subr.mxu0 0.0
      %1300 = vmatpush1.msra.mxu0 0.0
      %1301 = vmatprep.subr.mxu0 0.0
      %1302 = vmatpush1.msra.mxu0 0.0
      %1303 = vmatprep.subr.mxu0 0.0
      %1304 = vmatpush1.msra.mxu0 0.0
      %1305 = vmatprep.subr.mxu0 0.0
      %1306 = vmatpush1.msra.mxu0 0.0
      %1307 = vmatprep.subr.mxu0 0.0
      %1308 = vmatpush1.msra.mxu0 0.0
      %1309 = vmatprep.subr.mxu0 0.0
      %1310 = vmatpush1.msra.mxu0 0.0
      %1311 = vmatprep.subr.mxu0 0.0
      %1312 = vmatpush1.msra.mxu0 0.0
      %1313 = vmatprep.subr.mxu0 0.0
      %1314 = vmatpush1.msra.mxu0 0.0
      %1315 = vmatprep.subr.mxu0 0.0
      %1316 = vmatpush1.msra.mxu0 0.0
      %1317 = vmatprep.subr.mxu0 0.0
      %1318 = vmatpush1.msra.mxu0 0.0
      %1319 = vmatprep.mubr.f32.mxu0 0.0
      %1320 = vmatmul.mubr.f32.gmra.mrb[0].mxu0 %v1250
      %v1321 = vpop.f32.mrb[0].mxu0
      %v1322 = vadd.f32 0.0, %v1321
      %v1323 = vpop.f32.mrb[0].mxu0
      %1324 = vmatprep.mubr.f32.mxu0 0.0
      %1325 = vmatmul.mubr.f32.gmra.mrb[0].mxu0 %v1253
      %v1326 = vpop.f32.mrb[0].mxu0
      %v1327 = vadd.f32 0.0, %v1326
      %v1328 = vpop.f32.mrb[0].mxu0
      %1329 = vdwg.mxu0
      %v1331 = vsel %vm360, %v1222, 0
      %v1334 = vsel %vm360, %v1224, 0
      %1336 = vmatprep.subr.mxu0 0.0
      %1337 = vmatpush1.msra.mxu0 %v346
      %1338 = vmatprep.subr.mxu0 0.0
      %1339 = vmatpush1.msra.mxu0 %v347
      %1340 = vmatprep.subr.mxu0 0.0
      %1341 = vmatpush1.msra.mxu0 0.0
      %1342 = vmatprep.subr.mxu0 0.0
      %1343 = vmatpush1.msra.mxu0 0.0
      %1344 = vmatprep.subr.mxu0 0.0
      %1345 = vmatpush1.msra.mxu0 0.0
      %1346 = vmatprep.subr.mxu0 0.0
      %1347 = vmatpush1.msra.mxu0 0.0
      %1348 = vmatprep.subr.mxu0 0.0
      %1349 = vmatpush1.msra.mxu0 0.0
      %1350 = vmatprep.subr.mxu0 0.0
      %1351 = vmatpush1.msra.mxu0 0.0
      %1352 = vmatprep.subr.mxu0 0.0
      %1353 = vmatpush1.msra.mxu0 0.0
      %1354 = vmatprep.subr.mxu0 0.0
      %1355 = vmatpush1.msra.mxu0 0.0
      %1356 = vmatprep.subr.mxu0 0.0
      %1357 = vmatpush1.msra.mxu0 0.0
      %1358 = vmatprep.subr.mxu0 0.0
      %1359 = vmatpush1.msra.mxu0 0.0
      %1360 = vmatprep.subr.mxu0 0.0
      %1361 = vmatpush1.msra.mxu0 0.0
      %1362 = vmatprep.subr.mxu0 0.0
      %1363 = vmatpush1.msra.mxu0 0.0
      %1364 = vmatprep.subr.mxu0 0.0
      %1365 = vmatpush1.msra.mxu0 0.0
      %1366 = vmatprep.subr.mxu0 0.0
      %1367 = vmatpush1.msra.mxu0 0.0
      %1368 = vmatprep.subr.mxu0 0.0
      %1369 = vmatpush1.msra.mxu0 0.0
      %1370 = vmatprep.subr.mxu0 0.0
      %1371 = vmatpush1.msra.mxu0 0.0
      %1372 = vmatprep.subr.mxu0 0.0
      %1373 = vmatpush1.msra.mxu0 0.0
      %1374 = vmatprep.subr.mxu0 0.0
      %1375 = vmatpush1.msra.mxu0 0.0
      %1376 = vmatprep.subr.mxu0 0.0
      %1377 = vmatpush1.msra.mxu0 0.0
      %1378 = vmatprep.subr.mxu0 0.0
      %1379 = vmatpush1.msra.mxu0 0.0
      %1380 = vmatprep.subr.mxu0 0.0
      %1381 = vmatpush1.msra.mxu0 0.0
      %1382 = vmatprep.subr.mxu0 0.0
      %1383 = vmatpush1.msra.mxu0 0.0
      %1384 = vmatprep.subr.mxu0 0.0
      %1385 = vmatpush1.msra.mxu0 0.0
      %1386 = vmatprep.subr.mxu0 0.0
      %1387 = vmatpush1.msra.mxu0 0.0
      %1388 = vmatprep.subr.mxu0 0.0
      %1389 = vmatpush1.msra.mxu0 0.0
      %1390 = vmatprep.subr.mxu0 0.0
      %1391 = vmatpush1.msra.mxu0 0.0
      %1392 = vmatprep.subr.mxu0 0.0
      %1393 = vmatpush1.msra.mxu0 0.0
      %1394 = vmatprep.subr.mxu0 0.0
      %1395 = vmatpush1.msra.mxu0 0.0
      %1396 = vmatprep.subr.mxu0 0.0
      %1397 = vmatpush1.msra.mxu0 0.0
      %1398 = vmatprep.subr.mxu0 0.0
      %1399 = vmatpush1.msra.mxu0 0.0
      %1400 = vmatprep.mubr.f32.mxu0 0.0
      %1401 = vmatmul.mubr.f32.gmra.mrb[0].mxu0 %v1331
      %v1402 = vpop.f32.mrb[0].mxu0
      %v1403 = vadd.f32 0.0, %v1402
      %v1404 = vpop.f32.mrb[0].mxu0
      %1405 = vmatprep.mubr.f32.mxu0 0.0
      %1406 = vmatmul.mubr.f32.gmra.mrb[0].mxu0 %v1334
      %v1407 = vpop.f32.mrb[0].mxu0
      %v1408 = vadd.f32 0.0, %v1407
      %v1409 = vpop.f32.mrb[0].mxu0
      %1410 = vdwg.mxu0
      %v1412 = vsel %vm360, %v1226, 0
      %v1415 = vsel %vm360, %v1228, 0
      %1417 = vmatprep.subr.mxu0 0.0
      %1418 = vmatpush1.msra.mxu0 %v348
      %1419 = vmatprep.subr.mxu0 0.0
      %1420 = vmatpush1.msra.mxu0 %v349
      %1421 = vmatprep.subr.mxu0 0.0
      %1422 = vmatpush1.msra.mxu0 0.0
      %1423 = vmatprep.subr.mxu0 0.0
      %1424 = vmatpush1.msra.mxu0 0.0
      %1425 = vmatprep.subr.mxu0 0.0
      %1426 = vmatpush1.msra.mxu0 0.0
      %1427 = vmatprep.subr.mxu0 0.0
      %1428 = vmatpush1.msra.mxu0 0.0
      %1429 = vmatprep.subr.mxu0 0.0
      %1430 = vmatpush1.msra.mxu0 0.0
      %1431 = vmatprep.subr.mxu0 0.0
      %1432 = vmatpush1.msra.mxu0 0.0
      %1433 = vmatprep.subr.mxu0 0.0
      %1434 = vmatpush1.msra.mxu0 0.0
      %1435 = vmatprep.subr.mxu0 0.0
      %1436 = vmatpush1.msra.mxu0 0.0
      %1437 = vmatprep.subr.mxu0 0.0
      %1438 = vmatpush1.msra.mxu0 0.0
      %1439 = vmatprep.subr.mxu0 0.0
      %1440 = vmatpush1.msra.mxu0 0.0
      %1441 = vmatprep.subr.mxu0 0.0
      %1442 = vmatpush1.msra.mxu0 0.0
      %1443 = vmatprep.subr.mxu0 0.0
      %1444 = vmatpush1.msra.mxu0 0.0
      %1445 = vmatprep.subr.mxu0 0.0
      %1446 = vmatpush1.msra.mxu0 0.0
      %1447 = vmatprep.subr.mxu0 0.0
      %1448 = vmatpush1.msra.mxu0 0.0
      %1449 = vmatprep.subr.mxu0 0.0
      %1450 = vmatpush1.msra.mxu0 0.0
      %1451 = vmatprep.subr.mxu0 0.0
      %1452 = vmatpush1.msra.mxu0 0.0
      %1453 = vmatprep.subr.mxu0 0.0
      %1454 = vmatpush1.msra.mxu0 0.0
      %1455 = vmatprep.subr.mxu0 0.0
      %1456 = vmatpush1.msra.mxu0 0.0
      %1457 = vmatprep.subr.mxu0 0.0
      %1458 = vmatpush1.msra.mxu0 0.0
      %1459 = vmatprep.subr.mxu0 0.0
      %1460 = vmatpush1.msra.mxu0 0.0
      %1461 = vmatprep.subr.mxu0 0.0
      %1462 = vmatpush1.msra.mxu0 0.0
      %1463 = vmatprep.subr.mxu0 0.0
      %1464 = vmatpush1.msra.mxu0 0.0
      %1465 = vmatprep.subr.mxu0 0.0
      %1466 = vmatpush1.msra.mxu0 0.0
      %1467 = vmatprep.subr.mxu0 0.0
      %1468 = vmatpush1.msra.mxu0 0.0
      %1469 = vmatprep.subr.mxu0 0.0
      %1470 = vmatpush1.msra.mxu0 0.0
      %1471 = vmatprep.subr.mxu0 0.0
      %1472 = vmatpush1.msra.mxu0 0.0
      %1473 = vmatprep.subr.mxu0 0.0
      %1474 = vmatpush1.msra.mxu0 0.0
      %1475 = vmatprep.subr.mxu0 0.0
      %1476 = vmatpush1.msra.mxu0 0.0
      %1477 = vmatprep.subr.mxu0 0.0
      %1478 = vmatpush1.msra.mxu0 0.0
      %1479 = vmatprep.subr.mxu0 0.0
      %1480 = vmatpush1.msra.mxu0 0.0
      %1481 = vmatprep.mubr.f32.mxu0 0.0
      %1482 = vmatmul.mubr.f32.gmra.mrb[0].mxu0 %v1412
      %v1483 = vpop.f32.mrb[0].mxu0
      %v1484 = vadd.f32 0.0, %v1483
      %v1485 = vpop.f32.mrb[0].mxu0
      %1486 = vmatprep.mubr.f32.mxu0 0.0
      %1487 = vmatmul.mubr.f32.gmra.mrb[0].mxu0 %v1415
      %v1488 = vpop.f32.mrb[0].mxu0
      %v1489 = vadd.f32 0.0, %v1488
      %v1490 = vpop.f32.mrb[0].mxu0
      %1491 = vdwg.mxu0
      %v1493 = vsel %vm360, %v1230, 0
      %v1496 = vsel %vm360, %v1232, 0
      %1498 = vmatprep.subr.mxu0 0.0
      %1499 = vmatpush1.msra.mxu0 %v350
      %1500 = vmatprep.subr.mxu0 0.0
      %1501 = vmatpush1.msra.mxu0 %v351
      %1502 = vmatprep.subr.mxu0 0.0
      %1503 = vmatpush1.msra.mxu0 0.0
      %1504 = vmatprep.subr.mxu0 0.0
      %1505 = vmatpush1.msra.mxu0 0.0
      %1506 = vmatprep.subr.mxu0 0.0
      %1507 = vmatpush1.msra.mxu0 0.0
      %1508 = vmatprep.subr.mxu0 0.0
      %1509 = vmatpush1.msra.mxu0 0.0
      %1510 = vmatprep.subr.mxu0 0.0
      %1511 = vmatpush1.msra.mxu0 0.0
      %1512 = vmatprep.subr.mxu0 0.0
      %1513 = vmatpush1.msra.mxu0 0.0
      %1514 = vmatprep.subr.mxu0 0.0
      %1515 = vmatpush1.msra.mxu0 0.0
      %1516 = vmatprep.subr.mxu0 0.0
      %1517 = vmatpush1.msra.mxu0 0.0
      %1518 = vmatprep.subr.mxu0 0.0
      %1519 = vmatpush1.msra.mxu0 0.0
      %1520 = vmatprep.subr.mxu0 0.0
      %1521 = vmatpush1.msra.mxu0 0.0
      %1522 = vmatprep.subr.mxu0 0.0
      %1523 = vmatpush1.msra.mxu0 0.0
      %1524 = vmatprep.subr.mxu0 0.0
      %1525 = vmatpush1.msra.mxu0 0.0
      %1526 = vmatprep.subr.mxu0 0.0
      %1527 = vmatpush1.msra.mxu0 0.0
      %1528 = vmatprep.subr.mxu0 0.0
      %1529 = vmatpush1.msra.mxu0 0.0
      %1530 = vmatprep.subr.mxu0 0.0
      %1531 = vmatpush1.msra.mxu0 0.0
      %1532 = vmatprep.subr.mxu0 0.0
      %1533 = vmatpush1.msra.mxu0 0.0
      %1534 = vmatprep.subr.mxu0 0.0
      %1535 = vmatpush1.msra.mxu0 0.0
      %1536 = vmatprep.subr.mxu0 0.0
      %1537 = vmatpush1.msra.mxu0 0.0
      %1538 = vmatprep.subr.mxu0 0.0
      %1539 = vmatpush1.msra.mxu0 0.0
      %1540 = vmatprep.subr.mxu0 0.0
      %1541 = vmatpush1.msra.mxu0 0.0
      %1542 = vmatprep.subr.mxu0 0.0
      %1543 = vmatpush1.msra.mxu0 0.0
      %1544 = vmatprep.subr.mxu0 0.0
      %1545 = vmatpush1.msra.mxu0 0.0
      %1546 = vmatprep.subr.mxu0 0.0
      %1547 = vmatpush1.msra.mxu0 0.0
      %1548 = vmatprep.subr.mxu0 0.0
      %1549 = vmatpush1.msra.mxu0 0.0
      %1550 = vmatprep.subr.mxu0 0.0
      %1551 = vmatpush1.msra.mxu0 0.0
      %1552 = vmatprep.subr.mxu0 0.0
      %1553 = vmatpush1.msra.mxu0 0.0
      %1554 = vmatprep.subr.mxu0 0.0
      %1555 = vmatpush1.msra.mxu0 0.0
      %1556 = vmatprep.subr.mxu0 0.0
      %1557 = vmatpush1.msra.mxu0 0.0
      %1558 = vmatprep.subr.mxu0 0.0
      %1559 = vmatpush1.msra.mxu0 0.0
      %1560 = vmatprep.subr.mxu0 0.0
      %1561 = vmatpush1.msra.mxu0 0.0
      %1562 = vmatprep.mubr.f32.mxu0 0.0
      %1563 = vmatmul.mubr.f32.gmra.mrb[0].mxu0 %v1493
      %v1564 = vpop.f32.mrb[0].mxu0
      %v1565 = vadd.f32 0.0, %v1564
      %v1566 = vpop.f32.mrb[0].mxu0
      %1567 = vmatprep.mubr.f32.mxu0 0.0
      %1568 = vmatmul.mubr.f32.gmra.mrb[0].mxu0 %v1496
      %v1569 = vpop.f32.mrb[0].mxu0
      %v1570 = vadd.f32 0.0, %v1569
      %v1571 = vpop.f32.mrb[0].mxu0
      %1572 = vdwg.mxu0
      %v1574 = vsel %vm360, %v1234, 0
      %v1577 = vsel %vm360, %v1236, 0
      %1579 = vmatprep.subr.mxu0 0.0
      %1580 = vmatpush1.msra.mxu0 %v352
      %1581 = vmatprep.subr.mxu0 0.0
      %1582 = vmatpush1.msra.mxu0 %v353
      %1583 = vmatprep.subr.mxu0 0.0
      %1584 = vmatpush1.msra.mxu0 0.0
      %1585 = vmatprep.subr.mxu0 0.0
      %1586 = vmatpush1.msra.mxu0 0.0
      %1587 = vmatprep.subr.mxu0 0.0
      %1588 = vmatpush1.msra.mxu0 0.0
      %1589 = vmatprep.subr.mxu0 0.0
      %1590 = vmatpush1.msra.mxu0 0.0
      %1591 = vmatprep.subr.mxu0 0.0
      %1592 = vmatpush1.msra.mxu0 0.0
      %1593 = vmatprep.subr.mxu0 0.0
      %1594 = vmatpush1.msra.mxu0 0.0
      %1595 = vmatprep.subr.mxu0 0.0
      %1596 = vmatpush1.msra.mxu0 0.0
      %1597 = vmatprep.subr.mxu0 0.0
      %1598 = vmatpush1.msra.mxu0 0.0
      %1599 = vmatprep.subr.mxu0 0.0
      %1600 = vmatpush1.msra.mxu0 0.0
      %1601 = vmatprep.subr.mxu0 0.0
      %1602 = vmatpush1.msra.mxu0 0.0
      %1603 = vmatprep.subr.mxu0 0.0
      %1604 = vmatpush1.msra.mxu0 0.0
      %1605 = vmatprep.subr.mxu0 0.0
      %1606 = vmatpush1.msra.mxu0 0.0
      %1607 = vmatprep.subr.mxu0 0.0
      %1608 = vmatpush1.msra.mxu0 0.0
      %1609 = vmatprep.subr.mxu0 0.0
      %1610 = vmatpush1.msra.mxu0 0.0
      %1611 = vmatprep.subr.mxu0 0.0
      %1612 = vmatpush1.msra.mxu0 0.0
      %1613 = vmatprep.subr.mxu0 0.0
      %1614 = vmatpush1.msra.mxu0 0.0
      %1615 = vmatprep.subr.mxu0 0.0
      %1616 = vmatpush1.msra.mxu0 0.0
      %1617 = vmatprep.subr.mxu0 0.0
      %1618 = vmatpush1.msra.mxu0 0.0
      %1619 = vmatprep.subr.mxu0 0.0
      %1620 = vmatpush1.msra.mxu0 0.0
      %1621 = vmatprep.subr.mxu0 0.0
      %1622 = vmatpush1.msra.mxu0 0.0
      %1623 = vmatprep.subr.mxu0 0.0
      %1624 = vmatpush1.msra.mxu0 0.0
      %1625 = vmatprep.subr.mxu0 0.0
      %1626 = vmatpush1.msra.mxu0 0.0
      %1627 = vmatprep.subr.mxu0 0.0
      %1628 = vmatpush1.msra.mxu0 0.0
      %1629 = vmatprep.subr.mxu0 0.0
      %1630 = vmatpush1.msra.mxu0 0.0
      %1631 = vmatprep.subr.mxu0 0.0
      %1632 = vmatpush1.msra.mxu0 0.0
      %1633 = vmatprep.subr.mxu0 0.0
      %1634 = vmatpush1.msra.mxu0 0.0
      %1635 = vmatprep.subr.mxu0 0.0
      %1636 = vmatpush1.msra.mxu0 0.0
      %1637 = vmatprep.subr.mxu0 0.0
      %1638 = vmatpush1.msra.mxu0 0.0
      %1639 = vmatprep.subr.mxu0 0.0
      %1640 = vmatpush1.msra.mxu0 0.0
      %1641 = vmatprep.subr.mxu0 0.0
      %1642 = vmatpush1.msra.mxu0 0.0
      %1643 = vmatprep.mubr.f32.mxu0 0.0
      %1644 = vmatmul.mubr.f32.gmra.mrb[0].mxu0 %v1574
      %v1645 = vpop.f32.mrb[0].mxu0
      %v1646 = vadd.f32 0.0, %v1645
      %v1647 = vpop.f32.mrb[0].mxu0
      %1648 = vmatprep.mubr.f32.mxu0 0.0
      %1649 = vmatmul.mubr.f32.gmra.mrb[0].mxu0 %v1577
      %v1650 = vpop.f32.mrb[0].mxu0
      %v1651 = vadd.f32 0.0, %v1650
      %v1652 = vpop.f32.mrb[0].mxu0
      %1653 = vdwg.mxu0
      %v1655 = vsel %vm360, %v1238, 0
      %v1658 = vsel %vm360, %v1240, 0
      %1660 = vmatprep.subr.mxu0 0.0
      %1661 = vmatpush1.msra.mxu0 %v354
      %1662 = vmatprep.subr.mxu0 0.0
      %1663 = vmatpush1.msra.mxu0 %v355
      %1664 = vmatprep.subr.mxu0 0.0
      %1665 = vmatpush1.msra.mxu0 0.0
      %1666 = vmatprep.subr.mxu0 0.0
      %1667 = vmatpush1.msra.mxu0 0.0
      %1668 = vmatprep.subr.mxu0 0.0
      %1669 = vmatpush1.msra.mxu0 0.0
      %1670 = vmatprep.subr.mxu0 0.0
      %1671 = vmatpush1.msra.mxu0 0.0
      %1672 = vmatprep.subr.mxu0 0.0
      %1673 = vmatpush1.msra.mxu0 0.0
      %1674 = vmatprep.subr.mxu0 0.0
      %1675 = vmatpush1.msra.mxu0 0.0
      %1676 = vmatprep.subr.mxu0 0.0
      %1677 = vmatpush1.msra.mxu0 0.0
      %1678 = vmatprep.subr.mxu0 0.0
      %1679 = vmatpush1.msra.mxu0 0.0
      %1680 = vmatprep.subr.mxu0 0.0
      %1681 = vmatpush1.msra.mxu0 0.0
      %1682 = vmatprep.subr.mxu0 0.0
      %1683 = vmatpush1.msra.mxu0 0.0
      %1684 = vmatprep.subr.mxu0 0.0
      %1685 = vmatpush1.msra.mxu0 0.0
      %1686 = vmatprep.subr.mxu0 0.0
      %1687 = vmatpush1.msra.mxu0 0.0
      %1688 = vmatprep.subr.mxu0 0.0
      %1689 = vmatpush1.msra.mxu0 0.0
      %1690 = vmatprep.subr.mxu0 0.0
      %1691 = vmatpush1.msra.mxu0 0.0
      %1692 = vmatprep.subr.mxu0 0.0
      %1693 = vmatpush1.msra.mxu0 0.0
      %1694 = vmatprep.subr.mxu0 0.0
      %1695 = vmatpush1.msra.mxu0 0.0
      %1696 = vmatprep.subr.mxu0 0.0
      %1697 = vmatpush1.msra.mxu0 0.0
      %1698 = vmatprep.subr.mxu0 0.0
      %1699 = vmatpush1.msra.mxu0 0.0
      %1700 = vmatprep.subr.mxu0 0.0
      %1701 = vmatpush1.msra.mxu0 0.0
      %1702 = vmatprep.subr.mxu0 0.0
      %1703 = vmatpush1.msra.mxu0 0.0
      %1704 = vmatprep.subr.mxu0 0.0
      %1705 = vmatpush1.msra.mxu0 0.0
      %1706 = vmatprep.subr.mxu0 0.0
      %1707 = vmatpush1.msra.mxu0 0.0
      %1708 = vmatprep.subr.mxu0 0.0
      %1709 = vmatpush1.msra.mxu0 0.0
      %1710 = vmatprep.subr.mxu0 0.0
      %1711 = vmatpush1.msra.mxu0 0.0
      %1712 = vmatprep.subr.mxu0 0.0
      %1713 = vmatpush1.msra.mxu0 0.0
      %1714 = vmatprep.subr.mxu0 0.0
      %1715 = vmatpush1.msra.mxu0 0.0
      %1716 = vmatprep.subr.mxu0 0.0
      %1717 = vmatpush1.msra.mxu0 0.0
      %1718 = vmatprep.subr.mxu0 0.0
      %1719 = vmatpush1.msra.mxu0 0.0
      %1720 = vmatprep.subr.mxu0 0.0
      %1721 = vmatpush1.msra.mxu0 0.0
      %1722 = vmatprep.subr.mxu0 0.0
      %1723 = vmatpush1.msra.mxu0 0.0
      %1724 = vmatprep.mubr.f32.mxu0 0.0
      %1725 = vmatmul.mubr.f32.gmra.mrb[0].mxu0 %v1655
      %v1726 = vpop.f32.mrb[0].mxu0
      %v1727 = vadd.f32 0.0, %v1726
      %v1728 = vpop.f32.mrb[0].mxu0
      %1729 = vmatprep.mubr.f32.mxu0 0.0
      %1730 = vmatmul.mubr.f32.gmra.mrb[0].mxu0 %v1658
      %v1731 = vpop.f32.mrb[0].mxu0
      %v1732 = vadd.f32 0.0, %v1731
      %v1733 = vpop.f32.mrb[0].mxu0
      %1734 = vdwg.mxu0
      %v1736 = vsel %vm360, %v1242, 0
      %v1739 = vsel %vm360, %v1244, 0
      %1741 = vmatprep.subr.mxu0 0.0
      %1742 = vmatpush1.msra.mxu0 %v356
      %1743 = vmatprep.subr.mxu0 0.0
      %1744 = vmatpush1.msra.mxu0 %v357
      %1745 = vmatprep.subr.mxu0 0.0
      %1746 = vmatpush1.msra.mxu0 0.0
      %1747 = vmatprep.subr.mxu0 0.0
      %1748 = vmatpush1.msra.mxu0 0.0
      %1749 = vmatprep.subr.mxu0 0.0
      %1750 = vmatpush1.msra.mxu0 0.0
      %1751 = vmatprep.subr.mxu0 0.0
      %1752 = vmatpush1.msra.mxu0 0.0
      %1753 = vmatprep.subr.mxu0 0.0
      %1754 = vmatpush1.msra.mxu0 0.0
      %1755 = vmatprep.subr.mxu0 0.0
      %1756 = vmatpush1.msra.mxu0 0.0
      %1757 = vmatprep.subr.mxu0 0.0
      %1758 = vmatpush1.msra.mxu0 0.0
      %1759 = vmatprep.subr.mxu0 0.0
      %1760 = vmatpush1.msra.mxu0 0.0
      %1761 = vmatprep.subr.mxu0 0.0
      %1762 = vmatpush1.msra.mxu0 0.0
      %1763 = vmatprep.subr.mxu0 0.0
      %1764 = vmatpush1.msra.mxu0 0.0
      %1765 = vmatprep.subr.mxu0 0.0
      %1766 = vmatpush1.msra.mxu0 0.0
      %1767 = vmatprep.subr.mxu0 0.0
      %1768 = vmatpush1.msra.mxu0 0.0
      %1769 = vmatprep.subr.mxu0 0.0
      %1770 = vmatpush1.msra.mxu0 0.0
      %1771 = vmatprep.subr.mxu0 0.0
      %1772 = vmatpush1.msra.mxu0 0.0
      %1773 = vmatprep.subr.mxu0 0.0
      %1774 = vmatpush1.msra.mxu0 0.0
      %1775 = vmatprep.subr.mxu0 0.0
      %1776 = vmatpush1.msra.mxu0 0.0
      %1777 = vmatprep.subr.mxu0 0.0
      %1778 = vmatpush1.msra.mxu0 0.0
      %1779 = vmatprep.subr.mxu0 0.0
      %1780 = vmatpush1.msra.mxu0 0.0
      %1781 = vmatprep.subr.mxu0 0.0
      %1782 = vmatpush1.msra.mxu0 0.0
      %1783 = vmatprep.subr.mxu0 0.0
      %1784 = vmatpush1.msra.mxu0 0.0
      %1785 = vmatprep.subr.mxu0 0.0
      %1786 = vmatpush1.msra.mxu0 0.0
      %1787 = vmatprep.subr.mxu0 0.0
      %1788 = vmatpush1.msra.mxu0 0.0
      %1789 = vmatprep.subr.mxu0 0.0
      %1790 = vmatpush1.msra.mxu0 0.0
      %1791 = vmatprep.subr.mxu0 0.0
      %1792 = vmatpush1.msra.mxu0 0.0
      %1793 = vmatprep.subr.mxu0 0.0
      %1794 = vmatpush1.msra.mxu0 0.0
      %1795 = vmatprep.subr.mxu0 0.0
      %1796 = vmatpush1.msra.mxu0 0.0
      %1797 = vmatprep.subr.mxu0 0.0
      %1798 = vmatpush1.msra.mxu0 0.0
      %1799 = vmatprep.subr.mxu0 0.0
      %1800 = vmatpush1.msra.mxu0 0.0
      %1801 = vmatprep.subr.mxu0 0.0
      %1802 = vmatpush1.msra.mxu0 0.0
      %1803 = vmatprep.subr.mxu0 0.0
      %1804 = vmatpush1.msra.mxu0 0.0
      %1805 = vmatprep.mubr.f32.mxu0 0.0
      %1806 = vmatmul.mubr.f32.gmra.mrb[0].mxu0 %v1736
      %v1807 = vpop.f32.mrb[0].mxu0
      %v1808 = vadd.f32 0.0, %v1807
      %v1809 = vpop.f32.mrb[0].mxu0
      %1810 = vmatprep.mubr.f32.mxu0 0.0
      %1811 = vmatmul.mubr.f32.gmra.mrb[0].mxu0 %v1739
      %v1812 = vpop.f32.mrb[0].mxu0
      %v1813 = vadd.f32 0.0, %v1812
      %v1814 = vpop.f32.mrb[0].mxu0
      %1815 = vdwg.mxu0
      %v1817 = vsel %vm360, %v1246, 0
      %v1820 = vsel %vm360, %v1248, 0
      %1822 = vmatprep.subr.mxu0 0.0
      %1823 = vmatpush1.msra.mxu0 %v358
      %1824 = vmatprep.subr.mxu0 0.0
      %1825 = vmatpush1.msra.mxu0 %v359
      %1826 = vmatprep.subr.mxu0 0.0
      %1827 = vmatpush1.msra.mxu0 0.0
      %1828 = vmatprep.subr.mxu0 0.0
      %1829 = vmatpush1.msra.mxu0 0.0
      %1830 = vmatprep.subr.mxu0 0.0
      %1831 = vmatpush1.msra.mxu0 0.0
      %1832 = vmatprep.subr.mxu0 0.0
      %1833 = vmatpush1.msra.mxu0 0.0
      %1834 = vmatprep.subr.mxu0 0.0
      %1835 = vmatpush1.msra.mxu0 0.0
      %1836 = vmatprep.subr.mxu0 0.0
      %1837 = vmatpush1.msra.mxu0 0.0
      %1838 = vmatprep.subr.mxu0 0.0
      %1839 = vmatpush1.msra.mxu0 0.0
      %1840 = vmatprep.subr.mxu0 0.0
      %1841 = vmatpush1.msra.mxu0 0.0
      %1842 = vmatprep.subr.mxu0 0.0
      %1843 = vmatpush1.msra.mxu0 0.0
      %1844 = vmatprep.subr.mxu0 0.0
      %1845 = vmatpush1.msra.mxu0 0.0
      %1846 = vmatprep.subr.mxu0 0.0
      %1847 = vmatpush1.msra.mxu0 0.0
      %1848 = vmatprep.subr.mxu0 0.0
      %1849 = vmatpush1.msra.mxu0 0.0
      %1850 = vmatprep.subr.mxu0 0.0
      %1851 = vmatpush1.msra.mxu0 0.0
      %1852 = vmatprep.subr.mxu0 0.0
      %1853 = vmatpush1.msra.mxu0 0.0
      %1854 = vmatprep.subr.mxu0 0.0
      %1855 = vmatpush1.msra.mxu0 0.0
      %1856 = vmatprep.subr.mxu0 0.0
      %1857 = vmatpush1.msra.mxu0 0.0
      %1858 = vmatprep.subr.mxu0 0.0
      %1859 = vmatpush1.msra.mxu0 0.0
      %1860 = vmatprep.subr.mxu0 0.0
      %1861 = vmatpush1.msra.mxu0 0.0
      %1862 = vmatprep.subr.mxu0 0.0
      %1863 = vmatpush1.msra.mxu0 0.0
      %1864 = vmatprep.subr.mxu0 0.0
      %1865 = vmatpush1.msra.mxu0 0.0
      %1866 = vmatprep.subr.mxu0 0.0
      %1867 = vmatpush1.msra.mxu0 0.0
      %1868 = vmatprep.subr.mxu0 0.0
      %1869 = vmatpush1.msra.mxu0 0.0
      %1870 = vmatprep.subr.mxu0 0.0
      %1871 = vmatpush1.msra.mxu0 0.0
      %1872 = vmatprep.subr.mxu0 0.0
      %1873 = vmatpush1.msra.mxu0 0.0
      %1874 = vmatprep.subr.mxu0 0.0
      %1875 = vmatpush1.msra.mxu0 0.0
      %1876 = vmatprep.subr.mxu0 0.0
      %1877 = vmatpush1.msra.mxu0 0.0
      %1878 = vmatprep.subr.mxu0 0.0
      %1879 = vmatpush1.msra.mxu0 0.0
      %1880 = vmatprep.subr.mxu0 0.0
      %1881 = vmatpush1.msra.mxu0 0.0
      %1882 = vmatprep.subr.mxu0 0.0
      %1883 = vmatpush1.msra.mxu0 0.0
      %1884 = vmatprep.subr.mxu0 0.0
      %1885 = vmatpush1.msra.mxu0 0.0
      %1886 = vmatprep.mubr.f32.mxu0 0.0
      %1887 = vmatmul.mubr.f32.gmra.mrb[0].mxu0 %v1817
      %v1888 = vpop.f32.mrb[0].mxu0
      %v1889 = vadd.f32 0.0, %v1888
      %v1890 = vpop.f32.mrb[0].mxu0
      %1891 = vmatprep.mubr.f32.mxu0 0.0
      %1892 = vmatmul.mubr.f32.gmra.mrb[0].mxu0 %v1820
      %v1893 = vpop.f32.mrb[0].mxu0
      %v1894 = vadd.f32 0.0, %v1893
      %v1895 = vpop.f32.mrb[0].mxu0
      %1896 = vdwg.mxu0
      %v1897 = vld [vmem:[%s4] sm:$0xff]
      %v1898 = vld [vmem:[%s4 + $0x8] sm:$0xff]
      %v1899 = vld [vmem:[%s4 + $0x10] sm:$0xff]
      %v1900 = vld [vmem:[%s4 + $0x18] sm:$0xff]
      %v1901 = vld [vmem:[%s4 + $0x20] sm:$0xff]
      %v1902 = vld [vmem:[%s4 + $0x28] sm:$0xff]
      %v1903 = vld [vmem:[%s4 + $0x30] sm:$0xff]
      %v1904 = vld [vmem:[%s4 + $0x38] sm:$0xff]
      %v1905 = vld [vmem:[%s4 + $0x40] sm:$0xff]
      %v1906 = vld [vmem:[%s4 + $0x48] sm:$0xff]
      %v1907 = vld [vmem:[%s4 + $0x50] sm:$0xff]
      %v1908 = vld [vmem:[%s4 + $0x58] sm:$0xff]
      %v1909 = vld [vmem:[%s4 + $0x60] sm:$0xff]
      %v1910 = vld [vmem:[%s4 + $0x68] sm:$0xff]
      %v1911 = vld [vmem:[%s4 + $0x70] sm:$0xff]
      %v1912 = vld [vmem:[%s4 + $0x78] sm:$0xff]
      %v1914 = vsel %vm360, %v1322, 0
      %v1917 = vsel %vm360, %v1327, 0
      %1919 = vmatprep.subr.mxu0 0.0
      %1920 = vmatpush1.msra.mxu0 %v1897
      %1921 = vmatprep.subr.mxu0 0.0
      %1922 = vmatpush1.msra.mxu0 %v1898
      %1923 = vmatprep.subr.mxu0 0.0
      %1924 = vmatpush1.msra.mxu0 0.0
      %1925 = vmatprep.subr.mxu0 0.0
      %1926 = vmatpush1.msra.mxu0 0.0
      %1927 = vmatprep.subr.mxu0 0.0
      %1928 = vmatpush1.msra.mxu0 0.0
      %1929 = vmatprep.subr.mxu0 0.0
      %1930 = vmatpush1.msra.mxu0 0.0
      %1931 = vmatprep.subr.mxu0 0.0
      %1932 = vmatpush1.msra.mxu0 0.0
      %1933 = vmatprep.subr.mxu0 0.0
      %1934 = vmatpush1.msra.mxu0 0.0
      %1935 = vmatprep.subr.mxu0 0.0
      %1936 = vmatpush1.msra.mxu0 0.0
      %1937 = vmatprep.subr.mxu0 0.0
      %1938 = vmatpush1.msra.mxu0 0.0
      %1939 = vmatprep.subr.mxu0 0.0
      %1940 = vmatpush1.msra.mxu0 0.0
      %1941 = vmatprep.subr.mxu0 0.0
      %1942 = vmatpush1.msra.mxu0 0.0
      %1943 = vmatprep.subr.mxu0 0.0
      %1944 = vmatpush1.msra.mxu0 0.0
      %1945 = vmatprep.subr.mxu0 0.0
      %1946 = vmatpush1.msra.mxu0 0.0
      %1947 = vmatprep.subr.mxu0 0.0
      %1948 = vmatpush1.msra.mxu0 0.0
      %1949 = vmatprep.subr.mxu0 0.0
      %1950 = vmatpush1.msra.mxu0 0.0
      %1951 = vmatprep.subr.mxu0 0.0
      %1952 = vmatpush1.msra.mxu0 0.0
      %1953 = vmatprep.subr.mxu0 0.0
      %1954 = vmatpush1.msra.mxu0 0.0
      %1955 = vmatprep.subr.mxu0 0.0
      %1956 = vmatpush1.msra.mxu0 0.0
      %1957 = vmatprep.subr.mxu0 0.0
      %1958 = vmatpush1.msra.mxu0 0.0
      %1959 = vmatprep.subr.mxu0 0.0
      %1960 = vmatpush1.msra.mxu0 0.0
      %1961 = vmatprep.subr.mxu0 0.0
      %1962 = vmatpush1.msra.mxu0 0.0
      %1963 = vmatprep.subr.mxu0 0.0
      %1964 = vmatpush1.msra.mxu0 0.0
      %1965 = vmatprep.subr.mxu0 0.0
      %1966 = vmatpush1.msra.mxu0 0.0
      %1967 = vmatprep.subr.mxu0 0.0
      %1968 = vmatpush1.msra.mxu0 0.0
      %1969 = vmatprep.subr.mxu0 0.0
      %1970 = vmatpush1.msra.mxu0 0.0
      %1971 = vmatprep.subr.mxu0 0.0
      %1972 = vmatpush1.msra.mxu0 0.0
      %1973 = vmatprep.subr.mxu0 0.0
      %1974 = vmatpush1.msra.mxu0 0.0
      %1975 = vmatprep.subr.mxu0 0.0
      %1976 = vmatpush1.msra.mxu0 0.0
      %1977 = vmatprep.subr.mxu0 0.0
      %1978 = vmatpush1.msra.mxu0 0.0
      %1979 = vmatprep.subr.mxu0 0.0
      %1980 = vmatpush1.msra.mxu0 0.0
      %1981 = vmatprep.subr.mxu0 0.0
      %1982 = vmatpush1.msra.mxu0 0.0
      %1983 = vmatprep.mubr.f32.mxu0 0.0
      %1984 = vmatmul.mubr.f32.gmra.mrb[0].mxu0 %v1914
      %v1985 = vpop.f32.mrb[0].mxu0
      %v1986 = vadd.f32 0.0, %v1985
      %v1987 = vpop.f32.mrb[0].mxu0
      %1988 = vmatprep.mubr.f32.mxu0 0.0
      %1989 = vmatmul.mubr.f32.gmra.mrb[0].mxu0 %v1917
      %v1990 = vpop.f32.mrb[0].mxu0
      %v1991 = vadd.f32 0.0, %v1990
      %v1992 = vpop.f32.mrb[0].mxu0
      %1993 = vdwg.mxu0
      %v1995 = vsel %vm360, %v1403, 0
      %v1998 = vsel %vm360, %v1408, 0
      %2000 = vmatprep.subr.mxu0 0.0
      %2001 = vmatpush1.msra.mxu0 %v1899
      %2002 = vmatprep.subr.mxu0 0.0
      %2003 = vmatpush1.msra.mxu0 %v1900
      %2004 = vmatprep.subr.mxu0 0.0
      %2005 = vmatpush1.msra.mxu0 0.0
      %2006 = vmatprep.subr.mxu0 0.0
      %2007 = vmatpush1.msra.mxu0 0.0
      %2008 = vmatprep.subr.mxu0 0.0
      %2009 = vmatpush1.msra.mxu0 0.0
      %2010 = vmatprep.subr.mxu0 0.0
      %2011 = vmatpush1.msra.mxu0 0.0
      %2012 = vmatprep.subr.mxu0 0.0
      %2013 = vmatpush1.msra.mxu0 0.0
      %2014 = vmatprep.subr.mxu0 0.0
      %2015 = vmatpush1.msra.mxu0 0.0
      %2016 = vmatprep.subr.mxu0 0.0
      %2017 = vmatpush1.msra.mxu0 0.0
      %2018 = vmatprep.subr.mxu0 0.0
      %2019 = vmatpush1.msra.mxu0 0.0
      %2020 = vmatprep.subr.mxu0 0.0
      %2021 = vmatpush1.msra.mxu0 0.0
      %2022 = vmatprep.subr.mxu0 0.0
      %2023 = vmatpush1.msra.mxu0 0.0
      %2024 = vmatprep.subr.mxu0 0.0
      %2025 = vmatpush1.msra.mxu0 0.0
      %2026 = vmatprep.subr.mxu0 0.0
      %2027 = vmatpush1.msra.mxu0 0.0
      %2028 = vmatprep.subr.mxu0 0.0
      %2029 = vmatpush1.msra.mxu0 0.0
      %2030 = vmatprep.subr.mxu0 0.0
      %2031 = vmatpush1.msra.mxu0 0.0
      %2032 = vmatprep.subr.mxu0 0.0
      %2033 = vmatpush1.msra.mxu0 0.0
      %2034 = vmatprep.subr.mxu0 0.0
      %2035 = vmatpush1.msra.mxu0 0.0
      %2036 = vmatprep.subr.mxu0 0.0
      %2037 = vmatpush1.msra.mxu0 0.0
      %2038 = vmatprep.subr.mxu0 0.0
      %2039 = vmatpush1.msra.mxu0 0.0
      %2040 = vmatprep.subr.mxu0 0.0
      %2041 = vmatpush1.msra.mxu0 0.0
      %2042 = vmatprep.subr.mxu0 0.0
      %2043 = vmatpush1.msra.mxu0 0.0
      %2044 = vmatprep.subr.mxu0 0.0
      %2045 = vmatpush1.msra.mxu0 0.0
      %2046 = vmatprep.subr.mxu0 0.0
      %2047 = vmatpush1.msra.mxu0 0.0
      %2048 = vmatprep.subr.mxu0 0.0
      %2049 = vmatpush1.msra.mxu0 0.0
      %2050 = vmatprep.subr.mxu0 0.0
      %2051 = vmatpush1.msra.mxu0 0.0
      %2052 = vmatprep.subr.mxu0 0.0
      %2053 = vmatpush1.msra.mxu0 0.0
      %2054 = vmatprep.subr.mxu0 0.0
      %2055 = vmatpush1.msra.mxu0 0.0
      %2056 = vmatprep.subr.mxu0 0.0
      %2057 = vmatpush1.msra.mxu0 0.0
      %2058 = vmatprep.subr.mxu0 0.0
      %2059 = vmatpush1.msra.mxu0 0.0
      %2060 = vmatprep.subr.mxu0 0.0
      %2061 = vmatpush1.msra.mxu0 0.0
      %2062 = vmatprep.subr.mxu0 0.0
      %2063 = vmatpush1.msra.mxu0 0.0
      %2064 = vmatprep.mubr.f32.mxu0 0.0
      %2065 = vmatmul.mubr.f32.gmra.mrb[0].mxu0 %v1995
      %v2066 = vpop.f32.mrb[0].mxu0
      %v2067 = vadd.f32 0.0, %v2066
      %v2068 = vpop.f32.mrb[0].mxu0
      %2069 = vmatprep.mubr.f32.mxu0 0.0
      %2070 = vmatmul.mubr.f32.gmra.mrb[0].mxu0 %v1998
      %v2071 = vpop.f32.mrb[0].mxu0
      %v2072 = vadd.f32 0.0, %v2071
      %v2073 = vpop.f32.mrb[0].mxu0
      %2074 = vdwg.mxu0
      %v2076 = vsel %vm360, %v1484, 0
      %v2079 = vsel %vm360, %v1489, 0
      %2081 = vmatprep.subr.mxu0 0.0
      %2082 = vmatpush1.msra.mxu0 %v1901
      %2083 = vmatprep.subr.mxu0 0.0
      %2084 = vmatpush1.msra.mxu0 %v1902
      %2085 = vmatprep.subr.mxu0 0.0
      %2086 = vmatpush1.msra.mxu0 0.0
      %2087 = vmatprep.subr.mxu0 0.0
      %2088 = vmatpush1.msra.mxu0 0.0
      %2089 = vmatprep.subr.mxu0 0.0
      %2090 = vmatpush1.msra.mxu0 0.0
      %2091 = vmatprep.subr.mxu0 0.0
      %2092 = vmatpush1.msra.mxu0 0.0
      %2093 = vmatprep.subr.mxu0 0.0
      %2094 = vmatpush1.msra.mxu0 0.0
      %2095 = vmatprep.subr.mxu0 0.0
      %2096 = vmatpush1.msra.mxu0 0.0
      %2097 = vmatprep.subr.mxu0 0.0
      %2098 = vmatpush1.msra.mxu0 0.0
      %2099 = vmatprep.subr.mxu0 0.0
      %2100 = vmatpush1.msra.mxu0 0.0
      %2101 = vmatprep.subr.mxu0 0.0
      %2102 = vmatpush1.msra.mxu0 0.0
      %2103 = vmatprep.subr.mxu0 0.0
      %2104 = vmatpush1.msra.mxu0 0.0
      %2105 = vmatprep.subr.mxu0 0.0
      %2106 = vmatpush1.msra.mxu0 0.0
      %2107 = vmatprep.subr.mxu0 0.0
      %2108 = vmatpush1.msra.mxu0 0.0
      %2109 = vmatprep.subr.mxu0 0.0
      %2110 = vmatpush1.msra.mxu0 0.0
      %2111 = vmatprep.subr.mxu0 0.0
      %2112 = vmatpush1.msra.mxu0 0.0
      %2113 = vmatprep.subr.mxu0 0.0
      %2114 = vmatpush1.msra.mxu0 0.0
      %2115 = vmatprep.subr.mxu0 0.0
      %2116 = vmatpush1.msra.mxu0 0.0
      %2117 = vmatprep.subr.mxu0 0.0
      %2118 = vmatpush1.msra.mxu0 0.0
      %2119 = vmatprep.subr.mxu0 0.0
      %2120 = vmatpush1.msra.mxu0 0.0
      %2121 = vmatprep.subr.mxu0 0.0
      %2122 = vmatpush1.msra.mxu0 0.0
      %2123 = vmatprep.subr.mxu0 0.0
      %2124 = vmatpush1.msra.mxu0 0.0
      %2125 = vmatprep.subr.mxu0 0.0
      %2126 = vmatpush1.msra.mxu0 0.0
      %2127 = vmatprep.subr.mxu0 0.0
      %2128 = vmatpush1.msra.mxu0 0.0
      %2129 = vmatprep.subr.mxu0 0.0
      %2130 = vmatpush1.msra.mxu0 0.0
      %2131 = vmatprep.subr.mxu0 0.0
      %2132 = vmatpush1.msra.mxu0 0.0
      %2133 = vmatprep.subr.mxu0 0.0
      %2134 = vmatpush1.msra.mxu0 0.0
      %2135 = vmatprep.subr.mxu0 0.0
      %2136 = vmatpush1.msra.mxu0 0.0
      %2137 = vmatprep.subr.mxu0 0.0
      %2138 = vmatpush1.msra.mxu0 0.0
      %2139 = vmatprep.subr.mxu0 0.0
      %2140 = vmatpush1.msra.mxu0 0.0
      %2141 = vmatprep.subr.mxu0 0.0
      %2142 = vmatpush1.msra.mxu0 0.0
      %2143 = vmatprep.subr.mxu0 0.0
      %2144 = vmatpush1.msra.mxu0 0.0
      %2145 = vmatprep.mubr.f32.mxu0 0.0
      %2146 = vmatmul.mubr.f32.gmra.mrb[0].mxu0 %v2076
      %v2147 = vpop.f32.mrb[0].mxu0
      %v2148 = vadd.f32 0.0, %v2147
      %v2149 = vpop.f32.mrb[0].mxu0
      %2150 = vmatprep.mubr.f32.mxu0 0.0
      %2151 = vmatmul.mubr.f32.gmra.mrb[0].mxu0 %v2079
      %v2152 = vpop.f32.mrb[0].mxu0
      %v2153 = vadd.f32 0.0, %v2152
      %v2154 = vpop.f32.mrb[0].mxu0
      %2155 = vdwg.mxu0
      %v2157 = vsel %vm360, %v1565, 0
      %v2160 = vsel %vm360, %v1570, 0
      %2162 = vmatprep.subr.mxu0 0.0
      %2163 = vmatpush1.msra.mxu0 %v1903
      %2164 = vmatprep.subr.mxu0 0.0
      %2165 = vmatpush1.msra.mxu0 %v1904
      %2166 = vmatprep.subr.mxu0 0.0
      %2167 = vmatpush1.msra.mxu0 0.0
      %2168 = vmatprep.subr.mxu0 0.0
      %2169 = vmatpush1.msra.mxu0 0.0
      %2170 = vmatprep.subr.mxu0 0.0
      %2171 = vmatpush1.msra.mxu0 0.0
      %2172 = vmatprep.subr.mxu0 0.0
      %2173 = vmatpush1.msra.mxu0 0.0
      %2174 = vmatprep.subr.mxu0 0.0
      %2175 = vmatpush1.msra.mxu0 0.0
      %2176 = vmatprep.subr.mxu0 0.0
      %2177 = vmatpush1.msra.mxu0 0.0
      %2178 = vmatprep.subr.mxu0 0.0
      %2179 = vmatpush1.msra.mxu0 0.0
      %2180 = vmatprep.subr.mxu0 0.0
      %2181 = vmatpush1.msra.mxu0 0.0
      %2182 = vmatprep.subr.mxu0 0.0
      %2183 = vmatpush1.msra.mxu0 0.0
      %2184 = vmatprep.subr.mxu0 0.0
      %2185 = vmatpush1.msra.mxu0 0.0
      %2186 = vmatprep.subr.mxu0 0.0
      %2187 = vmatpush1.msra.mxu0 0.0
      %2188 = vmatprep.subr.mxu0 0.0
      %2189 = vmatpush1.msra.mxu0 0.0
      %2190 = vmatprep.subr.mxu0 0.0
      %2191 = vmatpush1.msra.mxu0 0.0
      %2192 = vmatprep.subr.mxu0 0.0
      %2193 = vmatpush1.msra.mxu0 0.0
      %2194 = vmatprep.subr.mxu0 0.0
      %2195 = vmatpush1.msra.mxu0 0.0
      %2196 = vmatprep.subr.mxu0 0.0
      %2197 = vmatpush1.msra.mxu0 0.0
      %2198 = vmatprep.subr.mxu0 0.0
      %2199 = vmatpush1.msra.mxu0 0.0
      %2200 = vmatprep.subr.mxu0 0.0
      %2201 = vmatpush1.msra.mxu0 0.0
      %2202 = vmatprep.subr.mxu0 0.0
      %2203 = vmatpush1.msra.mxu0 0.0
      %2204 = vmatprep.subr.mxu0 0.0
      %2205 = vmatpush1.msra.mxu0 0.0
      %2206 = vmatprep.subr.mxu0 0.0
      %2207 = vmatpush1.msra.mxu0 0.0
      %2208 = vmatprep.subr.mxu0 0.0
      %2209 = vmatpush1.msra.mxu0 0.0
      %2210 = vmatprep.subr.mxu0 0.0
      %2211 = vmatpush1.msra.mxu0 0.0
      %2212 = vmatprep.subr.mxu0 0.0
      %2213 = vmatpush1.msra.mxu0 0.0
      %2214 = vmatprep.subr.mxu0 0.0
      %2215 = vmatpush1.msra.mxu0 0.0
      %2216 = vmatprep.subr.mxu0 0.0
      %2217 = vmatpush1.msra.mxu0 0.0
      %2218 = vmatprep.subr.mxu0 0.0
      %2219 = vmatpush1.msra.mxu0 0.0
      %2220 = vmatprep.subr.mxu0 0.0
      %2221 = vmatpush1.msra.mxu0 0.0
      %2222 = vmatprep.subr.mxu0 0.0
      %2223 = vmatpush1.msra.mxu0 0.0
      %2224 = vmatprep.subr.mxu0 0.0
      %2225 = vmatpush1.msra.mxu0 0.0
      %2226 = vmatprep.mubr.f32.mxu0 0.0
      %2227 = vmatmul.mubr.f32.gmra.mrb[0].mxu0 %v2157
      %v2228 = vpop.f32.mrb[0].mxu0
      %v2229 = vadd.f32 0.0, %v2228
      %v2230 = vpop.f32.mrb[0].mxu0
      %2231 = vmatprep.mubr.f32.mxu0 0.0
      %2232 = vmatmul.mubr.f32.gmra.mrb[0].mxu0 %v2160
      %v2233 = vpop.f32.mrb[0].mxu0
      %v2234 = vadd.f32 0.0, %v2233
      %v2235 = vpop.f32.mrb[0].mxu0
      %2236 = vdwg.mxu0
      %v2238 = vsel %vm360, %v1646, 0
      %v2241 = vsel %vm360, %v1651, 0
      %2243 = vmatprep.subr.mxu0 0.0
      %2244 = vmatpush1.msra.mxu0 %v1905
      %2245 = vmatprep.subr.mxu0 0.0
      %2246 = vmatpush1.msra.mxu0 %v1906
      %2247 = vmatprep.subr.mxu0 0.0
      %2248 = vmatpush1.msra.mxu0 0.0
      %2249 = vmatprep.subr.mxu0 0.0
      %2250 = vmatpush1.msra.mxu0 0.0
      %2251 = vmatprep.subr.mxu0 0.0
      %2252 = vmatpush1.msra.mxu0 0.0
      %2253 = vmatprep.subr.mxu0 0.0
      %2254 = vmatpush1.msra.mxu0 0.0
      %2255 = vmatprep.subr.mxu0 0.0
      %2256 = vmatpush1.msra.mxu0 0.0
      %2257 = vmatprep.subr.mxu0 0.0
      %2258 = vmatpush1.msra.mxu0 0.0
      %2259 = vmatprep.subr.mxu0 0.0
      %2260 = vmatpush1.msra.mxu0 0.0
      %2261 = vmatprep.subr.mxu0 0.0
      %2262 = vmatpush1.msra.mxu0 0.0
      %2263 = vmatprep.subr.mxu0 0.0
      %2264 = vmatpush1.msra.mxu0 0.0
      %2265 = vmatprep.subr.mxu0 0.0
      %2266 = vmatpush1.msra.mxu0 0.0
      %2267 = vmatprep.subr.mxu0 0.0
      %2268 = vmatpush1.msra.mxu0 0.0
      %2269 = vmatprep.subr.mxu0 0.0
      %2270 = vmatpush1.msra.mxu0 0.0
      %2271 = vmatprep.subr.mxu0 0.0
      %2272 = vmatpush1.msra.mxu0 0.0
      %2273 = vmatprep.subr.mxu0 0.0
      %2274 = vmatpush1.msra.mxu0 0.0
      %2275 = vmatprep.subr.mxu0 0.0
      %2276 = vmatpush1.msra.mxu0 0.0
      %2277 = vmatprep.subr.mxu0 0.0
      %2278 = vmatpush1.msra.mxu0 0.0
      %2279 = vmatprep.subr.mxu0 0.0
      %2280 = vmatpush1.msra.mxu0 0.0
      %2281 = vmatprep.subr.mxu0 0.0
      %2282 = vmatpush1.msra.mxu0 0.0
      %2283 = vmatprep.subr.mxu0 0.0
      %2284 = vmatpush1.msra.mxu0 0.0
      %2285 = vmatprep.subr.mxu0 0.0
      %2286 = vmatpush1.msra.mxu0 0.0
      %2287 = vmatprep.subr.mxu0 0.0
      %2288 = vmatpush1.msra.mxu0 0.0
      %2289 = vmatprep.subr.mxu0 0.0
      %2290 = vmatpush1.msra.mxu0 0.0
      %2291 = vmatprep.subr.mxu0 0.0
      %2292 = vmatpush1.msra.mxu0 0.0
      %2293 = vmatprep.subr.mxu0 0.0
      %2294 = vmatpush1.msra.mxu0 0.0
      %2295 = vmatprep.subr.mxu0 0.0
      %2296 = vmatpush1.msra.mxu0 0.0
      %2297 = vmatprep.subr.mxu0 0.0
      %2298 = vmatpush1.msra.mxu0 0.0
      %2299 = vmatprep.subr.mxu0 0.0
      %2300 = vmatpush1.msra.mxu0 0.0
      %2301 = vmatprep.subr.mxu0 0.0
      %2302 = vmatpush1.msra.mxu0 0.0
      %2303 = vmatprep.subr.mxu0 0.0
      %2304 = vmatpush1.msra.mxu0 0.0
      %2305 = vmatprep.subr.mxu0 0.0
      %2306 = vmatpush1.msra.mxu0 0.0
      %2307 = vmatprep.mubr.f32.mxu0 0.0
      %2308 = vmatmul.mubr.f32.gmra.mrb[0].mxu0 %v2238
      %v2309 = vpop.f32.mrb[0].mxu0
      %v2310 = vadd.f32 0.0, %v2309
      %v2311 = vpop.f32.mrb[0].mxu0
      %2312 = vmatprep.mubr.f32.mxu0 0.0
      %2313 = vmatmul.mubr.f32.gmra.mrb[0].mxu0 %v2241
      %v2314 = vpop.f32.mrb[0].mxu0
      %v2315 = vadd.f32 0.0, %v2314
      %v2316 = vpop.f32.mrb[0].mxu0
      %2317 = vdwg.mxu0
      %v2319 = vsel %vm360, %v1727, 0
      %v2322 = vsel %vm360, %v1732, 0
      %2324 = vmatprep.subr.mxu0 0.0
      %2325 = vmatpush1.msra.mxu0 %v1907
      %2326 = vmatprep.subr.mxu0 0.0
      %2327 = vmatpush1.msra.mxu0 %v1908
      %2328 = vmatprep.subr.mxu0 0.0
      %2329 = vmatpush1.msra.mxu0 0.0
      %2330 = vmatprep.subr.mxu0 0.0
      %2331 = vmatpush1.msra.mxu0 0.0
      %2332 = vmatprep.subr.mxu0 0.0
      %2333 = vmatpush1.msra.mxu0 0.0
      %2334 = vmatprep.subr.mxu0 0.0
      %2335 = vmatpush1.msra.mxu0 0.0
      %2336 = vmatprep.subr.mxu0 0.0
      %2337 = vmatpush1.msra.mxu0 0.0
      %2338 = vmatprep.subr.mxu0 0.0
      %2339 = vmatpush1.msra.mxu0 0.0
      %2340 = vmatprep.subr.mxu0 0.0
      %2341 = vmatpush1.msra.mxu0 0.0
      %2342 = vmatprep.subr.mxu0 0.0
      %2343 = vmatpush1.msra.mxu0 0.0
      %2344 = vmatprep.subr.mxu0 0.0
      %2345 = vmatpush1.msra.mxu0 0.0
      %2346 = vmatprep.subr.mxu0 0.0
      %2347 = vmatpush1.msra.mxu0 0.0
      %2348 = vmatprep.subr.mxu0 0.0
      %2349 = vmatpush1.msra.mxu0 0.0
      %2350 = vmatprep.subr.mxu0 0.0
      %2351 = vmatpush1.msra.mxu0 0.0
      %2352 = vmatprep.subr.mxu0 0.0
      %2353 = vmatpush1.msra.mxu0 0.0
      %2354 = vmatprep.subr.mxu0 0.0
      %2355 = vmatpush1.msra.mxu0 0.0
      %2356 = vmatprep.subr.mxu0 0.0
      %2357 = vmatpush1.msra.mxu0 0.0
      %2358 = vmatprep.subr.mxu0 0.0
      %2359 = vmatpush1.msra.mxu0 0.0
      %2360 = vmatprep.subr.mxu0 0.0
      %2361 = vmatpush1.msra.mxu0 0.0
      %2362 = vmatprep.subr.mxu0 0.0
      %2363 = vmatpush1.msra.mxu0 0.0
      %2364 = vmatprep.subr.mxu0 0.0
      %2365 = vmatpush1.msra.mxu0 0.0
      %2366 = vmatprep.subr.mxu0 0.0
      %2367 = vmatpush1.msra.mxu0 0.0
      %2368 = vmatprep.subr.mxu0 0.0
      %2369 = vmatpush1.msra.mxu0 0.0
      %2370 = vmatprep.subr.mxu0 0.0
      %2371 = vmatpush1.msra.mxu0 0.0
      %2372 = vmatprep.subr.mxu0 0.0
      %2373 = vmatpush1.msra.mxu0 0.0
      %2374 = vmatprep.subr.mxu0 0.0
      %2375 = vmatpush1.msra.mxu0 0.0
      %2376 = vmatprep.subr.mxu0 0.0
      %2377 = vmatpush1.msra.mxu0 0.0
      %2378 = vmatprep.subr.mxu0 0.0
      %2379 = vmatpush1.msra.mxu0 0.0
      %2380 = vmatprep.subr.mxu0 0.0
      %2381 = vmatpush1.msra.mxu0 0.0
      %2382 = vmatprep.subr.mxu0 0.0
      %2383 = vmatpush1.msra.mxu0 0.0
      %2384 = vmatprep.subr.mxu0 0.0
      %2385 = vmatpush1.msra.mxu0 0.0
      %2386 = vmatprep.subr.mxu0 0.0
      %2387 = vmatpush1.msra.mxu0 0.0
      %2388 = vmatprep.mubr.f32.mxu0 0.0
      %2389 = vmatmul.mubr.f32.gmra.mrb[0].mxu0 %v2319
      %v2390 = vpop.f32.mrb[0].mxu0
      %v2391 = vadd.f32 0.0, %v2390
      %v2392 = vpop.f32.mrb[0].mxu0
      %2393 = vmatprep.mubr.f32.mxu0 0.0
      %2394 = vmatmul.mubr.f32.gmra.mrb[0].mxu0 %v2322
      %v2395 = vpop.f32.mrb[0].mxu0
      %v2396 = vadd.f32 0.0, %v2395
      %v2397 = vpop.f32.mrb[0].mxu0
      %2398 = vdwg.mxu0
      %v2400 = vsel %vm360, %v1808, 0
      %v2403 = vsel %vm360, %v1813, 0
      %2405 = vmatprep.subr.mxu0 0.0
      %2406 = vmatpush1.msra.mxu0 %v1909
      %2407 = vmatprep.subr.mxu0 0.0
      %2408 = vmatpush1.msra.mxu0 %v1910
      %2409 = vmatprep.subr.mxu0 0.0
      %2410 = vmatpush1.msra.mxu0 0.0
      %2411 = vmatprep.subr.mxu0 0.0
      %2412 = vmatpush1.msra.mxu0 0.0
      %2413 = vmatprep.subr.mxu0 0.0
      %2414 = vmatpush1.msra.mxu0 0.0
      %2415 = vmatprep.subr.mxu0 0.0
      %2416 = vmatpush1.msra.mxu0 0.0
      %2417 = vmatprep.subr.mxu0 0.0
      %2418 = vmatpush1.msra.mxu0 0.0
      %2419 = vmatprep.subr.mxu0 0.0
      %2420 = vmatpush1.msra.mxu0 0.0
      %2421 = vmatprep.subr.mxu0 0.0
      %2422 = vmatpush1.msra.mxu0 0.0
      %2423 = vmatprep.subr.mxu0 0.0
      %2424 = vmatpush1.msra.mxu0 0.0
      %2425 = vmatprep.subr.mxu0 0.0
      %2426 = vmatpush1.msra.mxu0 0.0
      %2427 = vmatprep.subr.mxu0 0.0
      %2428 = vmatpush1.msra.mxu0 0.0
      %2429 = vmatprep.subr.mxu0 0.0
      %2430 = vmatpush1.msra.mxu0 0.0
      %2431 = vmatprep.subr.mxu0 0.0
      %2432 = vmatpush1.msra.mxu0 0.0
      %2433 = vmatprep.subr.mxu0 0.0
      %2434 = vmatpush1.msra.mxu0 0.0
      %2435 = vmatprep.subr.mxu0 0.0
      %2436 = vmatpush1.msra.mxu0 0.0
      %2437 = vmatprep.subr.mxu0 0.0
      %2438 = vmatpush1.msra.mxu0 0.0
      %2439 = vmatprep.subr.mxu0 0.0
      %2440 = vmatpush1.msra.mxu0 0.0
      %2441 = vmatprep.subr.mxu0 0.0
      %2442 = vmatpush1.msra.mxu0 0.0
      %2443 = vmatprep.subr.mxu0 0.0
      %2444 = vmatpush1.msra.mxu0 0.0
      %2445 = vmatprep.subr.mxu0 0.0
      %2446 = vmatpush1.msra.mxu0 0.0
      %2447 = vmatprep.subr.mxu0 0.0
      %2448 = vmatpush1.msra.mxu0 0.0
      %2449 = vmatprep.subr.mxu0 0.0
      %2450 = vmatpush1.msra.mxu0 0.0
      %2451 = vmatprep.subr.mxu0 0.0
      %2452 = vmatpush1.msra.mxu0 0.0
      %2453 = vmatprep.subr.mxu0 0.0
      %2454 = vmatpush1.msra.mxu0 0.0
      %2455 = vmatprep.subr.mxu0 0.0
      %2456 = vmatpush1.msra.mxu0 0.0
      %2457 = vmatprep.subr.mxu0 0.0
      %2458 = vmatpush1.msra.mxu0 0.0
      %2459 = vmatprep.subr.mxu0 0.0
      %2460 = vmatpush1.msra.mxu0 0.0
      %2461 = vmatprep.subr.mxu0 0.0
      %2462 = vmatpush1.msra.mxu0 0.0
      %2463 = vmatprep.subr.mxu0 0.0
      %2464 = vmatpush1.msra.mxu0 0.0
      %2465 = vmatprep.subr.mxu0 0.0
      %2466 = vmatpush1.msra.mxu0 0.0
      %2467 = vmatprep.subr.mxu0 0.0
      %2468 = vmatpush1.msra.mxu0 0.0
      %2469 = vmatprep.mubr.f32.mxu0 0.0
      %2470 = vmatmul.mubr.f32.gmra.mrb[0].mxu0 %v2400
      %v2471 = vpop.f32.mrb[0].mxu0
      %v2472 = vadd.f32 0.0, %v2471
      %v2473 = vpop.f32.mrb[0].mxu0
      %2474 = vmatprep.mubr.f32.mxu0 0.0
      %2475 = vmatmul.mubr.f32.gmra.mrb[0].mxu0 %v2403
      %v2476 = vpop.f32.mrb[0].mxu0
      %v2477 = vadd.f32 0.0, %v2476
      %v2478 = vpop.f32.mrb[0].mxu0
      %2479 = vdwg.mxu0
      %v2481 = vsel %vm360, %v1889, 0
      %v2484 = vsel %vm360, %v1894, 0
      %2486 = vmatprep.subr.mxu0 0.0
      %2487 = vmatpush1.msra.mxu0 %v1911
      %2488 = vmatprep.subr.mxu0 0.0
      %2489 = vmatpush1.msra.mxu0 %v1912
      %2490 = vmatprep.subr.mxu0 0.0
      %2491 = vmatpush1.msra.mxu0 0.0
      %2492 = vmatprep.subr.mxu0 0.0
      %2493 = vmatpush1.msra.mxu0 0.0
      %2494 = vmatprep.subr.mxu0 0.0
      %2495 = vmatpush1.msra.mxu0 0.0
      %2496 = vmatprep.subr.mxu0 0.0
      %2497 = vmatpush1.msra.mxu0 0.0
      %2498 = vmatprep.subr.mxu0 0.0
      %2499 = vmatpush1.msra.mxu0 0.0
      %2500 = vmatprep.subr.mxu0 0.0
      %2501 = vmatpush1.msra.mxu0 0.0
      %2502 = vmatprep.subr.mxu0 0.0
      %2503 = vmatpush1.msra.mxu0 0.0
      %2504 = vmatprep.subr.mxu0 0.0
      %2505 = vmatpush1.msra.mxu0 0.0
      %2506 = vmatprep.subr.mxu0 0.0
      %2507 = vmatpush1.msra.mxu0 0.0
      %2508 = vmatprep.subr.mxu0 0.0
      %2509 = vmatpush1.msra.mxu0 0.0
      %2510 = vmatprep.subr.mxu0 0.0
      %2511 = vmatpush1.msra.mxu0 0.0
      %2512 = vmatprep.subr.mxu0 0.0
      %2513 = vmatpush1.msra.mxu0 0.0
      %2514 = vmatprep.subr.mxu0 0.0
      %2515 = vmatpush1.msra.mxu0 0.0
      %2516 = vmatprep.subr.mxu0 0.0
      %2517 = vmatpush1.msra.mxu0 0.0
      %2518 = vmatprep.subr.mxu0 0.0
      %2519 = vmatpush1.msra.mxu0 0.0
      %2520 = vmatprep.subr.mxu0 0.0
      %2521 = vmatpush1.msra.mxu0 0.0
      %2522 = vmatprep.subr.mxu0 0.0
      %2523 = vmatpush1.msra.mxu0 0.0
      %2524 = vmatprep.subr.mxu0 0.0
      %2525 = vmatpush1.msra.mxu0 0.0
      %2526 = vmatprep.subr.mxu0 0.0
      %2527 = vmatpush1.msra.mxu0 0.0
      %2528 = vmatprep.subr.mxu0 0.0
      %2529 = vmatpush1.msra.mxu0 0.0
      %2530 = vmatprep.subr.mxu0 0.0
      %2531 = vmatpush1.msra.mxu0 0.0
      %2532 = vmatprep.subr.mxu0 0.0
      %2533 = vmatpush1.msra.mxu0 0.0
      %2534 = vmatprep.subr.mxu0 0.0
      %2535 = vmatpush1.msra.mxu0 0.0
      %2536 = vmatprep.subr.mxu0 0.0
      %2537 = vmatpush1.msra.mxu0 0.0
      %2538 = vmatprep.subr.mxu0 0.0
      %2539 = vmatpush1.msra.mxu0 0.0
      %2540 = vmatprep.subr.mxu0 0.0
      %2541 = vmatpush1.msra.mxu0 0.0
      %2542 = vmatprep.subr.mxu0 0.0
      %2543 = vmatpush1.msra.mxu0 0.0
      %2544 = vmatprep.subr.mxu0 0.0
      %2545 = vmatpush1.msra.mxu0 0.0
      %2546 = vmatprep.subr.mxu0 0.0
      %2547 = vmatpush1.msra.mxu0 0.0
      %2548 = vmatprep.subr.mxu0 0.0
      %2549 = vmatpush1.msra.mxu0 0.0
      %2550 = vmatprep.mubr.f32.mxu0 0.0
      %2551 = vmatmul.mubr.f32.gmra.mrb[0].mxu0 %v2481
      %v2552 = vpop.f32.mrb[0].mxu0
      %v2553 = vadd.f32 0.0, %v2552
      %v2554 = vpop.f32.mrb[0].mxu0
      %2555 = vmatprep.mubr.f32.mxu0 0.0
      %2556 = vmatmul.mubr.f32.gmra.mrb[0].mxu0 %v2484
      %v2557 = vpop.f32.mrb[0].mxu0
      %v2558 = vadd.f32 0.0, %v2557
      %v2559 = vpop.f32.mrb[0].mxu0
      %2560 = vdwg.mxu0
      %v2561 = vadd.f32 %v1986, %v2067
      %v2562 = vadd.f32 %v2561, %v2148
      %v2563 = vadd.f32 %v2562, %v2229
      %v2564 = vadd.f32 %v2563, %v2310
      %v2565 = vadd.f32 %v2564, %v2391
      %v2566 = vadd.f32 %v2565, %v2472
      %v2567 = vadd.f32 %v2566, %v2553
      %v2568 = vadd.f32 %v1991, %v2072
      %v2569 = vadd.f32 %v2568, %v2153
      %v2570 = vadd.f32 %v2569, %v2234
      %v2571 = vadd.f32 %v2570, %v2315
      %v2572 = vadd.f32 %v2571, %v2396
      %v2573 = vadd.f32 %v2572, %v2477
      %v2574 = vadd.f32 %v2573, %v2558
      %v2575 = vld [vmem:[%s5] sm:$0x1]
      %v2577 = vlaneseq
      %v2578 = vshrl.u32 %v2577, 7
      %v2579 = vsub.s32 0, %v2578
      %v2580 = vrot.slane %v2575, %v2579
      %v2582 = vadd.f32 %v2567, %v2580
      %v2583 = vadd.f32 %v2574, %v2580
      %v2584 = vld [vmem:[%s306] sm:$0xff]
      %v2585 = vld [vmem:[%s306 + $0x8] sm:$0xff]
      %v2586 = vadd.f32 %v2582, %v2584
      %v2587 = vadd.f32 %v2583, %v2585
      %2588 = vst [vmem:[%s311] sm:$0xff] %v2586
      %2589 = vst [vmem:[%s311 + $0x8] sm:$0xff] %v2587
      %p2590 = scmp.lt.s32.totalorder %s17, 1
      %s2591 = scalar_select %p2590, %s17, 1
      %s2592 = smul.addr %s2591, 2
      %s2593 = smul.addr %s2592, 8
      %s2594 = scalar_lea.vmem %s6, %s2593
      // Predicated region
      $region45: #{block_forward.4} parent=43 // pred_check
        %p2595 = pneg %p181
      $region46: #{block_forward.4} parent=43 // pred_check_branch
        %2597 = sbr.rel (%p2595) target = $region48
      $region47: #{block_forward.4} parent=43 // pred_region
        _
      $region48: #{block_forward.4} parent=43 // pred_fallthru
        _
    $region44: #{block_forward.4} parent=5 // pred_fallthru
      _
    %p2598 = scmp.le.s32.totalorder 2, %s12
    // Predicated region
    $region49: #{block_forward.4} parent=5 // pred_check
      %p2599 = pneg %p2598
    $region50: #{block_forward.4} parent=5 // pred_check_branch
      %2601 = sbr.rel (%p2599) target = $region52
    $region51: #{block_forward.4} parent=5 // pred_region
      %s2602 = ssub.s32 %s12, 2
      // Predicated region
      $region53: #{block_forward.4} parent=51 // pred_check
        %p2603 = pneg %p187
      $region54: #{block_forward.4} parent=51 // pred_check_branch
        %2605 = sbr.rel (%p2603) target = $region56
      $region55: #{block_forward.4} parent=51 // pred_region
        %p2606 = scmp.lt.s32.totalorder %s18, 1
        %s2607 = scalar_select %p2606, %s18, 1
        %s2608 = smul.addr %s2607, 2
        %s2609 = smul.addr %s2608, 8
        %s2610 = scalar_lea.vmem %s6, %s2609
      $region56: #{block_forward.4} parent=51 // pred_fallthru
        _
    $region52: #{block_forward.4} parent=5 // pred_fallthru
      _
  $region6: #{block_forward.4} parent=0 // loop_footer
    %s16 = sadd.s32 1, %s12
  $region7: #{block_forward.4} parent=0 // loop_footer_branch
    %11 = sbr.rel target = $region3
  $region8: #{block_forward.4} parent=0 // loop_exit
    _

</llo_original>
